<compile_context>
chip_gen: v7x
topology: tpu7x:2x2x1
jax: 0.10.0
libtpu: 0.0.40
codegen_flags: <defaults>
</compile_context>

<pallas_src>
import math
import numpy as np
import jax
import jax.numpy as jnp
from jax import lax
from jax.experimental import pallas as pl
from jax.experimental.pallas import tpu as pltpu

BN_EPS = 1e-5
K = 3
PAD = K // 2
LANE = 128


def _round_up(x, m):
    return (x + m - 1) // m * m


# --------------------------------------------------------------------------------------
# Fused doubleConv Pallas kernel
# --------------------------------------------------------------------------------------
def _double_conv_kernel(Bblk, H, W, K1P, Cmid, CoutP):
    """conv1 (pre-im2col'd, one matmul) + ReLU  ->  conv2 (3x3 via padded VMEM scratch) + ReLU."""
    M = Bblk * H * W

    def kernel(a1_ref, w1_ref, b1_ref, w2_ref, b2_ref, o_ref, pad_ref):
        # ---- conv1: single dense MXU matmul on the lane-dense bf16 im2col slab ----
        a1 = a1_ref[...].reshape(M, K1P)                                   # bf16 (M, 128)
        h = jnp.dot(a1, w1_ref[...],
                    preferred_element_type=jnp.float32) + b1_ref[...]
        h = jnp.maximum(h, 0.0)                                            # f32 (M, Cmid)

        # ---- 'same' padding for conv2: zero halo border + slice-store the interior ----
        # (no jnp.concatenate copies; border is rewritten every grid step so the kernel
        #  stays correct if the "parallel" grid axis is split across TensorCores)
        zrow = jnp.zeros((Bblk, PAD, W + 2 * PAD, Cmid), jnp.float32)
        zcol = jnp.zeros((Bblk, H + 2 * PAD, PAD, Cmid), jnp.float32)
        pad_ref[:, 0:PAD, :, :] = zrow
        pad_ref[:, H + PAD:H + 2 * PAD, :, :] = zrow
        pad_ref[:, :, 0:PAD, :] = zcol
        pad_ref[:, :, W + PAD:W + 2 * PAD, :] = zcol
        pad_ref[:, PAD:PAD + H, PAD:PAD + W, :] = h.reshape(Bblk, H, W, Cmid)

        # ---- conv2: 9 per-tap MXU matmuls, f32 accumulation in a jnp value ----
        acc = jnp.zeros((M, CoutP), jnp.float32)
        for dy in range(K):
            for dx in range(K):
                win = pad_ref[:, dy:dy + H, dx:dx + W, :]                  # f32 (Bblk,H,W,Cmid)
                win = win.reshape(M, Cmid).astype(jnp.bfloat16)
                acc = acc + jnp.dot(win, w2_ref[dy * K + dx],
                                    preferred_element_type=jnp.float32)
        y = jnp.maximum(acc + b2_ref[...], 0.0)                            # f32 (M, CoutP)
        o_ref[...] = y.reshape(Bblk, H, W, CoutP)                          # lane-dense store

    return kernel


def _pick_batch_block(B, HW, target_rows=2048):
    """Stack images into the matmul M dimension (amortise MXU weight push / step overhead)."""
    bb = max(1, min(B, target_rows // max(HW, 1)))
    while B % bb:
        bb -= 1
    return bb


def _vmem_limit_bytes():
    # ~96 MiB on v5e/v6e (128 MiB physical VMEM), ~48 MiB on v7x (64 MiB physical).
    try:
        cap = pltpu.get_tpu_info().vmem_capacity_bytes
    except Exception:
        cap = 64 * 1024 * 1024
    return int(cap * 3 // 4)


def _im2col_conv1(x_nhwc, k1p):
    """Wrapper-side im2col for conv1 (Cin is tiny, so the lane-sparse gather is done in XLA),
    zero-padded to a 128-deep contraction and cast to bf16."""
    B, H, W, Cin = x_nhwc.shape
    xp = jnp.pad(x_nhwc, ((0, 0), (PAD, PAD), (PAD, PAD), (0, 0)))
    cols = [xp[:, dy:dy + H, dx:dx + W, :].reshape(B, H * W, Cin)
            for dy in range(K) for dx in range(K)]
    a = jnp.concatenate(cols, axis=-1)                                     # (B, H*W, 9*Cin)
    a = jnp.pad(a, ((0, 0), (0, 0), (0, k1p - K * K * Cin)))
    return a.astype(jnp.bfloat16)


def double_conv_pallas(x_nhwc, params, batch_block=None):
    B, H, W, Cin = x_nhwc.shape
    Cmid = params["c1"]["w"].shape[-1]
    Cout = params["c2"]["w"].shape[-1]
    K1 = K * K * Cin
    K1P = _round_up(K1, LANE)
    CoutP = _round_up(Cout, LANE)

    # Lane-dense bf16 kernel-side parameters (BN already folded into params).
    a1 = _im2col_conv1(x_nhwc, K1P)                                        # (B, H*W, K1P) bf16
    w1 = jnp.pad(params["c1"]["w"], ((0, K1P - K1), (0, 0))).astype(jnp.bfloat16)
    b1 = params["c1"]["b"].astype(jnp.float32)                             # (1, Cmid)
    w2 = jnp.pad(params["c2"]["w"].reshape(K * K, Cmid, Cout),
                 ((0, 0), (0, 0), (0, CoutP - Cout))).astype(jnp.bfloat16)  # (9, Cmid, CoutP)
    b2 = jnp.pad(params["c2"]["b"], ((0, 0), (0, CoutP - Cout))).astype(jnp.float32)

    Bblk = batch_block if batch_block is not None else _pick_batch_block(B, H * W)
    grid = (B // Bblk,)

    flops = 2 * B * H * W * (K1 * Cmid + K * K * Cmid * Cout)
    bytes_accessed = (a1.size * 2 + w1.size * 2 + w2.size * 2
                      + b1.size * 4 + b2.size * 4 + B * H * W * CoutP * 4)

    # TODO(synk): before scaling H,W (and for v7x's 64 MiB VMEM), add row tiling with a
    # 1-row halo and a second "parallel" spatial grid axis so both TensorCores stay busy
    # even at batch 1; at these sizes one batch block per grid step fits VMEM easily.
    y = pl.pallas_call(
        _double_conv_kernel(Bblk, H, W, K1P, Cmid, CoutP),
        out_shape=jax.ShapeDtypeStruct((B, H, W, CoutP), jnp.float32),
        grid=grid,
        in_specs=[
            pl.BlockSpec((Bblk, H * W, K1P), lambda b: (b, 0, 0)),
            pl.BlockSpec((K1P, Cmid), lambda b: (0, 0)),
            pl.BlockSpec((1, Cmid), lambda b: (0, 0)),
            pl.BlockSpec((K * K, Cmid, CoutP), lambda b: (0, 0, 0)),
            pl.BlockSpec((1, CoutP), lambda b: (0, 0)),
        ],
        out_specs=pl.BlockSpec((Bblk, H, W, CoutP), lambda b: (b, 0, 0, 0)),
        scratch_shapes=[pltpu.VMEM((Bblk, H + 2 * PAD, W + 2 * PAD, Cmid), jnp.float32)],
        compiler_params=pltpu.CompilerParams(
            dimension_semantics=("parallel",),
            vmem_limit_bytes=_vmem_limit_bytes(),
        ),
        cost_estimate=pl.CostEstimate(flops=flops, transcendentals=0,
                                      bytes_accessed=bytes_accessed),
    )(a1, w1, b1, w2, b2)
    return y[..., :Cout]                                                   # drop lane padding


# --------------------------------------------------------------------------------------
# Deterministic parameters (Conv + eval-mode BatchNorm folded), and pure-JAX references
# --------------------------------------------------------------------------------------
class ParamGen:
    def __init__(self, seed=0):
        self.key = jax.random.PRNGKey(seed)

    def draw(self, shape, scale=1.0, loc=0.0):
        self.key, sub = jax.random.split(self.key)
        return loc + scale * jax.random.normal(sub, shape, jnp.float32)


def conv_bn_params(pg, cin, cout):
    """3x3 conv (HWIO) + eval-mode BatchNorm folded into an im2col weight (9*cin, cout)."""
    fan_in = K * K * cin
    w = pg.draw((K, K, cin, cout), 1.0 / math.sqrt(fan_in))
    b = pg.draw((cout,), 0.01)
    gamma = pg.draw((cout,), 0.1, 1.0)
    beta = pg.draw((cout,), 0.1)
    mean = pg.draw((cout,), 0.1)
    var = jnp.abs(pg.draw((cout,), 0.1, 1.0)) + 0.1
    scale = gamma * lax.rsqrt(var + BN_EPS)
    w_f = w * scale                                  # broadcast over cout (last axis)
    b_f = (b - mean) * scale + beta
    # im2col tap order (dy, dx, cin) matches reshape of the HWIO weight
    return {"w": w_f.reshape(K * K * cin, cout), "b": b_f.reshape(1, cout)}


def double_conv_params(cin, cout, seed=0):
    pg = ParamGen(seed)
    return {"c1": conv_bn_params(pg, cin, cout),
            "c2": conv_bn_params(pg, cout, cout)}


def double_conv_forward(x_nchw, params):
    # TODO(synk): keep NHWC end-to-end in the caller to skip these two transposes.
    x = jnp.transpose(x_nchw, (0, 2, 3, 1)).astype(jnp.float32)            # NCHW -> NHWC
    y = double_conv_pallas(x, params)                                      # (B, H, W, Cout)
    return jnp.transpose(y, (0, 3, 1, 2))                                  # NHWC -> NCHW


def double_conv_ref(x_nhwc, params, operand_dtype=jnp.float32):
    """Pure-JAX reference on the same folded params; operand_dtype=bf16 reproduces the
    kernel's MXU operand precision (accumulation is f32 either way)."""
    prec = lax.Precision.HIGHEST if operand_dtype == jnp.float32 else lax.Precision.DEFAULT

    def conv(x, w, b):
        B, H, W, C = x.shape
        xp = jnp.pad(x, ((0, 0), (PAD, PAD), (PAD, PAD), (0, 0)))
        cols = [xp[:, dy:dy + H, dx:dx + W, :].reshape(B, H * W, C)
                for dy in range(K) for dx in range(K)]
        a = jnp.concatenate(cols, axis=-1)                                 # (B, H*W, 9*C)
        y = jnp.einsum("bnk,kc->bnc", a.astype(operand_dtype), w.astype(operand_dtype),
                       precision=prec, preferred_element_type=jnp.float32) + b
        return jnp.maximum(y, 0.0).reshape(B, H, W, -1)

    h = conv(x_nhwc, params["c1"]["w"], params["c1"]["b"])
    return conv(h, params["c2"]["w"], params["c2"]["b"])


# --------------------------------------------------------------------------------------
if __name__ == "__main__":
    B, Cin, H, W = 2, 4, 16, 16
    Cout = 64

    params = double_conv_params(Cin, Cout, seed=0)
    x = jax.random.normal(jax.random.PRNGKey(0), (B, Cin, H, W), jnp.float32)

    fwd = jax.jit(double_conv_forward)
    out = jax.block_until_ready(fwd(x, params))
    assert out.shape == (B, Cout, H, W) and out.dtype == jnp.float32

    x_nhwc = jnp.transpose(x, (0, 2, 3, 1))
    ref_bf16 = jnp.transpose(double_conv_ref(x_nhwc, params, jnp.bfloat16), (0, 3, 1, 2))
    ref_f32 = jnp.transpose(double_conv_ref(x_nhwc, params, jnp.float32), (0, 3, 1, 2))

    out_np = np.asarray(jax.block_until_ready(out))
    # tight check: identical bf16-operand / f32-accumulate numerics as the kernel
    assert np.allclose(out_np, np.asarray(ref_bf16), rtol=5e-3, atol=5e-3)
    # loose check: full-f32 module semantics (difference = bf16 operand quantisation only)
    assert np.allclose(out_np, np.asarray(ref_f32), rtol=5e-2, atol=5e-2)

    print("KERNEL_OK")
</pallas_src>

<mosaic_0001>
module attributes {stable_mosaic.version = 11 : i64} {
  func.func @kernel(%arg0: i32, %arg1: memref<2x256x128xbf16, #tpu.memory_space<vmem>>, %arg2: memref<128x64xbf16, #tpu.memory_space<vmem>>, %arg3: memref<1x64xf32, #tpu.memory_space<vmem>>, %arg4: memref<9x64x128xbf16, #tpu.memory_space<vmem>>, %arg5: memref<1x128xf32, #tpu.memory_space<vmem>>, %arg6: memref<2x16x16x128xf32, #tpu.memory_space<vmem>>, %arg7: memref<2x18x18x64xf32, #tpu.memory_space<vmem>>) attributes {dimension_semantics = [#tpu.dimension_semantics<parallel>], iteration_bounds = array<i64: 1>, scalar_prefetch = 0 : i64, scratch_operands = 1 : i64, tpu.core_type = #tpu.core_type<tc>, window_params = [{transform_indices = @transform_0, window_bounds = array<i64: 2, 256, 128>}, {pipeline_mode = #tpu.pipeline_mode<synchronous>, transform_indices = @transform_1, window_bounds = array<i64: 128, 64>}, {pipeline_mode = #tpu.pipeline_mode<synchronous>, transform_indices = @transform_2, window_bounds = array<i64: 1, 64>}, {pipeline_mode = #tpu.pipeline_mode<synchronous>, transform_indices = @transform_3, window_bounds = array<i64: 9, 64, 128>}, {pipeline_mode = #tpu.pipeline_mode<synchronous>, transform_indices = @transform_4, window_bounds = array<i64: 1, 128>}, {transform_indices = @transform_5, window_bounds = array<i64: 2, 16, 16, 128>}]} {
    %c0 = arith.constant 0 : index
    %c0_0 = arith.constant 0 : index
    %c0_1 = arith.constant 0 : index
    %0 = vector.load %arg1[%c0, %c0_0, %c0_1] : memref<2x256x128xbf16, #tpu.memory_space<vmem>>, vector<2x256x128xbf16>
    %1 = vector.shape_cast %0 : vector<2x256x128xbf16> to vector<512x128xbf16>
    %c0_2 = arith.constant 0 : index
    %c0_3 = arith.constant 0 : index
    %2 = vector.load %arg2[%c0_2, %c0_3] : memref<128x64xbf16, #tpu.memory_space<vmem>>, vector<128x64xbf16>
    %cst = arith.constant dense<0.000000e+00> : vector<512x64xf32>
    %3 = tpu.matmul %1, %2, %cst {dimension_numbers = #tpu.dot_dimension_numbers<[1], [0], [0], [1], [0, 0, 1, 1], [], []>} : vector<512x128xbf16>, vector<128x64xbf16>, vector<512x64xf32> -> vector<512x64xf32>
    %c0_4 = arith.constant 0 : index
    %c0_5 = arith.constant 0 : index
    %4 = vector.load %arg3[%c0_4, %c0_5] : memref<1x64xf32, #tpu.memory_space<vmem>>, vector<1x64xf32>
    %5 = vector.broadcast %4 : vector<1x64xf32> to vector<512x64xf32>
    %6 = arith.addf %3, %5 : vector<512x64xf32>
    %cst_6 = arith.constant 0.000000e+00 : f32
    %7 = vector.broadcast %cst_6 : f32 to vector<512x64xf32>
    %8 = arith.maximumf %6, %7 : vector<512x64xf32>
    %cst_7 = arith.constant 0.000000e+00 : f32
    %9 = vector.broadcast %cst_7 : f32 to vector<2x1x18x64xf32>
    %cst_8 = arith.constant 0.000000e+00 : f32
    %10 = vector.broadcast %cst_8 : f32 to vector<2x18x1x64xf32>
    %c0_9 = arith.constant 0 : index
    %c0_10 = arith.constant 0 : index
    %c0_11 = arith.constant 0 : index
    %c0_12 = arith.constant 0 : index
    %11 = vector.load %arg7[%c0_9, %c0_10, %c0_11, %c0_12] : memref<2x18x18x64xf32, #tpu.memory_space<vmem>>, vector<2x1x18x64xf32>
    tpu.vector_store %arg7[%c0_9, %c0_10, %c0_11, %c0_12], %9 {strides = array<i32>} : memref<2x18x18x64xf32, #tpu.memory_space<vmem>>, vector<2x1x18x64xf32>,
    %c0_13 = arith.constant 0 : index
    %c17 = arith.constant 17 : index
    %c0_14 = arith.constant 0 : index
    %c0_15 = arith.constant 0 : index
    %12 = vector.load %arg7[%c0_13, %c17, %c0_14, %c0_15] : memref<2x18x18x64xf32, #tpu.memory_space<vmem>>, vector<2x1x18x64xf32>
    tpu.vector_store %arg7[%c0_13, %c17, %c0_14, %c0_15], %9 {strides = array<i32>} : memref<2x18x18x64xf32, #tpu.memory_space<vmem>>, vector<2x1x18x64xf32>,
    %c0_16 = arith.constant 0 : index
    %c0_17 = arith.constant 0 : index
    %c0_18 = arith.constant 0 : index
    %c0_19 = arith.constant 0 : index
    %13 = vector.load %arg7[%c0_16, %c0_17, %c0_18, %c0_19] : memref<2x18x18x64xf32, #tpu.memory_space<vmem>>, vector<2x18x1x64xf32>
    tpu.vector_store %arg7[%c0_16, %c0_17, %c0_18, %c0_19], %10 {strides = array<i32>} : memref<2x18x18x64xf32, #tpu.memory_space<vmem>>, vector<2x18x1x64xf32>,
    %c0_20 = arith.constant 0 : index
    %c0_21 = arith.constant 0 : index
    %c17_22 = arith.constant 17 : index
    %c0_23 = arith.constant 0 : index
    %14 = vector.load %arg7[%c0_20, %c0_21, %c17_22, %c0_23] : memref<2x18x18x64xf32, #tpu.memory_space<vmem>>, vector<2x18x1x64xf32>
    tpu.vector_store %arg7[%c0_20, %c0_21, %c17_22, %c0_23], %10 {strides = array<i32>} : memref<2x18x18x64xf32, #tpu.memory_space<vmem>>, vector<2x18x1x64xf32>,
    %15 = vector.shape_cast %8 : vector<512x64xf32> to vector<2x16x16x64xf32>
    %c0_24 = arith.constant 0 : index
    %c1 = arith.constant 1 : index
    %c1_25 = arith.constant 1 : index
    %c0_26 = arith.constant 0 : index
    %16 = vector.load %arg7[%c0_24, %c1, %c1_25, %c0_26] : memref<2x18x18x64xf32, #tpu.memory_space<vmem>>, vector<2x16x16x64xf32>
    tpu.vector_store %arg7[%c0_24, %c1, %c1_25, %c0_26], %15 {strides = array<i32>} : memref<2x18x18x64xf32, #tpu.memory_space<vmem>>, vector<2x16x16x64xf32>,
    %cst_27 = arith.constant 0.000000e+00 : f32
    %17 = vector.broadcast %cst_27 : f32 to vector<512x128xf32>
    %c0_28 = arith.constant 0 : index
    %c0_29 = arith.constant 0 : index
    %c0_30 = arith.constant 0 : index
    %c0_31 = arith.constant 0 : index
    %18 = vector.load %arg7[%c0_28, %c0_29, %c0_30, %c0_31] : memref<2x18x18x64xf32, #tpu.memory_space<vmem>>, vector<2x16x16x64xf32>
    %19 = vector.shape_cast %18 : vector<2x16x16x64xf32> to vector<512x64xf32>
    %20 = arith.truncf %19 : vector<512x64xf32> to vector<512x64xbf16>
    %c0_32 = arith.constant 0 : index
    %c0_33 = arith.constant 0 : index
    %c0_34 = arith.constant 0 : index
    %21 = vector.load %arg4[%c0_32, %c0_33, %c0_34] : memref<9x64x128xbf16, #tpu.memory_space<vmem>>, vector<1x64x128xbf16>
    %22 = vector.shape_cast %21 : vector<1x64x128xbf16> to vector<64x128xbf16>
    %cst_35 = arith.constant dense<0.000000e+00> : vector<512x128xf32>
    %23 = tpu.matmul %20, %22, %cst_35 {dimension_numbers = #tpu.dot_dimension_numbers<[1], [0], [0], [1], [0, 0, 1, 1], [], []>} : vector<512x64xbf16>, vector<64x128xbf16>, vector<512x128xf32> -> vector<512x128xf32>
    %24 = arith.addf %17, %23 : vector<512x128xf32>
    %c0_36 = arith.constant 0 : index
    %c0_37 = arith.constant 0 : index
    %c1_38 = arith.constant 1 : index
    %c0_39 = arith.constant 0 : index
    %25 = vector.load %arg7[%c0_36, %c0_37, %c1_38, %c0_39] : memref<2x18x18x64xf32, #tpu.memory_space<vmem>>, vector<2x16x16x64xf32>
    %26 = vector.shape_cast %25 : vector<2x16x16x64xf32> to vector<512x64xf32>
    %27 = arith.truncf %26 : vector<512x64xf32> to vector<512x64xbf16>
    %c1_40 = arith.constant 1 : index
    %c0_41 = arith.constant 0 : index
    %c0_42 = arith.constant 0 : index
    %28 = vector.load %arg4[%c1_40, %c0_41, %c0_42] : memref<9x64x128xbf16, #tpu.memory_space<vmem>>, vector<1x64x128xbf16>
    %29 = vector.shape_cast %28 : vector<1x64x128xbf16> to vector<64x128xbf16>
    %cst_43 = arith.constant dense<0.000000e+00> : vector<512x128xf32>
    %30 = tpu.matmul %27, %29, %cst_43 {dimension_numbers = #tpu.dot_dimension_numbers<[1], [0], [0], [1], [0, 0, 1, 1], [], []>} : vector<512x64xbf16>, vector<64x128xbf16>, vector<512x128xf32> -> vector<512x128xf32>
    %31 = arith.addf %24, %30 : vector<512x128xf32>
    %c0_44 = arith.constant 0 : index
    %c0_45 = arith.constant 0 : index
    %c2 = arith.constant 2 : index
    %c0_46 = arith.constant 0 : index
    %32 = vector.load %arg7[%c0_44, %c0_45, %c2, %c0_46] : memref<2x18x18x64xf32, #tpu.memory_space<vmem>>, vector<2x16x16x64xf32>
    %33 = vector.shape_cast %32 : vector<2x16x16x64xf32> to vector<512x64xf32>
    %34 = arith.truncf %33 : vector<512x64xf32> to vector<512x64xbf16>
    %c2_47 = arith.constant 2 : index
    %c0_48 = arith.constant 0 : index
    %c0_49 = arith.constant 0 : index
    %35 = vector.load %arg4[%c2_47, %c0_48, %c0_49] : memref<9x64x128xbf16, #tpu.memory_space<vmem>>, vector<1x64x128xbf16>
    %36 = vector.shape_cast %35 : vector<1x64x128xbf16> to vector<64x128xbf16>
    %cst_50 = arith.constant dense<0.000000e+00> : vector<512x128xf32>
    %37 = tpu.matmul %34, %36, %cst_50 {dimension_numbers = #tpu.dot_dimension_numbers<[1], [0], [0], [1], [0, 0, 1, 1], [], []>} : vector<512x64xbf16>, vector<64x128xbf16>, vector<512x128xf32> -> vector<512x128xf32>
    %38 = arith.addf %31, %37 : vector<512x128xf32>
    %c0_51 = arith.constant 0 : index
    %c1_52 = arith.constant 1 : index
    %c0_53 = arith.constant 0 : index
    %c0_54 = arith.constant 0 : index
    %39 = vector.load %arg7[%c0_51, %c1_52, %c0_53, %c0_54] : memref<2x18x18x64xf32, #tpu.memory_space<vmem>>, vector<2x16x16x64xf32>
    %40 = vector.shape_cast %39 : vector<2x16x16x64xf32> to vector<512x64xf32>
    %41 = arith.truncf %40 : vector<512x64xf32> to vector<512x64xbf16>
    %c3 = arith.constant 3 : index
    %c0_55 = arith.constant 0 : index
    %c0_56 = arith.constant 0 : index
    %42 = vector.load %arg4[%c3, %c0_55, %c0_56] : memref<9x64x128xbf16, #tpu.memory_space<vmem>>, vector<1x64x128xbf16>
    %43 = vector.shape_cast %42 : vector<1x64x128xbf16> to vector<64x128xbf16>
    %cst_57 = arith.constant dense<0.000000e+00> : vector<512x128xf32>
    %44 = tpu.matmul %41, %43, %cst_57 {dimension_numbers = #tpu.dot_dimension_numbers<[1], [0], [0], [1], [0, 0, 1, 1], [], []>} : vector<512x64xbf16>, vector<64x128xbf16>, vector<512x128xf32> -> vector<512x128xf32>
    %45 = arith.addf %38, %44 : vector<512x128xf32>
    %c0_58 = arith.constant 0 : index
    %c1_59 = arith.constant 1 : index
    %c1_60 = arith.constant 1 : index
    %c0_61 = arith.constant 0 : index
    %46 = vector.load %arg7[%c0_58, %c1_59, %c1_60, %c0_61] : memref<2x18x18x64xf32, #tpu.memory_space<vmem>>, vector<2x16x16x64xf32>
    %47 = vector.shape_cast %46 : vector<2x16x16x64xf32> to vector<512x64xf32>
    %48 = arith.truncf %47 : vector<512x64xf32> to vector<512x64xbf16>
    %c4 = arith.constant 4 : index
    %c0_62 = arith.constant 0 : index
    %c0_63 = arith.constant 0 : index
    %49 = vector.load %arg4[%c4, %c0_62, %c0_63] : memref<9x64x128xbf16, #tpu.memory_space<vmem>>, vector<1x64x128xbf16>
    %50 = vector.shape_cast %49 : vector<1x64x128xbf16> to vector<64x128xbf16>
    %cst_64 = arith.constant dense<0.000000e+00> : vector<512x128xf32>
    %51 = tpu.matmul %48, %50, %cst_64 {dimension_numbers = #tpu.dot_dimension_numbers<[1], [0], [0], [1], [0, 0, 1, 1], [], []>} : vector<512x64xbf16>, vector<64x128xbf16>, vector<512x128xf32> -> vector<512x128xf32>
    %52 = arith.addf %45, %51 : vector<512x128xf32>
    %c0_65 = arith.constant 0 : index
    %c1_66 = arith.constant 1 : index
    %c2_67 = arith.constant 2 : index
    %c0_68 = arith.constant 0 : index
    %53 = vector.load %arg7[%c0_65, %c1_66, %c2_67, %c0_68] : memref<2x18x18x64xf32, #tpu.memory_space<vmem>>, vector<2x16x16x64xf32>
    %54 = vector.shape_cast %53 : vector<2x16x16x64xf32> to vector<512x64xf32>
    %55 = arith.truncf %54 : vector<512x64xf32> to vector<512x64xbf16>
    %c5 = arith.constant 5 : index
    %c0_69 = arith.constant 0 : index
    %c0_70 = arith.constant 0 : index
    %56 = vector.load %arg4[%c5, %c0_69, %c0_70] : memref<9x64x128xbf16, #tpu.memory_space<vmem>>, vector<1x64x128xbf16>
    %57 = vector.shape_cast %56 : vector<1x64x128xbf16> to vector<64x128xbf16>
    %cst_71 = arith.constant dense<0.000000e+00> : vector<512x128xf32>
    %58 = tpu.matmul %55, %57, %cst_71 {dimension_numbers = #tpu.dot_dimension_numbers<[1], [0], [0], [1], [0, 0, 1, 1], [], []>} : vector<512x64xbf16>, vector<64x128xbf16>, vector<512x128xf32> -> vector<512x128xf32>
    %59 = arith.addf %52, %58 : vector<512x128xf32>
    %c0_72 = arith.constant 0 : index
    %c2_73 = arith.constant 2 : index
    %c0_74 = arith.constant 0 : index
    %c0_75 = arith.constant 0 : index
    %60 = vector.load %arg7[%c0_72, %c2_73, %c0_74, %c0_75] : memref<2x18x18x64xf32, #tpu.memory_space<vmem>>, vector<2x16x16x64xf32>
    %61 = vector.shape_cast %60 : vector<2x16x16x64xf32> to vector<512x64xf32>
    %62 = arith.truncf %61 : vector<512x64xf32> to vector<512x64xbf16>
    %c6 = arith.constant 6 : index
    %c0_76 = arith.constant 0 : index
    %c0_77 = arith.constant 0 : index
    %63 = vector.load %arg4[%c6, %c0_76, %c0_77] : memref<9x64x128xbf16, #tpu.memory_space<vmem>>, vector<1x64x128xbf16>
    %64 = vector.shape_cast %63 : vector<1x64x128xbf16> to vector<64x128xbf16>
    %cst_78 = arith.constant dense<0.000000e+00> : vector<512x128xf32>
    %65 = tpu.matmul %62, %64, %cst_78 {dimension_numbers = #tpu.dot_dimension_numbers<[1], [0], [0], [1], [0, 0, 1, 1], [], []>} : vector<512x64xbf16>, vector<64x128xbf16>, vector<512x128xf32> -> vector<512x128xf32>
    %66 = arith.addf %59, %65 : vector<512x128xf32>
    %c0_79 = arith.constant 0 : index
    %c2_80 = arith.constant 2 : index
    %c1_81 = arith.constant 1 : index
    %c0_82 = arith.constant 0 : index
    %67 = vector.load %arg7[%c0_79, %c2_80, %c1_81, %c0_82] : memref<2x18x18x64xf32, #tpu.memory_space<vmem>>, vector<2x16x16x64xf32>
    %68 = vector.shape_cast %67 : vector<2x16x16x64xf32> to vector<512x64xf32>
    %69 = arith.truncf %68 : vector<512x64xf32> to vector<512x64xbf16>
    %c7 = arith.constant 7 : index
    %c0_83 = arith.constant 0 : index
    %c0_84 = arith.constant 0 : index
    %70 = vector.load %arg4[%c7, %c0_83, %c0_84] : memref<9x64x128xbf16, #tpu.memory_space<vmem>>, vector<1x64x128xbf16>
    %71 = vector.shape_cast %70 : vector<1x64x128xbf16> to vector<64x128xbf16>
    %cst_85 = arith.constant dense<0.000000e+00> : vector<512x128xf32>
    %72 = tpu.matmul %69, %71, %cst_85 {dimension_numbers = #tpu.dot_dimension_numbers<[1], [0], [0], [1], [0, 0, 1, 1], [], []>} : vector<512x64xbf16>, vector<64x128xbf16>, vector<512x128xf32> -> vector<512x128xf32>
    %73 = arith.addf %66, %72 : vector<512x128xf32>
    %c0_86 = arith.constant 0 : index
    %c2_87 = arith.constant 2 : index
    %c2_88 = arith.constant 2 : index
    %c0_89 = arith.constant 0 : index
    %74 = vector.load %arg7[%c0_86, %c2_87, %c2_88, %c0_89] : memref<2x18x18x64xf32, #tpu.memory_space<vmem>>, vector<2x16x16x64xf32>
    %75 = vector.shape_cast %74 : vector<2x16x16x64xf32> to vector<512x64xf32>
    %76 = arith.truncf %75 : vector<512x64xf32> to vector<512x64xbf16>
    %c8 = arith.constant 8 : index
    %c0_90 = arith.constant 0 : index
    %c0_91 = arith.constant 0 : index
    %77 = vector.load %arg4[%c8, %c0_90, %c0_91] : memref<9x64x128xbf16, #tpu.memory_space<vmem>>, vector<1x64x128xbf16>
    %78 = vector.shape_cast %77 : vector<1x64x128xbf16> to vector<64x128xbf16>
    %cst_92 = arith.constant dense<0.000000e+00> : vector<512x128xf32>
    %79 = tpu.matmul %76, %78, %cst_92 {dimension_numbers = #tpu.dot_dimension_numbers<[1], [0], [0], [1], [0, 0, 1, 1], [], []>} : vector<512x64xbf16>, vector<64x128xbf16>, vector<512x128xf32> -> vector<512x128xf32>
    %80 = arith.addf %73, %79 : vector<512x128xf32>
    %c0_93 = arith.constant 0 : index
    %c0_94 = arith.constant 0 : index
    %81 = vector.load %arg5[%c0_93, %c0_94] : memref<1x128xf32, #tpu.memory_space<vmem>>, vector<1x128xf32>
    %82 = vector.broadcast %81 : vector<1x128xf32> to vector<512x128xf32>
    %83 = arith.addf %80, %82 : vector<512x128xf32>
    %cst_95 = arith.constant 0.000000e+00 : f32
    %84 = vector.broadcast %cst_95 : f32 to vector<512x128xf32>
    %85 = arith.maximumf %83, %84 : vector<512x128xf32>
    %86 = vector.shape_cast %85 : vector<512x128xf32> to vector<2x16x16x128xf32>
    %c0_96 = arith.constant 0 : index
    %c0_97 = arith.constant 0 : index
    %c0_98 = arith.constant 0 : index
    %c0_99 = arith.constant 0 : index
    %87 = vector.load %arg6[%c0_96, %c0_97, %c0_98, %c0_99] : memref<2x16x16x128xf32, #tpu.memory_space<vmem>>, vector<2x16x16x128xf32>
    tpu.vector_store %arg6[%c0_96, %c0_97, %c0_98, %c0_99], %86 {strides = array<i32>} : memref<2x16x16x128xf32, #tpu.memory_space<vmem>>, vector<2x16x16x128xf32>,
    return
  }
  func.func @transform_0(%arg0: i32) -> (i32, i32, i32) {
    %c0_i32 = arith.constant 0 : i32
    %c0_i32_0 = arith.constant 0 : i32
    %c0_i32_1 = arith.constant 0 : i32
    return %arg0, %c0_i32, %c0_i32_0 : i32, i32, i32
  }
  func.func @transform_1(%arg0: i32) -> (i32, i32) {
    %c0_i32 = arith.constant 0 : i32
    %c0_i32_0 = arith.constant 0 : i32
    %c0_i32_1 = arith.constant 0 : i32
    return %c0_i32, %c0_i32_0 : i32, i32
  }
  func.func @transform_2(%arg0: i32) -> (i32, i32) {
    %c0_i32 = arith.constant 0 : i32
    %c0_i32_0 = arith.constant 0 : i32
    %c0_i32_1 = arith.constant 0 : i32
    return %c0_i32, %c0_i32_0 : i32, i32
  }
  func.func @transform_3(%arg0: i32) -> (i32, i32, i32) {
    %c0_i32 = arith.constant 0 : i32
    %c0_i32_0 = arith.constant 0 : i32
    %c0_i32_1 = arith.constant 0 : i32
    %c0_i32_2 = arith.constant 0 : i32
    return %c0_i32, %c0_i32_0, %c0_i32_1 : i32, i32, i32
  }
  func.func @transform_4(%arg0: i32) -> (i32, i32) {
    %c0_i32 = arith.constant 0 : i32
    %c0_i32_0 = arith.constant 0 : i32
    %c0_i32_1 = arith.constant 0 : i32
    return %c0_i32, %c0_i32_0 : i32, i32
  }
  func.func @transform_5(%arg0: i32) -> (i32, i32, i32, i32) {
    %c0_i32 = arith.constant 0 : i32
    %c0_i32_0 = arith.constant 0 : i32
    %c0_i32_1 = arith.constant 0 : i32
    %c0_i32_2 = arith.constant 0 : i32
    return %arg0, %c0_i32, %c0_i32_0, %c0_i32_1 : i32, i32, i32, i32
  }
}

</mosaic_0001>

<llo_original>
// kernel: double_conv_forward.1
$region0: #{double_conv_forward.1}
  #allocation0 [shape = 'u32[]', space=smem, size = 0x4, offset = 0x4, fixed_abs, tag = 'smem constant byte address 0x4 - core index']
  #allocation1 [shape = 'u32[144,128]{1,0:T(1,128)}', space=vmem, size = 0x12000, scoped, tag = 'internal scratch']
  #allocation2 [shape = 'f32[2,18,18,64]{3,2,1,0:T(8,128)}', space=vmem, size = 0x6c000, scoped, tag = 'scratch operand']
  %s0 = inlined_call_operand.vmem [shape: bf16[2,256,128], index: 0, kind: input, shape index: {}]
  %s1 = inlined_call_operand.vmem [shape: bf16[128,64], index: 1, kind: input, shape index: {}]
  %s2 = inlined_call_operand.vmem [shape: f32[1,64], index: 2, kind: input, shape index: {}]
  %s3 = inlined_call_operand.vmem [shape: bf16[9,64,128], index: 3, kind: input, shape index: {}]
  %s4 = inlined_call_operand.vmem [shape: f32[1,128], index: 4, kind: input, shape index: {}]
  %s5 = inlined_call_operand.vmem [shape: f32[2,16,16,128], index: 5, kind: output, shape index: {}]
  %s6 = sld [smem:[#allocation0]]
  $region30: #{double_conv_forward.1} parent=0
    _
  %s8 = ssub.s32 1, %s6
  %s9 = scalar_select 0, %s8, %s6
  // Predicated region
  $region2: #{double_conv_forward.1} parent=0 // pred_check
    _
  $region3: #{double_conv_forward.1} parent=0 // pred_check_branch
    %11 = sbr.rel (0) target = $region5
  $region4: #{double_conv_forward.1} parent=0 // pred_region
    _
  $region5: #{double_conv_forward.1} parent=0 // pred_fallthru
    _
  // Predicated region
  $region6: #{double_conv_forward.1} parent=0 // pred_check
    _
  $region7: #{double_conv_forward.1} parent=0 // pred_check_branch
    %13 = sbr.rel (0) target = $region9
  $region8: #{double_conv_forward.1} parent=0 // pred_region
    _
  $region9: #{double_conv_forward.1} parent=0 // pred_fallthru
    _
  // Predicated region
  $region10: #{double_conv_forward.1} parent=0 // pred_check
    _
  $region11: #{double_conv_forward.1} parent=0 // pred_check_branch
    %15 = sbr.rel (0) target = $region13
  $region12: #{double_conv_forward.1} parent=0 // pred_region
    _
  $region13: #{double_conv_forward.1} parent=0 // pred_fallthru
    _
  // Predicated region
  $region14: #{double_conv_forward.1} parent=0 // pred_check
    _
  $region15: #{double_conv_forward.1} parent=0 // pred_check_branch
    %17 = sbr.rel (0) target = $region17
  $region16: #{double_conv_forward.1} parent=0 // pred_region
    _
  $region17: #{double_conv_forward.1} parent=0 // pred_fallthru
    _
  // Predicated region
  $region18: #{double_conv_forward.1} parent=0 // pred_check
    _
  $region19: #{double_conv_forward.1} parent=0 // pred_check_branch
    %19 = sbr.rel (0) target = $region21
  $region20: #{double_conv_forward.1} parent=0 // pred_region
    _
  $region21: #{double_conv_forward.1} parent=0 // pred_fallthru
    _
  %v21 = vld [vmem:[%s0] sm:$0xf]
  %v22 = vld [vmem:[%s0 + $0x4] sm:$0xf]
  %v23 = vld [vmem:[%s0 + $0x8] sm:$0xf]
  %v24 = vld [vmem:[%s0 + $0xc] sm:$0xf]
  %v25 = vld [vmem:[%s0 + $0x10] sm:$0xf]
  %v26 = vld [vmem:[%s0 + $0x14] sm:$0xf]
  %v27 = vld [vmem:[%s0 + $0x18] sm:$0xf]
  %v28 = vld [vmem:[%s0 + $0x1c] sm:$0xf]
  %v29 = vld [vmem:[%s0 + $0x20] sm:$0xf]
  %v30 = vld [vmem:[%s0 + $0x24] sm:$0xf]
  %v31 = vld [vmem:[%s0 + $0x28] sm:$0xf]
  %v32 = vld [vmem:[%s0 + $0x2c] sm:$0xf]
  %v33 = vld [vmem:[%s0 + $0x30] sm:$0xf]
  %v34 = vld [vmem:[%s0 + $0x34] sm:$0xf]
  %v35 = vld [vmem:[%s0 + $0x38] sm:$0xf]
  %v36 = vld [vmem:[%s0 + $0x3c] sm:$0xf]
  %v37 = vld [vmem:[%s0 + $0x40] sm:$0xf]
  %v38 = vld [vmem:[%s0 + $0x44] sm:$0xf]
  %v39 = vld [vmem:[%s0 + $0x48] sm:$0xf]
  %v40 = vld [vmem:[%s0 + $0x4c] sm:$0xf]
  %v41 = vld [vmem:[%s0 + $0x50] sm:$0xf]
  %v42 = vld [vmem:[%s0 + $0x54] sm:$0xf]
  %v43 = vld [vmem:[%s0 + $0x58] sm:$0xf]
  %v44 = vld [vmem:[%s0 + $0x5c] sm:$0xf]
  %v45 = vld [vmem:[%s0 + $0x60] sm:$0xf]
  %v46 = vld [vmem:[%s0 + $0x64] sm:$0xf]
  %v47 = vld [vmem:[%s0 + $0x68] sm:$0xf]
  %v48 = vld [vmem:[%s0 + $0x6c] sm:$0xf]
  %v49 = vld [vmem:[%s0 + $0x70] sm:$0xf]
  %v50 = vld [vmem:[%s0 + $0x74] sm:$0xf]
  %v51 = vld [vmem:[%s0 + $0x78] sm:$0xf]
  %v52 = vld [vmem:[%s0 + $0x7c] sm:$0xf]
  %v53 = vld [vmem:[%s0 + $0x80] sm:$0xf]
  %v54 = vld [vmem:[%s0 + $0x84] sm:$0xf]
  %v55 = vld [vmem:[%s0 + $0x88] sm:$0xf]
  %v56 = vld [vmem:[%s0 + $0x8c] sm:$0xf]
  %v57 = vld [vmem:[%s0 + $0x90] sm:$0xf]
  %v58 = vld [vmem:[%s0 + $0x94] sm:$0xf]
  %v59 = vld [vmem:[%s0 + $0x98] sm:$0xf]
  %v60 = vld [vmem:[%s0 + $0x9c] sm:$0xf]
  %v61 = vld [vmem:[%s0 + $0xa0] sm:$0xf]
  %v62 = vld [vmem:[%s0 + $0xa4] sm:$0xf]
  %v63 = vld [vmem:[%s0 + $0xa8] sm:$0xf]
  %v64 = vld [vmem:[%s0 + $0xac] sm:$0xf]
  %v65 = vld [vmem:[%s0 + $0xb0] sm:$0xf]
  %v66 = vld [vmem:[%s0 + $0xb4] sm:$0xf]
  %v67 = vld [vmem:[%s0 + $0xb8] sm:$0xf]
  %v68 = vld [vmem:[%s0 + $0xbc] sm:$0xf]
  %v69 = vld [vmem:[%s0 + $0xc0] sm:$0xf]
  %v70 = vld [vmem:[%s0 + $0xc4] sm:$0xf]
  %v71 = vld [vmem:[%s0 + $0xc8] sm:$0xf]
  %v72 = vld [vmem:[%s0 + $0xcc] sm:$0xf]
  %v73 = vld [vmem:[%s0 + $0xd0] sm:$0xf]
  %v74 = vld [vmem:[%s0 + $0xd4] sm:$0xf]
  %v75 = vld [vmem:[%s0 + $0xd8] sm:$0xf]
  %v76 = vld [vmem:[%s0 + $0xdc] sm:$0xf]
  %v77 = vld [vmem:[%s0 + $0xe0] sm:$0xf]
  %v78 = vld [vmem:[%s0 + $0xe4] sm:$0xf]
  %v79 = vld [vmem:[%s0 + $0xe8] sm:$0xf]
  %v80 = vld [vmem:[%s0 + $0xec] sm:$0xf]
  %v81 = vld [vmem:[%s0 + $0xf0] sm:$0xf]
  %v82 = vld [vmem:[%s0 + $0xf4] sm:$0xf]
  %v83 = vld [vmem:[%s0 + $0xf8] sm:$0xf]
  %v84 = vld [vmem:[%s0 + $0xfc] sm:$0xf]
  %v85 = vld [vmem:[%s1] sm:$0xf]
  %v86 = vld [vmem:[%s1 + $0x4] sm:$0xf]
  %v87 = vld [vmem:[%s1 + $0x8] sm:$0xf]
  %v88 = vld [vmem:[%s1 + $0xc] sm:$0xf]
  %v89 = vld [vmem:[%s1 + $0x10] sm:$0xf]
  %v90 = vld [vmem:[%s1 + $0x14] sm:$0xf]
  %v91 = vld [vmem:[%s1 + $0x18] sm:$0xf]
  %v92 = vld [vmem:[%s1 + $0x1c] sm:$0xf]
  %v93 = vld [vmem:[%s1 + $0x20] sm:$0xf]
  %v94 = vld [vmem:[%s1 + $0x24] sm:$0xf]
  %v95 = vld [vmem:[%s1 + $0x28] sm:$0xf]
  %v96 = vld [vmem:[%s1 + $0x2c] sm:$0xf]
  %v97 = vld [vmem:[%s1 + $0x30] sm:$0xf]
  %v98 = vld [vmem:[%s1 + $0x34] sm:$0xf]
  %v99 = vld [vmem:[%s1 + $0x38] sm:$0xf]
  %v100 = vld [vmem:[%s1 + $0x3c] sm:$0xf]
  %v101 = vld [vmem:[%s2] sm:$0x1]
  %v103 = vlaneseq
  %v104 = vshrl.u32 %v103, 7
  %v105 = vsub.s32 0, %v104
  %v106 = vrot.slane %v101, %v105
  %v172 = vunpack.c.l.b16 %v21
  %v173 = vunpack.c.l.b16 %v22
  %v174 = vunpack.c.l.b16 %v23
  %v175 = vunpack.c.l.b16 %v24
  %v176 = vunpack.c.l.b16 %v25
  %v177 = vunpack.c.l.b16 %v26
  %v178 = vunpack.c.l.b16 %v27
  %v179 = vunpack.c.l.b16 %v28
  %v180 = vunpack.c.l.b16 %v29
  %v181 = vunpack.c.l.b16 %v30
  %v182 = vunpack.c.l.b16 %v31
  %v183 = vunpack.c.l.b16 %v32
  %v184 = vunpack.c.l.b16 %v33
  %v185 = vunpack.c.l.b16 %v34
  %v186 = vunpack.c.l.b16 %v35
  %v187 = vunpack.c.l.b16 %v36
  %v188 = vunpack.c.l.b16 %v37
  %v189 = vunpack.c.l.b16 %v38
  %v190 = vunpack.c.l.b16 %v39
  %v191 = vunpack.c.l.b16 %v40
  %v192 = vunpack.c.l.b16 %v41
  %v193 = vunpack.c.l.b16 %v42
  %v194 = vunpack.c.l.b16 %v43
  %v195 = vunpack.c.l.b16 %v44
  %v196 = vunpack.c.l.b16 %v45
  %v197 = vunpack.c.l.b16 %v46
  %v198 = vunpack.c.l.b16 %v47
  %v199 = vunpack.c.l.b16 %v48
  %v200 = vunpack.c.l.b16 %v49
  %v201 = vunpack.c.l.b16 %v50
  %v202 = vunpack.c.l.b16 %v51
  %v203 = vunpack.c.l.b16 %v52
  %v204 = vunpack.c.l.b16 %v53
  %v205 = vunpack.c.l.b16 %v54
  %v206 = vunpack.c.l.b16 %v55
  %v207 = vunpack.c.l.b16 %v56
  %v208 = vunpack.c.l.b16 %v57
  %v209 = vunpack.c.l.b16 %v58
  %v210 = vunpack.c.l.b16 %v59
  %v211 = vunpack.c.l.b16 %v60
  %v212 = vunpack.c.l.b16 %v61
  %v213 = vunpack.c.l.b16 %v62
  %v214 = vunpack.c.l.b16 %v63
  %v215 = vunpack.c.l.b16 %v64
  %v216 = vunpack.c.l.b16 %v65
  %v217 = vunpack.c.l.b16 %v66
  %v218 = vunpack.c.l.b16 %v67
  %v219 = vunpack.c.l.b16 %v68
  %v220 = vunpack.c.l.b16 %v69
  %v221 = vunpack.c.l.b16 %v70
  %v222 = vunpack.c.l.b16 %v71
  %v223 = vunpack.c.l.b16 %v72
  %v224 = vunpack.c.l.b16 %v73
  %v225 = vunpack.c.l.b16 %v74
  %v226 = vunpack.c.l.b16 %v75
  %v227 = vunpack.c.l.b16 %v76
  %v228 = vunpack.c.l.b16 %v77
  %v229 = vunpack.c.l.b16 %v78
  %v230 = vunpack.c.l.b16 %v79
  %v231 = vunpack.c.l.b16 %v80
  %v232 = vunpack.c.l.b16 %v81
  %v233 = vunpack.c.l.b16 %v82
  %v234 = vunpack.c.l.b16 %v83
  %v235 = vunpack.c.l.b16 %v84
  %v236 = vpack.c.b16 %v173, %v172
  %v237 = vpack.c.b16 %v175, %v174
  %v238 = vpack.c.b16 %v177, %v176
  %v239 = vpack.c.b16 %v179, %v178
  %v240 = vpack.c.b16 %v181, %v180
  %v241 = vpack.c.b16 %v183, %v182
  %v242 = vpack.c.b16 %v185, %v184
  %v243 = vpack.c.b16 %v187, %v186
  %v244 = vpack.c.b16 %v189, %v188
  %v245 = vpack.c.b16 %v191, %v190
  %v246 = vpack.c.b16 %v193, %v192
  %v247 = vpack.c.b16 %v195, %v194
  %v248 = vpack.c.b16 %v197, %v196
  %v249 = vpack.c.b16 %v199, %v198
  %v250 = vpack.c.b16 %v201, %v200
  %v251 = vpack.c.b16 %v203, %v202
  %v252 = vpack.c.b16 %v205, %v204
  %v253 = vpack.c.b16 %v207, %v206
  %v254 = vpack.c.b16 %v209, %v208
  %v255 = vpack.c.b16 %v211, %v210
  %v256 = vpack.c.b16 %v213, %v212
  %v257 = vpack.c.b16 %v215, %v214
  %v258 = vpack.c.b16 %v217, %v216
  %v259 = vpack.c.b16 %v219, %v218
  %v260 = vpack.c.b16 %v221, %v220
  %v261 = vpack.c.b16 %v223, %v222
  %v262 = vpack.c.b16 %v225, %v224
  %v263 = vpack.c.b16 %v227, %v226
  %v264 = vpack.c.b16 %v229, %v228
  %v265 = vpack.c.b16 %v231, %v230
  %v266 = vpack.c.b16 %v233, %v232
  %v267 = vpack.c.b16 %v235, %v234
  %v316 = vunpack.c.l.b16 %v85
  %v317 = vunpack.c.l.b16 %v86
  %v318 = vunpack.c.l.b16 %v87
  %v319 = vunpack.c.l.b16 %v88
  %v320 = vunpack.c.l.b16 %v89
  %v321 = vunpack.c.l.b16 %v90
  %v322 = vunpack.c.l.b16 %v91
  %v323 = vunpack.c.l.b16 %v92
  %v324 = vunpack.c.l.b16 %v93
  %v325 = vunpack.c.l.b16 %v94
  %v326 = vunpack.c.l.b16 %v95
  %v327 = vunpack.c.l.b16 %v96
  %v328 = vunpack.c.l.b16 %v97
  %v329 = vunpack.c.l.b16 %v98
  %v330 = vunpack.c.l.b16 %v99
  %v331 = vunpack.c.l.b16 %v100
  %v332 = vpack.c.b16 %v317, %v316
  %v333 = vpack.c.b16 %v319, %v318
  %v334 = vpack.c.b16 %v321, %v320
  %v335 = vpack.c.b16 %v323, %v322
  %v336 = vpack.c.b16 %v325, %v324
  %v337 = vpack.c.b16 %v327, %v326
  %v338 = vpack.c.b16 %v329, %v328
  %v339 = vpack.c.b16 %v331, %v330
  %348 = vmatprep.subr.bf16.mxu0 0
  %349 = vmatpush1.bf16.msra.mxu0 %v332
  %350 = vmatprep.subr.bf16.mxu0 0
  %351 = vmatpush1.bf16.msra.mxu0 %v333
  %352 = vmatprep.subr.bf16.mxu0 0
  %353 = vmatpush1.bf16.msra.mxu0 %v334
  %354 = vmatprep.subr.bf16.mxu0 0
  %355 = vmatpush1.bf16.msra.mxu0 %v335
  %356 = vmatprep.subr.bf16.mxu0 0
  %357 = vmatpush1.bf16.msra.mxu0 %v336
  %358 = vmatprep.subr.bf16.mxu0 0
  %359 = vmatpush1.bf16.msra.mxu0 %v337
  %360 = vmatprep.subr.bf16.mxu0 0
  %361 = vmatpush1.bf16.msra.mxu0 %v338
  %362 = vmatprep.subr.bf16.mxu0 0
  %363 = vmatpush1.bf16.msra.mxu0 %v339
  %364 = vmatprep.subr.bf16.mxu0 0
  %365 = vmatpush1.bf16.msra.mxu0 0
  %366 = vmatprep.subr.bf16.mxu0 0
  %367 = vmatpush1.bf16.msra.mxu0 0
  %368 = vmatprep.subr.bf16.mxu0 0
  %369 = vmatpush1.bf16.msra.mxu0 0
  %370 = vmatprep.subr.bf16.mxu0 0
  %371 = vmatpush1.bf16.msra.mxu0 0
  %372 = vmatprep.subr.bf16.mxu0 0
  %373 = vmatpush1.bf16.msra.mxu0 0
  %374 = vmatprep.subr.bf16.mxu0 0
  %375 = vmatpush1.bf16.msra.mxu0 0
  %376 = vmatprep.subr.bf16.mxu0 0
  %377 = vmatpush1.bf16.msra.mxu0 0
  %378 = vmatprep.subr.bf16.mxu0 0
  %379 = vmatpush1.bf16.msra.mxu0 0
  %380 = vmatprep.mubr.bf16.mxu0 0
  %381 = vmatmul.mubr.bf16.gmra.mrb[0].mxu0 %v236
  %v382 = vpop.f32.mrb[0].mxu0
  %v383 = vadd.f32 %v106, %v382
  %v384 = vpop.f32.mrb[0].mxu0
  %v385 = vpop.f32.mrb[0].mxu0
  %v386 = vadd.f32 %v106, %v385
  %v387 = vpop.f32.mrb[0].mxu0
  %388 = vmatprep.mubr.bf16.mxu0 0
  %389 = vmatmul.mubr.bf16.gmra.mrb[0].mxu0 %v237
  %v390 = vpop.f32.mrb[0].mxu0
  %v391 = vadd.f32 %v106, %v390
  %v392 = vpop.f32.mrb[0].mxu0
  %v393 = vpop.f32.mrb[0].mxu0
  %v394 = vadd.f32 %v106, %v393
  %v395 = vpop.f32.mrb[0].mxu0
  %396 = vmatprep.mubr.bf16.mxu0 0
  %397 = vmatmul.mubr.bf16.gmra.mrb[0].mxu0 %v238
  %v398 = vpop.f32.mrb[0].mxu0
  %v399 = vadd.f32 %v106, %v398
  %v400 = vpop.f32.mrb[0].mxu0
  %v401 = vpop.f32.mrb[0].mxu0
  %v402 = vadd.f32 %v106, %v401
  %v403 = vpop.f32.mrb[0].mxu0
  %404 = vmatprep.mubr.bf16.mxu0 0
  %405 = vmatmul.mubr.bf16.gmra.mrb[0].mxu0 %v239
  %v406 = vpop.f32.mrb[0].mxu0
  %v407 = vadd.f32 %v106, %v406
  %v408 = vpop.f32.mrb[0].mxu0
  %v409 = vpop.f32.mrb[0].mxu0
  %v410 = vadd.f32 %v106, %v409
  %v411 = vpop.f32.mrb[0].mxu0
  %412 = vmatprep.mubr.bf16.mxu0 0
  %413 = vmatmul.mubr.bf16.gmra.mrb[0].mxu0 %v240
  %v414 = vpop.f32.mrb[0].mxu0
  %v415 = vadd.f32 %v106, %v414
  %v416 = vpop.f32.mrb[0].mxu0
  %v417 = vpop.f32.mrb[0].mxu0
  %v418 = vadd.f32 %v106, %v417
  %v419 = vpop.f32.mrb[0].mxu0
  %420 = vmatprep.mubr.bf16.mxu0 0
  %421 = vmatmul.mubr.bf16.gmra.mrb[0].mxu0 %v241
  %v422 = vpop.f32.mrb[0].mxu0
  %v423 = vadd.f32 %v106, %v422
  %v424 = vpop.f32.mrb[0].mxu0
  %v425 = vpop.f32.mrb[0].mxu0
  %v426 = vadd.f32 %v106, %v425
  %v427 = vpop.f32.mrb[0].mxu0
  %428 = vmatprep.mubr.bf16.mxu0 0
  %429 = vmatmul.mubr.bf16.gmra.mrb[0].mxu0 %v242
  %v430 = vpop.f32.mrb[0].mxu0
  %v431 = vadd.f32 %v106, %v430
  %v432 = vpop.f32.mrb[0].mxu0
  %v433 = vpop.f32.mrb[0].mxu0
  %v434 = vadd.f32 %v106, %v433
  %v435 = vpop.f32.mrb[0].mxu0
  %436 = vmatprep.mubr.bf16.mxu0 0
  %437 = vmatmul.mubr.bf16.gmra.mrb[0].mxu0 %v243
  %v438 = vpop.f32.mrb[0].mxu0
  %v439 = vadd.f32 %v106, %v438
  %v440 = vpop.f32.mrb[0].mxu0
  %v441 = vpop.f32.mrb[0].mxu0
  %v442 = vadd.f32 %v106, %v441
  %v443 = vpop.f32.mrb[0].mxu0
  %444 = vmatprep.mubr.bf16.mxu0 0
  %445 = vmatmul.mubr.bf16.gmra.mrb[0].mxu0 %v244
  %v446 = vpop.f32.mrb[0].mxu0
  %v447 = vadd.f32 %v106, %v446
  %v448 = vpop.f32.mrb[0].mxu0
  %v449 = vpop.f32.mrb[0].mxu0
  %v450 = vadd.f32 %v106, %v449
  %v451 = vpop.f32.mrb[0].mxu0
  %452 = vmatprep.mubr.bf16.mxu0 0
  %453 = vmatmul.mubr.bf16.gmra.mrb[0].mxu0 %v245
  %v454 = vpop.f32.mrb[0].mxu0
  %v455 = vadd.f32 %v106, %v454
  %v456 = vpop.f32.mrb[0].mxu0
  %v457 = vpop.f32.mrb[0].mxu0
  %v458 = vadd.f32 %v106, %v457
  %v459 = vpop.f32.mrb[0].mxu0
  %460 = vmatprep.mubr.bf16.mxu0 0
  %461 = vmatmul.mubr.bf16.gmra.mrb[0].mxu0 %v246
  %v462 = vpop.f32.mrb[0].mxu0
  %v463 = vadd.f32 %v106, %v462
  %v464 = vpop.f32.mrb[0].mxu0
  %v465 = vpop.f32.mrb[0].mxu0
  %v466 = vadd.f32 %v106, %v465
  %v467 = vpop.f32.mrb[0].mxu0
  %468 = vmatprep.mubr.bf16.mxu0 0
  %469 = vmatmul.mubr.bf16.gmra.mrb[0].mxu0 %v247
  %v470 = vpop.f32.mrb[0].mxu0
  %v471 = vadd.f32 %v106, %v470
  %v472 = vpop.f32.mrb[0].mxu0
  %v473 = vpop.f32.mrb[0].mxu0
  %v474 = vadd.f32 %v106, %v473
  %v475 = vpop.f32.mrb[0].mxu0
  %476 = vmatprep.mubr.bf16.mxu0 0
  %477 = vmatmul.mubr.bf16.gmra.mrb[0].mxu0 %v248
  %v478 = vpop.f32.mrb[0].mxu0
  %v479 = vadd.f32 %v106, %v478
  %v480 = vpop.f32.mrb[0].mxu0
  %v481 = vpop.f32.mrb[0].mxu0
  %v482 = vadd.f32 %v106, %v481
  %v483 = vpop.f32.mrb[0].mxu0
  %484 = vmatprep.mubr.bf16.mxu0 0
  %485 = vmatmul.mubr.bf16.gmra.mrb[0].mxu0 %v249
  %v486 = vpop.f32.mrb[0].mxu0
  %v487 = vadd.f32 %v106, %v486
  %v488 = vpop.f32.mrb[0].mxu0
  %v489 = vpop.f32.mrb[0].mxu0
  %v490 = vadd.f32 %v106, %v489
  %v491 = vpop.f32.mrb[0].mxu0
  %492 = vmatprep.mubr.bf16.mxu0 0
  %493 = vmatmul.mubr.bf16.gmra.mrb[0].mxu0 %v250
  %v494 = vpop.f32.mrb[0].mxu0
  %v495 = vadd.f32 %v106, %v494
  %v496 = vpop.f32.mrb[0].mxu0
  %v497 = vpop.f32.mrb[0].mxu0
  %v498 = vadd.f32 %v106, %v497
  %v499 = vpop.f32.mrb[0].mxu0
  %500 = vmatprep.mubr.bf16.mxu0 0
  %501 = vmatmul.mubr.bf16.gmra.mrb[0].mxu0 %v251
  %v502 = vpop.f32.mrb[0].mxu0
  %v503 = vadd.f32 %v106, %v502
  %v504 = vpop.f32.mrb[0].mxu0
  %v505 = vpop.f32.mrb[0].mxu0
  %v506 = vadd.f32 %v106, %v505
  %v507 = vpop.f32.mrb[0].mxu0
  %508 = vmatprep.mubr.bf16.mxu0 0
  %509 = vmatmul.mubr.bf16.gmra.mrb[0].mxu0 %v252
  %v510 = vpop.f32.mrb[0].mxu0
  %v511 = vadd.f32 %v106, %v510
  %v512 = vpop.f32.mrb[0].mxu0
  %v513 = vpop.f32.mrb[0].mxu0
  %v514 = vadd.f32 %v106, %v513
  %v515 = vpop.f32.mrb[0].mxu0
  %516 = vmatprep.mubr.bf16.mxu0 0
  %517 = vmatmul.mubr.bf16.gmra.mrb[0].mxu0 %v253
  %v518 = vpop.f32.mrb[0].mxu0
  %v519 = vadd.f32 %v106, %v518
  %v520 = vpop.f32.mrb[0].mxu0
  %v521 = vpop.f32.mrb[0].mxu0
  %v522 = vadd.f32 %v106, %v521
  %v523 = vpop.f32.mrb[0].mxu0
  %524 = vmatprep.mubr.bf16.mxu0 0
  %525 = vmatmul.mubr.bf16.gmra.mrb[0].mxu0 %v254
  %v526 = vpop.f32.mrb[0].mxu0
  %v527 = vadd.f32 %v106, %v526
  %v528 = vpop.f32.mrb[0].mxu0
  %v529 = vpop.f32.mrb[0].mxu0
  %v530 = vadd.f32 %v106, %v529
  %v531 = vpop.f32.mrb[0].mxu0
  %532 = vmatprep.mubr.bf16.mxu0 0
  %533 = vmatmul.mubr.bf16.gmra.mrb[0].mxu0 %v255
  %v534 = vpop.f32.mrb[0].mxu0
  %v535 = vadd.f32 %v106, %v534
  %v536 = vpop.f32.mrb[0].mxu0
  %v537 = vpop.f32.mrb[0].mxu0
  %v538 = vadd.f32 %v106, %v537
  %v539 = vpop.f32.mrb[0].mxu0
  %540 = vmatprep.mubr.bf16.mxu0 0
  %541 = vmatmul.mubr.bf16.gmra.mrb[0].mxu0 %v256
  %v542 = vpop.f32.mrb[0].mxu0
  %v543 = vadd.f32 %v106, %v542
  %v544 = vpop.f32.mrb[0].mxu0
  %v545 = vpop.f32.mrb[0].mxu0
  %v546 = vadd.f32 %v106, %v545
  %v547 = vpop.f32.mrb[0].mxu0
  %548 = vmatprep.mubr.bf16.mxu0 0
  %549 = vmatmul.mubr.bf16.gmra.mrb[0].mxu0 %v257
  %v550 = vpop.f32.mrb[0].mxu0
  %v551 = vadd.f32 %v106, %v550
  %v552 = vpop.f32.mrb[0].mxu0
  %v553 = vpop.f32.mrb[0].mxu0
  %v554 = vadd.f32 %v106, %v553
  %v555 = vpop.f32.mrb[0].mxu0
  %556 = vmatprep.mubr.bf16.mxu0 0
  %557 = vmatmul.mubr.bf16.gmra.mrb[0].mxu0 %v258
  %v558 = vpop.f32.mrb[0].mxu0
  %v559 = vadd.f32 %v106, %v558
  %v560 = vpop.f32.mrb[0].mxu0
  %v561 = vpop.f32.mrb[0].mxu0
  %v562 = vadd.f32 %v106, %v561
  %v563 = vpop.f32.mrb[0].mxu0
  %564 = vmatprep.mubr.bf16.mxu0 0
  %565 = vmatmul.mubr.bf16.gmra.mrb[0].mxu0 %v259
  %v566 = vpop.f32.mrb[0].mxu0
  %v567 = vadd.f32 %v106, %v566
  %v568 = vpop.f32.mrb[0].mxu0
  %v569 = vpop.f32.mrb[0].mxu0
  %v570 = vadd.f32 %v106, %v569
  %v571 = vpop.f32.mrb[0].mxu0
  %572 = vmatprep.mubr.bf16.mxu0 0
  %573 = vmatmul.mubr.bf16.gmra.mrb[0].mxu0 %v260
  %v574 = vpop.f32.mrb[0].mxu0
  %v575 = vadd.f32 %v106, %v574
  %v576 = vpop.f32.mrb[0].mxu0
  %v577 = vpop.f32.mrb[0].mxu0
  %v578 = vadd.f32 %v106, %v577
  %v579 = vpop.f32.mrb[0].mxu0
  %580 = vmatprep.mubr.bf16.mxu0 0
  %581 = vmatmul.mubr.bf16.gmra.mrb[0].mxu0 %v261
  %v582 = vpop.f32.mrb[0].mxu0
  %v583 = vadd.f32 %v106, %v582
  %v584 = vpop.f32.mrb[0].mxu0
  %v585 = vpop.f32.mrb[0].mxu0
  %v586 = vadd.f32 %v106, %v585
  %v587 = vpop.f32.mrb[0].mxu0
  %588 = vmatprep.mubr.bf16.mxu0 0
  %589 = vmatmul.mubr.bf16.gmra.mrb[0].mxu0 %v262
  %v590 = vpop.f32.mrb[0].mxu0
  %v591 = vadd.f32 %v106, %v590
  %v592 = vpop.f32.mrb[0].mxu0
  %v593 = vpop.f32.mrb[0].mxu0
  %v594 = vadd.f32 %v106, %v593
  %v595 = vpop.f32.mrb[0].mxu0
  %596 = vmatprep.mubr.bf16.mxu0 0
  %597 = vmatmul.mubr.bf16.gmra.mrb[0].mxu0 %v263
  %v598 = vpop.f32.mrb[0].mxu0
  %v599 = vadd.f32 %v106, %v598
  %v600 = vpop.f32.mrb[0].mxu0
  %v601 = vpop.f32.mrb[0].mxu0
  %v602 = vadd.f32 %v106, %v601
  %v603 = vpop.f32.mrb[0].mxu0
  %604 = vmatprep.mubr.bf16.mxu0 0
  %605 = vmatmul.mubr.bf16.gmra.mrb[0].mxu0 %v264
  %v606 = vpop.f32.mrb[0].mxu0
  %v607 = vadd.f32 %v106, %v606
  %v608 = vpop.f32.mrb[0].mxu0
  %v609 = vpop.f32.mrb[0].mxu0
  %v610 = vadd.f32 %v106, %v609
  %v611 = vpop.f32.mrb[0].mxu0
  %612 = vmatprep.mubr.bf16.mxu0 0
  %613 = vmatmul.mubr.bf16.gmra.mrb[0].mxu0 %v265
  %v614 = vpop.f32.mrb[0].mxu0
  %v615 = vadd.f32 %v106, %v614
  %v616 = vpop.f32.mrb[0].mxu0
  %v617 = vpop.f32.mrb[0].mxu0
  %v618 = vadd.f32 %v106, %v617
  %v619 = vpop.f32.mrb[0].mxu0
  %620 = vmatprep.mubr.bf16.mxu0 0
  %621 = vmatmul.mubr.bf16.gmra.mrb[0].mxu0 %v266
  %v622 = vpop.f32.mrb[0].mxu0
  %v623 = vadd.f32 %v106, %v622
  %v624 = vpop.f32.mrb[0].mxu0
  %v625 = vpop.f32.mrb[0].mxu0
  %v626 = vadd.f32 %v106, %v625
  %v627 = vpop.f32.mrb[0].mxu0
  %628 = vmatprep.mubr.bf16.mxu0 0
  %629 = vmatmul.mubr.bf16.gmra.mrb[0].mxu0 %v267
  %v630 = vpop.f32.mrb[0].mxu0
  %v631 = vadd.f32 %v106, %v630
  %v632 = vpop.f32.mrb[0].mxu0
  %v633 = vpop.f32.mrb[0].mxu0
  %v634 = vadd.f32 %v106, %v633
  %v635 = vpop.f32.mrb[0].mxu0
  %636 = vdwg.mxu0
  %v637 = vmax.f32 %v383, 0.0
  %v638 = vmax.f32 %v386, 0.0
  %v639 = vmax.f32 %v391, 0.0
  %v640 = vmax.f32 %v394, 0.0
  %v641 = vmax.f32 %v399, 0.0
  %v642 = vmax.f32 %v402, 0.0
  %v643 = vmax.f32 %v407, 0.0
  %v644 = vmax.f32 %v410, 0.0
  %v645 = vmax.f32 %v415, 0.0
  %v646 = vmax.f32 %v418, 0.0
  %v647 = vmax.f32 %v423, 0.0
  %v648 = vmax.f32 %v426, 0.0
  %v649 = vmax.f32 %v431, 0.0
  %v650 = vmax.f32 %v434, 0.0
  %v651 = vmax.f32 %v439, 0.0
  %v652 = vmax.f32 %v442, 0.0
  %v653 = vmax.f32 %v447, 0.0
  %v654 = vmax.f32 %v450, 0.0
  %v655 = vmax.f32 %v455, 0.0
  %v656 = vmax.f32 %v458, 0.0
  %v657 = vmax.f32 %v463, 0.0
  %v658 = vmax.f32 %v466, 0.0
  %v659 = vmax.f32 %v471, 0.0
  %v660 = vmax.f32 %v474, 0.0
  %v661 = vmax.f32 %v479, 0.0
  %v662 = vmax.f32 %v482, 0.0
  %v663 = vmax.f32 %v487, 0.0
  %v664 = vmax.f32 %v490, 0.0
  %v665 = vmax.f32 %v495, 0.0
  %v666 = vmax.f32 %v498, 0.0
  %v667 = vmax.f32 %v503, 0.0
  %v668 = vmax.f32 %v506, 0.0
  %v669 = vmax.f32 %v511, 0.0
  %v670 = vmax.f32 %v514, 0.0
  %v671 = vmax.f32 %v519, 0.0
  %v672 = vmax.f32 %v522, 0.0
  %v673 = vmax.f32 %v527, 0.0
  %v674 = vmax.f32 %v530, 0.0
  %v675 = vmax.f32 %v535, 0.0
  %v676 = vmax.f32 %v538, 0.0
  %v677 = vmax.f32 %v543, 0.0
  %v678 = vmax.f32 %v546, 0.0
  %v679 = vmax.f32 %v551, 0.0
  %v680 = vmax.f32 %v554, 0.0
  %v681 = vmax.f32 %v559, 0.0
  %v682 = vmax.f32 %v562, 0.0
  %v683 = vmax.f32 %v567, 0.0
  %v684 = vmax.f32 %v570, 0.0
  %v685 = vmax.f32 %v575, 0.0
  %v686 = vmax.f32 %v578, 0.0
  %v687 = vmax.f32 %v583, 0.0
  %v688 = vmax.f32 %v586, 0.0
  %v689 = vmax.f32 %v591, 0.0
  %v690 = vmax.f32 %v594, 0.0
  %v691 = vmax.f32 %v599, 0.0
  %v692 = vmax.f32 %v602, 0.0
  %v693 = vmax.f32 %v607, 0.0
  %v694 = vmax.f32 %v610, 0.0
  %v695 = vmax.f32 %v615, 0.0
  %v696 = vmax.f32 %v618, 0.0
  %v697 = vmax.f32 %v623, 0.0
  %v698 = vmax.f32 %v626, 0.0
  %v699 = vmax.f32 %v631, 0.0
  %v700 = vmax.f32 %v634, 0.0
  %vm701 = vcmask 523264
  %702 = vst.msk [vmem:[#allocation2] sm:$0xff] %vm701, 0.0
  %703 = vst.msk [vmem:[#allocation2 + $0x8] sm:$0xff] %vm701, 0.0
  %vm704 = vcmask 517120
  %705 = vst.msk [vmem:[#allocation2 + $0x10] sm:$0x3] %vm704, 0.0
  %706 = vst.msk [vmem:[#allocation2 + $0x1b0] sm:$0xff] %vm701, 0.0
  %707 = vst.msk [vmem:[#allocation2 + $0x1b8] sm:$0xff] %vm701, 0.0
  %708 = vst.msk [vmem:[#allocation2 + $0x1c0] sm:$0x3] %vm704, 0.0
  %s709 = scalar_lea.vmem [#allocation2], 408
  %710 = vst.msk [vmem:[%s709] sm:$0xff] %vm701, 0.0
  %711 = vst.msk [vmem:[%s709 + $0x8] sm:$0xff] %vm701, 0.0
  %712 = vst.msk [vmem:[%s709 + $0x10] sm:$0x3] %vm704, 0.0
  %713 = vst.msk [vmem:[%s709 + $0x1b0] sm:$0xff] %vm701, 0.0
  %714 = vst.msk [vmem:[%s709 + $0x1b8] sm:$0xff] %vm701, 0.0
  %715 = vst.msk [vmem:[%s709 + $0x1c0] sm:$0x3] %vm704, 0.0
  %vm716 = vcmask 516096
  %717 = vst.msk [vmem:[#allocation2] sm:$0x1] %vm716, 0.0
  %718 = vst.msk [vmem:[#allocation2 + $0x18] sm:$0x1] %vm716, 0.0
  %719 = vst.msk [vmem:[#allocation2 + $0x30] sm:$0x1] %vm716, 0.0
  %720 = vst.msk [vmem:[#allocation2 + $0x48] sm:$0x1] %vm716, 0.0
  %721 = vst.msk [vmem:[#allocation2 + $0x60] sm:$0x1] %vm716, 0.0
  %722 = vst.msk [vmem:[#allocation2 + $0x78] sm:$0x1] %vm716, 0.0
  %723 = vst.msk [vmem:[#allocation2 + $0x90] sm:$0x1] %vm716, 0.0
  %724 = vst.msk [vmem:[#allocation2 + $0xa8] sm:$0x1] %vm716, 0.0
  %725 = vst.msk [vmem:[#allocation2 + $0xc0] sm:$0x1] %vm716, 0.0
  %726 = vst.msk [vmem:[#allocation2 + $0xd8] sm:$0x1] %vm716, 0.0
  %727 = vst.msk [vmem:[#allocation2 + $0xf0] sm:$0x1] %vm716, 0.0
  %728 = vst.msk [vmem:[#allocation2 + $0x108] sm:$0x1] %vm716, 0.0
  %729 = vst.msk [vmem:[#allocation2 + $0x120] sm:$0x1] %vm716, 0.0
  %730 = vst.msk [vmem:[#allocation2 + $0x138] sm:$0x1] %vm716, 0.0
  %731 = vst.msk [vmem:[#allocation2 + $0x150] sm:$0x1] %vm716, 0.0
  %732 = vst.msk [vmem:[#allocation2 + $0x168] sm:$0x1] %vm716, 0.0
  %733 = vst.msk [vmem:[#allocation2 + $0x180] sm:$0x1] %vm716, 0.0
  %734 = vst.msk [vmem:[#allocation2 + $0x198] sm:$0x1] %vm716, 0.0
  %735 = vst.msk [vmem:[#allocation2 + $0x1b0] sm:$0x1] %vm716, 0.0
  %736 = vst.msk [vmem:[#allocation2 + $0x1c8] sm:$0x1] %vm716, 0.0
  %737 = vst.msk [vmem:[#allocation2 + $0x1e0] sm:$0x1] %vm716, 0.0
  %738 = vst.msk [vmem:[#allocation2 + $0x1f8] sm:$0x1] %vm716, 0.0
  %739 = vst.msk [vmem:[#allocation2 + $0x210] sm:$0x1] %vm716, 0.0
  %740 = vst.msk [vmem:[#allocation2 + $0x228] sm:$0x1] %vm716, 0.0
  %741 = vst.msk [vmem:[#allocation2 + $0x240] sm:$0x1] %vm716, 0.0
  %742 = vst.msk [vmem:[#allocation2 + $0x258] sm:$0x1] %vm716, 0.0
  %743 = vst.msk [vmem:[#allocation2 + $0x270] sm:$0x1] %vm716, 0.0
  %744 = vst.msk [vmem:[#allocation2 + $0x288] sm:$0x1] %vm716, 0.0
  %745 = vst.msk [vmem:[#allocation2 + $0x2a0] sm:$0x1] %vm716, 0.0
  %746 = vst.msk [vmem:[#allocation2 + $0x2b8] sm:$0x1] %vm716, 0.0
  %747 = vst.msk [vmem:[#allocation2 + $0x2d0] sm:$0x1] %vm716, 0.0
  %748 = vst.msk [vmem:[#allocation2 + $0x2e8] sm:$0x1] %vm716, 0.0
  %749 = vst.msk [vmem:[#allocation2 + $0x300] sm:$0x1] %vm716, 0.0
  %750 = vst.msk [vmem:[#allocation2 + $0x318] sm:$0x1] %vm716, 0.0
  %751 = vst.msk [vmem:[#allocation2 + $0x330] sm:$0x1] %vm716, 0.0
  %752 = vst.msk [vmem:[#allocation2 + $0x348] sm:$0x1] %vm716, 0.0
  %753 = vst.msk [vmem:[#allocation2 + $0x11] sm:$0x1] %vm716, 0.0
  %754 = vst.msk [vmem:[#allocation2 + $0x29] sm:$0x1] %vm716, 0.0
  %755 = vst.msk [vmem:[#allocation2 + $0x41] sm:$0x1] %vm716, 0.0
  %756 = vst.msk [vmem:[#allocation2 + $0x59] sm:$0x1] %vm716, 0.0
  %757 = vst.msk [vmem:[#allocation2 + $0x71] sm:$0x1] %vm716, 0.0
  %758 = vst.msk [vmem:[#allocation2 + $0x89] sm:$0x1] %vm716, 0.0
  %759 = vst.msk [vmem:[#allocation2 + $0xa1] sm:$0x1] %vm716, 0.0
  %760 = vst.msk [vmem:[#allocation2 + $0xb9] sm:$0x1] %vm716, 0.0
  %761 = vst.msk [vmem:[#allocation2 + $0xd1] sm:$0x1] %vm716, 0.0
  %762 = vst.msk [vmem:[#allocation2 + $0xe9] sm:$0x1] %vm716, 0.0
  %763 = vst.msk [vmem:[#allocation2 + $0x101] sm:$0x1] %vm716, 0.0
  %764 = vst.msk [vmem:[#allocation2 + $0x119] sm:$0x1] %vm716, 0.0
  %765 = vst.msk [vmem:[#allocation2 + $0x131] sm:$0x1] %vm716, 0.0
  %766 = vst.msk [vmem:[#allocation2 + $0x149] sm:$0x1] %vm716, 0.0
  %767 = vst.msk [vmem:[#allocation2 + $0x161] sm:$0x1] %vm716, 0.0
  %768 = vst.msk [vmem:[#allocation2 + $0x179] sm:$0x1] %vm716, 0.0
  %769 = vst.msk [vmem:[#allocation2 + $0x191] sm:$0x1] %vm716, 0.0
  %770 = vst.msk [vmem:[#allocation2 + $0x1a9] sm:$0x1] %vm716, 0.0
  %771 = vst.msk [vmem:[#allocation2 + $0x1c1] sm:$0x1] %vm716, 0.0
  %772 = vst.msk [vmem:[#allocation2 + $0x1d9] sm:$0x1] %vm716, 0.0
  %773 = vst.msk [vmem:[#allocation2 + $0x1f1] sm:$0x1] %vm716, 0.0
  %774 = vst.msk [vmem:[#allocation2 + $0x209] sm:$0x1] %vm716, 0.0
  %775 = vst.msk [vmem:[#allocation2 + $0x221] sm:$0x1] %vm716, 0.0
  %776 = vst.msk [vmem:[#allocation2 + $0x239] sm:$0x1] %vm716, 0.0
  %777 = vst.msk [vmem:[#allocation2 + $0x251] sm:$0x1] %vm716, 0.0
  %778 = vst.msk [vmem:[#allocation2 + $0x269] sm:$0x1] %vm716, 0.0
  %779 = vst.msk [vmem:[#allocation2 + $0x281] sm:$0x1] %vm716, 0.0
  %780 = vst.msk [vmem:[#allocation2 + $0x299] sm:$0x1] %vm716, 0.0
  %781 = vst.msk [vmem:[#allocation2 + $0x2b1] sm:$0x1] %vm716, 0.0
  %782 = vst.msk [vmem:[#allocation2 + $0x2c9] sm:$0x1] %vm716, 0.0
  %783 = vst.msk [vmem:[#allocation2 + $0x2e1] sm:$0x1] %vm716, 0.0
  %784 = vst.msk [vmem:[#allocation2 + $0x2f9] sm:$0x1] %vm716, 0.0
  %785 = vst.msk [vmem:[#allocation2 + $0x311] sm:$0x1] %vm716, 0.0
  %786 = vst.msk [vmem:[#allocation2 + $0x329] sm:$0x1] %vm716, 0.0
  %787 = vst.msk [vmem:[#allocation2 + $0x341] sm:$0x1] %vm716, 0.0
  %788 = vst.msk [vmem:[#allocation2 + $0x359] sm:$0x1] %vm716, 0.0
  %s789 = scalar_lea.vmem [#allocation2], 24
  %790 = vst.msk [vmem:[%s789 + $0x1] sm:$0xff] %vm701, %v637
  %791 = vst.msk [vmem:[%s789 + $0x9] sm:$0xff] %vm701, %v638
  %792 = vst.msk [vmem:[%s789 + $0x19] sm:$0xff] %vm701, %v639
  %793 = vst.msk [vmem:[%s789 + $0x21] sm:$0xff] %vm701, %v640
  %794 = vst.msk [vmem:[%s789 + $0x31] sm:$0xff] %vm701, %v641
  %795 = vst.msk [vmem:[%s789 + $0x39] sm:$0xff] %vm701, %v642
  %796 = vst.msk [vmem:[%s789 + $0x49] sm:$0xff] %vm701, %v643
  %797 = vst.msk [vmem:[%s789 + $0x51] sm:$0xff] %vm701, %v644
  %798 = vst.msk [vmem:[%s789 + $0x61] sm:$0xff] %vm701, %v645
  %799 = vst.msk [vmem:[%s789 + $0x69] sm:$0xff] %vm701, %v646
  %800 = vst.msk [vmem:[%s789 + $0x79] sm:$0xff] %vm701, %v647
  %801 = vst.msk [vmem:[%s789 + $0x81] sm:$0xff] %vm701, %v648
  %802 = vst.msk [vmem:[%s789 + $0x91] sm:$0xff] %vm701, %v649
  %803 = vst.msk [vmem:[%s789 + $0x99] sm:$0xff] %vm701, %v650
  %804 = vst.msk [vmem:[%s789 + $0xa9] sm:$0xff] %vm701, %v651
  %805 = vst.msk [vmem:[%s789 + $0xb1] sm:$0xff] %vm701, %v652
  %806 = vst.msk [vmem:[%s789 + $0xc1] sm:$0xff] %vm701, %v653
  %807 = vst.msk [vmem:[%s789 + $0xc9] sm:$0xff] %vm701, %v654
  %808 = vst.msk [vmem:[%s789 + $0xd9] sm:$0xff] %vm701, %v655
  %809 = vst.msk [vmem:[%s789 + $0xe1] sm:$0xff] %vm701, %v656
  %810 = vst.msk [vmem:[%s789 + $0xf1] sm:$0xff] %vm701, %v657
  %811 = vst.msk [vmem:[%s789 + $0xf9] sm:$0xff] %vm701, %v658
  %812 = vst.msk [vmem:[%s789 + $0x109] sm:$0xff] %vm701, %v659
  %813 = vst.msk [vmem:[%s789 + $0x111] sm:$0xff] %vm701, %v660
  %814 = vst.msk [vmem:[%s789 + $0x121] sm:$0xff] %vm701, %v661
  %815 = vst.msk [vmem:[%s789 + $0x129] sm:$0xff] %vm701, %v662
  %816 = vst.msk [vmem:[%s789 + $0x139] sm:$0xff] %vm701, %v663
  %817 = vst.msk [vmem:[%s789 + $0x141] sm:$0xff] %vm701, %v664
  %818 = vst.msk [vmem:[%s789 + $0x151] sm:$0xff] %vm701, %v665
  %819 = vst.msk [vmem:[%s789 + $0x159] sm:$0xff] %vm701, %v666
  %820 = vst.msk [vmem:[%s789 + $0x169] sm:$0xff] %vm701, %v667
  %821 = vst.msk [vmem:[%s789 + $0x171] sm:$0xff] %vm701, %v668
  %822 = vst.msk [vmem:[%s789 + $0x1b1] sm:$0xff] %vm701, %v669
  %823 = vst.msk [vmem:[%s789 + $0x1b9] sm:$0xff] %vm701, %v670
  %824 = vst.msk [vmem:[%s789 + $0x1c9] sm:$0xff] %vm701, %v671
  %825 = vst.msk [vmem:[%s789 + $0x1d1] sm:$0xff] %vm701, %v672
  %826 = vst.msk [vmem:[%s789 + $0x1e1] sm:$0xff] %vm701, %v673
  %827 = vst.msk [vmem:[%s789 + $0x1e9] sm:$0xff] %vm701, %v674
  %828 = vst.msk [vmem:[%s789 + $0x1f9] sm:$0xff] %vm701, %v675
  %829 = vst.msk [vmem:[%s789 + $0x201] sm:$0xff] %vm701, %v676
  %830 = vst.msk [vmem:[%s789 + $0x211] sm:$0xff] %vm701, %v677
  %831 = vst.msk [vmem:[%s789 + $0x219] sm:$0xff] %vm701, %v678
  %832 = vst.msk [vmem:[%s789 + $0x229] sm:$0xff] %vm701, %v679
  %833 = vst.msk [vmem:[%s789 + $0x231] sm:$0xff] %vm701, %v680
  %834 = vst.msk [vmem:[%s789 + $0x241] sm:$0xff] %vm701, %v681
  %835 = vst.msk [vmem:[%s789 + $0x249] sm:$0xff] %vm701, %v682
  %836 = vst.msk [vmem:[%s789 + $0x259] sm:$0xff] %vm701, %v683
  %837 = vst.msk [vmem:[%s789 + $0x261] sm:$0xff] %vm701, %v684
  %838 = vst.msk [vmem:[%s789 + $0x271] sm:$0xff] %vm701, %v685
  %839 = vst.msk [vmem:[%s789 + $0x279] sm:$0xff] %vm701, %v686
  %840 = vst.msk [vmem:[%s789 + $0x289] sm:$0xff] %vm701, %v687
  %841 = vst.msk [vmem:[%s789 + $0x291] sm:$0xff] %vm701, %v688
  %842 = vst.msk [vmem:[%s789 + $0x2a1] sm:$0xff] %vm701, %v689
  %843 = vst.msk [vmem:[%s789 + $0x2a9] sm:$0xff] %vm701, %v690
  %844 = vst.msk [vmem:[%s789 + $0x2b9] sm:$0xff] %vm701, %v691
  %845 = vst.msk [vmem:[%s789 + $0x2c1] sm:$0xff] %vm701, %v692
  %846 = vst.msk [vmem:[%s789 + $0x2d1] sm:$0xff] %vm701, %v693
  %847 = vst.msk [vmem:[%s789 + $0x2d9] sm:$0xff] %vm701, %v694
  %848 = vst.msk [vmem:[%s789 + $0x2e9] sm:$0xff] %vm701, %v695
  %849 = vst.msk [vmem:[%s789 + $0x2f1] sm:$0xff] %vm701, %v696
  %850 = vst.msk [vmem:[%s789 + $0x301] sm:$0xff] %vm701, %v697
  %851 = vst.msk [vmem:[%s789 + $0x309] sm:$0xff] %vm701, %v698
  %852 = vst.msk [vmem:[%s789 + $0x319] sm:$0xff] %vm701, %v699
  %853 = vst.msk [vmem:[%s789 + $0x321] sm:$0xff] %vm701, %v700
  %v854 = vld [vmem:[#allocation2] sm:$0xff]
  %v855 = vld [vmem:[#allocation2 + $0x8] sm:$0xff]
  %v856 = vld [vmem:[#allocation2 + $0x18] sm:$0xff]
  %v857 = vld [vmem:[#allocation2 + $0x20] sm:$0xff]
  %v858 = vld [vmem:[#allocation2 + $0x30] sm:$0xff]
  %v859 = vld [vmem:[#allocation2 + $0x38] sm:$0xff]
  %v860 = vld [vmem:[#allocation2 + $0x48] sm:$0xff]
  %v861 = vld [vmem:[#allocation2 + $0x50] sm:$0xff]
  %v862 = vld [vmem:[#allocation2 + $0x60] sm:$0xff]
  %v863 = vld [vmem:[#allocation2 + $0x68] sm:$0xff]
  %v864 = vld [vmem:[#allocation2 + $0x78] sm:$0xff]
  %v865 = vld [vmem:[#allocation2 + $0x80] sm:$0xff]
  %v866 = vld [vmem:[#allocation2 + $0x90] sm:$0xff]
  %v867 = vld [vmem:[#allocation2 + $0x98] sm:$0xff]
  %v868 = vld [vmem:[#allocation2 + $0xa8] sm:$0xff]
  %v869 = vld [vmem:[#allocation2 + $0xb0] sm:$0xff]
  %v870 = vld [vmem:[#allocation2 + $0xc0] sm:$0xff]
  %v871 = vld [vmem:[#allocation2 + $0xc8] sm:$0xff]
  %v872 = vld [vmem:[#allocation2 + $0xd8] sm:$0xff]
  %v873 = vld [vmem:[#allocation2 + $0xe0] sm:$0xff]
  %v874 = vld [vmem:[#allocation2 + $0xf0] sm:$0xff]
  %v875 = vld [vmem:[#allocation2 + $0xf8] sm:$0xff]
  %v876 = vld [vmem:[#allocation2 + $0x108] sm:$0xff]
  %v877 = vld [vmem:[#allocation2 + $0x110] sm:$0xff]
  %v878 = vld [vmem:[#allocation2 + $0x120] sm:$0xff]
  %v879 = vld [vmem:[#allocation2 + $0x128] sm:$0xff]
  %v880 = vld [vmem:[#allocation2 + $0x138] sm:$0xff]
  %v881 = vld [vmem:[#allocation2 + $0x140] sm:$0xff]
  %v882 = vld [vmem:[#allocation2 + $0x150] sm:$0xff]
  %v883 = vld [vmem:[#allocation2 + $0x158] sm:$0xff]
  %v884 = vld [vmem:[#allocation2 + $0x168] sm:$0xff]
  %v885 = vld [vmem:[#allocation2 + $0x170] sm:$0xff]
  %v886 = vld [vmem:[#allocation2 + $0x1b0] sm:$0xff]
  %v887 = vld [vmem:[#allocation2 + $0x1b8] sm:$0xff]
  %v888 = vld [vmem:[#allocation2 + $0x1c8] sm:$0xff]
  %v889 = vld [vmem:[#allocation2 + $0x1d0] sm:$0xff]
  %v890 = vld [vmem:[#allocation2 + $0x1e0] sm:$0xff]
  %v891 = vld [vmem:[#allocation2 + $0x1e8] sm:$0xff]
  %v892 = vld [vmem:[#allocation2 + $0x1f8] sm:$0xff]
  %v893 = vld [vmem:[#allocation2 + $0x200] sm:$0xff]
  %v894 = vld [vmem:[#allocation2 + $0x210] sm:$0xff]
  %v895 = vld [vmem:[#allocation2 + $0x218] sm:$0xff]
  %v896 = vld [vmem:[#allocation2 + $0x228] sm:$0xff]
  %v897 = vld [vmem:[#allocation2 + $0x230] sm:$0xff]
  %v898 = vld [vmem:[#allocation2 + $0x240] sm:$0xff]
  %v899 = vld [vmem:[#allocation2 + $0x248] sm:$0xff]
  %v900 = vld [vmem:[#allocation2 + $0x258] sm:$0xff]
  %v901 = vld [vmem:[#allocation2 + $0x260] sm:$0xff]
  %v902 = vld [vmem:[#allocation2 + $0x270] sm:$0xff]
  %v903 = vld [vmem:[#allocation2 + $0x278] sm:$0xff]
  %v904 = vld [vmem:[#allocation2 + $0x288] sm:$0xff]
  %v905 = vld [vmem:[#allocation2 + $0x290] sm:$0xff]
  %v906 = vld [vmem:[#allocation2 + $0x2a0] sm:$0xff]
  %v907 = vld [vmem:[#allocation2 + $0x2a8] sm:$0xff]
  %v908 = vld [vmem:[#allocation2 + $0x2b8] sm:$0xff]
  %v909 = vld [vmem:[#allocation2 + $0x2c0] sm:$0xff]
  %v910 = vld [vmem:[#allocation2 + $0x2d0] sm:$0xff]
  %v911 = vld [vmem:[#allocation2 + $0x2d8] sm:$0xff]
  %v912 = vld [vmem:[#allocation2 + $0x2e8] sm:$0xff]
  %v913 = vld [vmem:[#allocation2 + $0x2f0] sm:$0xff]
  %v914 = vld [vmem:[#allocation2 + $0x300] sm:$0xff]
  %v915 = vld [vmem:[#allocation2 + $0x308] sm:$0xff]
  %v916 = vld [vmem:[#allocation2 + $0x318] sm:$0xff]
  %v917 = vld [vmem:[#allocation2 + $0x320] sm:$0xff]
  %v918 = vpack.c.bf16 %v855, %v854
  %v919 = vpack.c.bf16 %v857, %v856
  %v920 = vpack.c.bf16 %v859, %v858
  %v921 = vpack.c.bf16 %v861, %v860
  %v922 = vpack.c.bf16 %v863, %v862
  %v923 = vpack.c.bf16 %v865, %v864
  %v924 = vpack.c.bf16 %v867, %v866
  %v925 = vpack.c.bf16 %v869, %v868
  %v926 = vpack.c.bf16 %v871, %v870
  %v927 = vpack.c.bf16 %v873, %v872
  %v928 = vpack.c.bf16 %v875, %v874
  %v929 = vpack.c.bf16 %v877, %v876
  %v930 = vpack.c.bf16 %v879, %v878
  %v931 = vpack.c.bf16 %v881, %v880
  %v932 = vpack.c.bf16 %v883, %v882
  %v933 = vpack.c.bf16 %v885, %v884
  %v934 = vpack.c.bf16 %v887, %v886
  %v935 = vpack.c.bf16 %v889, %v888
  %v936 = vpack.c.bf16 %v891, %v890
  %v937 = vpack.c.bf16 %v893, %v892
  %v938 = vpack.c.bf16 %v895, %v894
  %v939 = vpack.c.bf16 %v897, %v896
  %v940 = vpack.c.bf16 %v899, %v898
  %v941 = vpack.c.bf16 %v901, %v900
  %v942 = vpack.c.bf16 %v903, %v902
  %v943 = vpack.c.bf16 %v905, %v904
  %v944 = vpack.c.bf16 %v907, %v906
  %v945 = vpack.c.bf16 %v909, %v908
  %v946 = vpack.c.bf16 %v911, %v910
  %v947 = vpack.c.bf16 %v913, %v912
  %v948 = vpack.c.bf16 %v915, %v914
  %v949 = vpack.c.bf16 %v917, %v916
  %v950 = vld [vmem:[%s3] sm:$0xf]
  %v951 = vld [vmem:[%s3 + $0x4] sm:$0xf]
  %v952 = vld [vmem:[%s3 + $0x8] sm:$0xf]
  %v953 = vld [vmem:[%s3 + $0xc] sm:$0xf]
  %v954 = vld [vmem:[%s3 + $0x10] sm:$0xf]
  %v955 = vld [vmem:[%s3 + $0x14] sm:$0xf]
  %v956 = vld [vmem:[%s3 + $0x18] sm:$0xf]
  %v957 = vld [vmem:[%s3 + $0x1c] sm:$0xf]
  %v958 = vld [vmem:[#allocation2 + $0x1] sm:$0xff]
  %v959 = vld [vmem:[#allocation2 + $0x9] sm:$0xff]
  %v960 = vld [vmem:[#allocation2 + $0x19] sm:$0xff]
  %v961 = vld [vmem:[#allocation2 + $0x21] sm:$0xff]
  %v962 = vld [vmem:[#allocation2 + $0x31] sm:$0xff]
  %v963 = vld [vmem:[#allocation2 + $0x39] sm:$0xff]
  %v964 = vld [vmem:[#allocation2 + $0x49] sm:$0xff]
  %v965 = vld [vmem:[#allocation2 + $0x51] sm:$0xff]
  %v966 = vld [vmem:[#allocation2 + $0x61] sm:$0xff]
  %v967 = vld [vmem:[#allocation2 + $0x69] sm:$0xff]
  %v968 = vld [vmem:[#allocation2 + $0x79] sm:$0xff]
  %v969 = vld [vmem:[#allocation2 + $0x81] sm:$0xff]
  %v970 = vld [vmem:[#allocation2 + $0x91] sm:$0xff]
  %v971 = vld [vmem:[#allocation2 + $0x99] sm:$0xff]
  %v972 = vld [vmem:[#allocation2 + $0xa9] sm:$0xff]
  %v973 = vld [vmem:[#allocation2 + $0xb1] sm:$0xff]
  %v974 = vld [vmem:[#allocation2 + $0xc1] sm:$0xff]
  %v975 = vld [vmem:[#allocation2 + $0xc9] sm:$0xff]
  %v976 = vld [vmem:[#allocation2 + $0xd9] sm:$0xff]
  %v977 = vld [vmem:[#allocation2 + $0xe1] sm:$0xff]
  %v978 = vld [vmem:[#allocation2 + $0xf1] sm:$0xff]
  %v979 = vld [vmem:[#allocation2 + $0xf9] sm:$0xff]
  %v980 = vld [vmem:[#allocation2 + $0x109] sm:$0xff]
  %v981 = vld [vmem:[#allocation2 + $0x111] sm:$0xff]
  %v982 = vld [vmem:[#allocation2 + $0x121] sm:$0xff]
  %v983 = vld [vmem:[#allocation2 + $0x129] sm:$0xff]
  %v984 = vld [vmem:[#allocation2 + $0x139] sm:$0xff]
  %v985 = vld [vmem:[#allocation2 + $0x141] sm:$0xff]
  %v986 = vld [vmem:[#allocation2 + $0x151] sm:$0xff]
  %v987 = vld [vmem:[#allocation2 + $0x159] sm:$0xff]
  %v988 = vld [vmem:[#allocation2 + $0x169] sm:$0xff]
  %v989 = vld [vmem:[#allocation2 + $0x171] sm:$0xff]
  %v990 = vld [vmem:[#allocation2 + $0x1b1] sm:$0xff]
  %v991 = vld [vmem:[#allocation2 + $0x1b9] sm:$0xff]
  %v992 = vld [vmem:[#allocation2 + $0x1c9] sm:$0xff]
  %v993 = vld [vmem:[#allocation2 + $0x1d1] sm:$0xff]
  %v994 = vld [vmem:[#allocation2 + $0x1e1] sm:$0xff]
  %v995 = vld [vmem:[#allocation2 + $0x1e9] sm:$0xff]
  %v996 = vld [vmem:[#allocation2 + $0x1f9] sm:$0xff]
  %v997 = vld [vmem:[#allocation2 + $0x201] sm:$0xff]
  %v998 = vld [vmem:[#allocation2 + $0x211] sm:$0xff]
  %v999 = vld [vmem:[#allocation2 + $0x219] sm:$0xff]
  %v1000 = vld [vmem:[#allocation2 + $0x229] sm:$0xff]
  %v1001 = vld [vmem:[#allocation2 + $0x231] sm:$0xff]
  %v1002 = vld [vmem:[#allocation2 + $0x241] sm:$0xff]
  %v1003 = vld [vmem:[#allocation2 + $0x249] sm:$0xff]
  %v1004 = vld [vmem:[#allocation2 + $0x259] sm:$0xff]
  %v1005 = vld [vmem:[#allocation2 + $0x261] sm:$0xff]
  %v1006 = vld [vmem:[#allocation2 + $0x271] sm:$0xff]
  %v1007 = vld [vmem:[#allocation2 + $0x279] sm:$0xff]
  %v1008 = vld [vmem:[#allocation2 + $0x289] sm:$0xff]
  %v1009 = vld [vmem:[#allocation2 + $0x291] sm:$0xff]
  %v1010 = vld [vmem:[#allocation2 + $0x2a1] sm:$0xff]
  %v1011 = vld [vmem:[#allocation2 + $0x2a9] sm:$0xff]
  %v1012 = vld [vmem:[#allocation2 + $0x2b9] sm:$0xff]
  %v1013 = vld [vmem:[#allocation2 + $0x2c1] sm:$0xff]
  %v1014 = vld [vmem:[#allocation2 + $0x2d1] sm:$0xff]
  %v1015 = vld [vmem:[#allocation2 + $0x2d9] sm:$0xff]
  %v1016 = vld [vmem:[#allocation2 + $0x2e9] sm:$0xff]
  %v1017 = vld [vmem:[#allocation2 + $0x2f1] sm:$0xff]
  %v1018 = vld [vmem:[#allocation2 + $0x301] sm:$0xff]
  %v1019 = vld [vmem:[#allocation2 + $0x309] sm:$0xff]
  %v1020 = vld [vmem:[#allocation2 + $0x319] sm:$0xff]
  %v1021 = vld [vmem:[#allocation2 + $0x321] sm:$0xff]
  %v1022 = vpack.c.bf16 %v959, %v958
  %v1023 = vpack.c.bf16 %v961, %v960
  %v1024 = vpack.c.bf16 %v963, %v962
  %v1025 = vpack.c.bf16 %v965, %v964
  %v1026 = vpack.c.bf16 %v967, %v966
  %v1027 = vpack.c.bf16 %v969, %v968
  %v1028 = vpack.c.bf16 %v971, %v970
  %v1029 = vpack.c.bf16 %v973, %v972
  %v1030 = vpack.c.bf16 %v975, %v974
  %v1031 = vpack.c.bf16 %v977, %v976
  %v1032 = vpack.c.bf16 %v979, %v978
  %v1033 = vpack.c.bf16 %v981, %v980
  %v1034 = vpack.c.bf16 %v983, %v982
  %v1035 = vpack.c.bf16 %v985, %v984
  %v1036 = vpack.c.bf16 %v987, %v986
  %v1037 = vpack.c.bf16 %v989, %v988
  %v1038 = vpack.c.bf16 %v991, %v990
  %v1039 = vpack.c.bf16 %v993, %v992
  %v1040 = vpack.c.bf16 %v995, %v994
  %v1041 = vpack.c.bf16 %v997, %v996
  %v1042 = vpack.c.bf16 %v999, %v998
  %v1043 = vpack.c.bf16 %v1001, %v1000
  %v1044 = vpack.c.bf16 %v1003, %v1002
  %v1045 = vpack.c.bf16 %v1005, %v1004
  %v1046 = vpack.c.bf16 %v1007, %v1006
  %v1047 = vpack.c.bf16 %v1009, %v1008
  %v1048 = vpack.c.bf16 %v1011, %v1010
  %v1049 = vpack.c.bf16 %v1013, %v1012
  %v1050 = vpack.c.bf16 %v1015, %v1014
  %v1051 = vpack.c.bf16 %v1017, %v1016
  %v1052 = vpack.c.bf16 %v1019, %v1018
  %v1053 = vpack.c.bf16 %v1021, %v1020
  %s1054 = scalar_lea.vmem %s3, 32
  %v1055 = vld [vmem:[%s1054] sm:$0xf]
  %v1056 = vld [vmem:[%s1054 + $0x4] sm:$0xf]
  %v1057 = vld [vmem:[%s1054 + $0x8] sm:$0xf]
  %v1058 = vld [vmem:[%s1054 + $0xc] sm:$0xf]
  %v1059 = vld [vmem:[%s1054 + $0x10] sm:$0xf]
  %v1060 = vld [vmem:[%s1054 + $0x14] sm:$0xf]
  %v1061 = vld [vmem:[%s1054 + $0x18] sm:$0xf]
  %v1062 = vld [vmem:[%s1054 + $0x1c] sm:$0xf]
  %v1071 = vunpack.c.l.b16 %v1055
  %v1072 = vunpack.c.l.b16 %v1056
  %v1073 = vunpack.c.l.b16 %v1057
  %v1074 = vunpack.c.l.b16 %v1058
  %v1075 = vunpack.c.l.b16 %v1059
  %v1076 = vunpack.c.l.b16 %v1060
  %v1077 = vunpack.c.l.b16 %v1061
  %v1078 = vunpack.c.l.b16 %v1062
  %v1079 = vpack.c.b16 %v1072, %v1071
  %v1080 = vpack.c.b16 %v1074, %v1073
  %v1081 = vpack.c.b16 %v1076, %v1075
  %v1082 = vpack.c.b16 %v1078, %v1077
  %v1088 = vsel %vm701, %v1022, 0
  %v1091 = vsel %vm701, %v1023, 0
  %v1094 = vsel %vm701, %v1024, 0
  %v1097 = vsel %vm701, %v1025, 0
  %v1100 = vsel %vm701, %v1026, 0
  %v1103 = vsel %vm701, %v1027, 0
  %v1106 = vsel %vm701, %v1028, 0
  %v1109 = vsel %vm701, %v1029, 0
  %v1112 = vsel %vm701, %v1030, 0
  %v1115 = vsel %vm701, %v1031, 0
  %v1118 = vsel %vm701, %v1032, 0
  %v1121 = vsel %vm701, %v1033, 0
  %v1124 = vsel %vm701, %v1034, 0
  %v1127 = vsel %vm701, %v1035, 0
  %v1130 = vsel %vm701, %v1036, 0
  %v1133 = vsel %vm701, %v1037, 0
  %v1136 = vsel %vm701, %v1038, 0
  %v1139 = vsel %vm701, %v1039, 0
  %v1142 = vsel %vm701, %v1040, 0
  %v1145 = vsel %vm701, %v1041, 0
  %v1148 = vsel %vm701, %v1042, 0
  %v1151 = vsel %vm701, %v1043, 0
  %v1154 = vsel %vm701, %v1044, 0
  %v1157 = vsel %vm701, %v1045, 0
  %v1160 = vsel %vm701, %v1046, 0
  %v1163 = vsel %vm701, %v1047, 0
  %v1166 = vsel %vm701, %v1048, 0
  %v1169 = vsel %vm701, %v1049, 0
  %v1172 = vsel %vm701, %v1050, 0
  %v1175 = vsel %vm701, %v1051, 0
  %v1178 = vsel %vm701, %v1052, 0
  %v1181 = vsel %vm701, %v1053, 0
  %1183 = vmatprep.subr.bf16.mxu0 0
  %1184 = vmatpush1.bf16.msra.mxu0 %v1079
  %1185 = vmatprep.subr.bf16.mxu0 0
  %1186 = vmatpush1.bf16.msra.mxu0 %v1080
  %1187 = vmatprep.subr.bf16.mxu0 0
  %1188 = vmatpush1.bf16.msra.mxu0 %v1081
  %1189 = vmatprep.subr.bf16.mxu0 0
  %1190 = vmatpush1.bf16.msra.mxu0 %v1082
  %1191 = vmatprep.subr.bf16.mxu0 0
  %1192 = vmatpush1.bf16.msra.mxu0 0
  %1193 = vmatprep.subr.bf16.mxu0 0
  %1194 = vmatpush1.bf16.msra.mxu0 0
  %1195 = vmatprep.subr.bf16.mxu0 0
  %1196 = vmatpush1.bf16.msra.mxu0 0
  %1197 = vmatprep.subr.bf16.mxu0 0
  %1198 = vmatpush1.bf16.msra.mxu0 0
  %1199 = vmatprep.subr.bf16.mxu0 0
  %1200 = vmatpush1.bf16.msra.mxu0 0
  %1201 = vmatprep.subr.bf16.mxu0 0
  %1202 = vmatpush1.bf16.msra.mxu0 0
  %1203 = vmatprep.subr.bf16.mxu0 0
  %1204 = vmatpush1.bf16.msra.mxu0 0
  %1205 = vmatprep.subr.bf16.mxu0 0
  %1206 = vmatpush1.bf16.msra.mxu0 0
  %1207 = vmatprep.subr.bf16.mxu0 0
  %1208 = vmatpush1.bf16.msra.mxu0 0
  %1209 = vmatprep.subr.bf16.mxu0 0
  %1210 = vmatpush1.bf16.msra.mxu0 0
  %1211 = vmatprep.subr.bf16.mxu0 0
  %1212 = vmatpush1.bf16.msra.mxu0 0
  %1213 = vmatprep.subr.bf16.mxu0 0
  %1214 = vmatpush1.bf16.msra.mxu0 0
  %1215 = vmatprep.mubr.bf16.mxu0 0
  %1216 = vmatmul.mubr.bf16.gmra.mrb[0].mxu0 %v1088
  %v1217 = vpop.f32.mrb[0].mxu0
  %v1218 = vadd.f32 0.0, %v1217
  %v1219 = vpop.f32.mrb[0].mxu0
  %v1220 = vpop.f32.mrb[0].mxu0
  %v1221 = vadd.f32 0.0, %v1220
  %v1222 = vpop.f32.mrb[0].mxu0
  %1223 = vmatprep.mubr.bf16.mxu0 0
  %1224 = vmatmul.mubr.bf16.gmra.mrb[0].mxu0 %v1091
  %v1225 = vpop.f32.mrb[0].mxu0
  %v1226 = vadd.f32 0.0, %v1225
  %v1227 = vpop.f32.mrb[0].mxu0
  %v1228 = vpop.f32.mrb[0].mxu0
  %v1229 = vadd.f32 0.0, %v1228
  %v1230 = vpop.f32.mrb[0].mxu0
  %1231 = vmatprep.mubr.bf16.mxu0 0
  %1232 = vmatmul.mubr.bf16.gmra.mrb[0].mxu0 %v1094
  %v1233 = vpop.f32.mrb[0].mxu0
  %v1234 = vadd.f32 0.0, %v1233
  %v1235 = vpop.f32.mrb[0].mxu0
  %v1236 = vpop.f32.mrb[0].mxu0
  %v1237 = vadd.f32 0.0, %v1236
  %v1238 = vpop.f32.mrb[0].mxu0
  %1239 = vmatprep.mubr.bf16.mxu0 0
  %1240 = vmatmul.mubr.bf16.gmra.mrb[0].mxu0 %v1097
  %v1241 = vpop.f32.mrb[0].mxu0
  %v1242 = vadd.f32 0.0, %v1241
  %v1243 = vpop.f32.mrb[0].mxu0
  %v1244 = vpop.f32.mrb[0].mxu0
  %v1245 = vadd.f32 0.0, %v1244
  %v1246 = vpop.f32.mrb[0].mxu0
  %1247 = vmatprep.mubr.bf16.mxu0 0
  %1248 = vmatmul.mubr.bf16.gmra.mrb[0].mxu0 %v1100
  %v1249 = vpop.f32.mrb[0].mxu0
  %v1250 = vadd.f32 0.0, %v1249
  %v1251 = vpop.f32.mrb[0].mxu0
  %v1252 = vpop.f32.mrb[0].mxu0
  %v1253 = vadd.f32 0.0, %v1252
  %v1254 = vpop.f32.mrb[0].mxu0
  %1255 = vmatprep.mubr.bf16.mxu0 0
  %1256 = vmatmul.mubr.bf16.gmra.mrb[0].mxu0 %v1103
  %v1257 = vpop.f32.mrb[0].mxu0
  %v1258 = vadd.f32 0.0, %v1257
  %v1259 = vpop.f32.mrb[0].mxu0
  %v1260 = vpop.f32.mrb[0].mxu0
  %v1261 = vadd.f32 0.0, %v1260
  %v1262 = vpop.f32.mrb[0].mxu0
  %1263 = vmatprep.mubr.bf16.mxu0 0
  %1264 = vmatmul.mubr.bf16.gmra.mrb[0].mxu0 %v1106
  %v1265 = vpop.f32.mrb[0].mxu0
  %v1266 = vadd.f32 0.0, %v1265
  %v1267 = vpop.f32.mrb[0].mxu0
  %v1268 = vpop.f32.mrb[0].mxu0
  %v1269 = vadd.f32 0.0, %v1268
  %v1270 = vpop.f32.mrb[0].mxu0
  %1271 = vmatprep.mubr.bf16.mxu0 0
  %1272 = vmatmul.mubr.bf16.gmra.mrb[0].mxu0 %v1109
  %v1273 = vpop.f32.mrb[0].mxu0
  %v1274 = vadd.f32 0.0, %v1273
  %v1275 = vpop.f32.mrb[0].mxu0
  %v1276 = vpop.f32.mrb[0].mxu0
  %v1277 = vadd.f32 0.0, %v1276
  %v1278 = vpop.f32.mrb[0].mxu0
  %1279 = vmatprep.mubr.bf16.mxu0 0
  %1280 = vmatmul.mubr.bf16.gmra.mrb[0].mxu0 %v1112
  %v1281 = vpop.f32.mrb[0].mxu0
  %v1282 = vadd.f32 0.0, %v1281
  %v1283 = vpop.f32.mrb[0].mxu0
  %v1284 = vpop.f32.mrb[0].mxu0
  %v1285 = vadd.f32 0.0, %v1284
  %v1286 = vpop.f32.mrb[0].mxu0
  %1287 = vmatprep.mubr.bf16.mxu0 0
  %1288 = vmatmul.mubr.bf16.gmra.mrb[0].mxu0 %v1115
  %v1289 = vpop.f32.mrb[0].mxu0
  %v1290 = vadd.f32 0.0, %v1289
  %v1291 = vpop.f32.mrb[0].mxu0
  %v1292 = vpop.f32.mrb[0].mxu0
  %v1293 = vadd.f32 0.0, %v1292
  %v1294 = vpop.f32.mrb[0].mxu0
  %1295 = vmatprep.mubr.bf16.mxu0 0
  %1296 = vmatmul.mubr.bf16.gmra.mrb[0].mxu0 %v1118
  %v1297 = vpop.f32.mrb[0].mxu0
  %v1298 = vadd.f32 0.0, %v1297
  %v1299 = vpop.f32.mrb[0].mxu0
  %v1300 = vpop.f32.mrb[0].mxu0
  %v1301 = vadd.f32 0.0, %v1300
  %v1302 = vpop.f32.mrb[0].mxu0
  %1303 = vmatprep.mubr.bf16.mxu0 0
  %1304 = vmatmul.mubr.bf16.gmra.mrb[0].mxu0 %v1121
  %v1305 = vpop.f32.mrb[0].mxu0
  %v1306 = vadd.f32 0.0, %v1305
  %v1307 = vpop.f32.mrb[0].mxu0
  %v1308 = vpop.f32.mrb[0].mxu0
  %v1309 = vadd.f32 0.0, %v1308
  %v1310 = vpop.f32.mrb[0].mxu0
  %1311 = vmatprep.mubr.bf16.mxu0 0
  %1312 = vmatmul.mubr.bf16.gmra.mrb[0].mxu0 %v1124
  %v1313 = vpop.f32.mrb[0].mxu0
  %v1314 = vadd.f32 0.0, %v1313
  %v1315 = vpop.f32.mrb[0].mxu0
  %v1316 = vpop.f32.mrb[0].mxu0
  %v1317 = vadd.f32 0.0, %v1316
  %v1318 = vpop.f32.mrb[0].mxu0
  %1319 = vmatprep.mubr.bf16.mxu0 0
  %1320 = vmatmul.mubr.bf16.gmra.mrb[0].mxu0 %v1127
  %v1321 = vpop.f32.mrb[0].mxu0
  %v1322 = vadd.f32 0.0, %v1321
  %v1323 = vpop.f32.mrb[0].mxu0
  %v1324 = vpop.f32.mrb[0].mxu0
  %v1325 = vadd.f32 0.0, %v1324
  %v1326 = vpop.f32.mrb[0].mxu0
  %1327 = vmatprep.mubr.bf16.mxu0 0
  %1328 = vmatmul.mubr.bf16.gmra.mrb[0].mxu0 %v1130
  %v1329 = vpop.f32.mrb[0].mxu0
  %v1330 = vadd.f32 0.0, %v1329
  %v1331 = vpop.f32.mrb[0].mxu0
  %v1332 = vpop.f32.mrb[0].mxu0
  %v1333 = vadd.f32 0.0, %v1332
  %v1334 = vpop.f32.mrb[0].mxu0
  %1335 = vmatprep.mubr.bf16.mxu0 0
  %1336 = vmatmul.mubr.bf16.gmra.mrb[0].mxu0 %v1133
  %v1337 = vpop.f32.mrb[0].mxu0
  %v1338 = vadd.f32 0.0, %v1337
  %v1339 = vpop.f32.mrb[0].mxu0
  %v1340 = vpop.f32.mrb[0].mxu0
  %v1341 = vadd.f32 0.0, %v1340
  %v1342 = vpop.f32.mrb[0].mxu0
  %1343 = vmatprep.mubr.bf16.mxu0 0
  %1344 = vmatmul.mubr.bf16.gmra.mrb[0].mxu0 %v1136
  %v1345 = vpop.f32.mrb[0].mxu0
  %v1346 = vadd.f32 0.0, %v1345
  %v1347 = vpop.f32.mrb[0].mxu0
  %v1348 = vpop.f32.mrb[0].mxu0
  %v1349 = vadd.f32 0.0, %v1348
  %v1350 = vpop.f32.mrb[0].mxu0
  %1351 = vmatprep.mubr.bf16.mxu0 0
  %1352 = vmatmul.mubr.bf16.gmra.mrb[0].mxu0 %v1139
  %v1353 = vpop.f32.mrb[0].mxu0
  %v1354 = vadd.f32 0.0, %v1353
  %v1355 = vpop.f32.mrb[0].mxu0
  %v1356 = vpop.f32.mrb[0].mxu0
  %v1357 = vadd.f32 0.0, %v1356
  %v1358 = vpop.f32.mrb[0].mxu0
  %1359 = vmatprep.mubr.bf16.mxu0 0
  %1360 = vmatmul.mubr.bf16.gmra.mrb[0].mxu0 %v1142
  %v1361 = vpop.f32.mrb[0].mxu0
  %v1362 = vadd.f32 0.0, %v1361
  %v1363 = vpop.f32.mrb[0].mxu0
  %v1364 = vpop.f32.mrb[0].mxu0
  %v1365 = vadd.f32 0.0, %v1364
  %v1366 = vpop.f32.mrb[0].mxu0
  %1367 = vmatprep.mubr.bf16.mxu0 0
  %1368 = vmatmul.mubr.bf16.gmra.mrb[0].mxu0 %v1145
  %v1369 = vpop.f32.mrb[0].mxu0
  %v1370 = vadd.f32 0.0, %v1369
  %v1371 = vpop.f32.mrb[0].mxu0
  %v1372 = vpop.f32.mrb[0].mxu0
  %v1373 = vadd.f32 0.0, %v1372
  %v1374 = vpop.f32.mrb[0].mxu0
  %1375 = vmatprep.mubr.bf16.mxu0 0
  %1376 = vmatmul.mubr.bf16.gmra.mrb[0].mxu0 %v1148
  %v1377 = vpop.f32.mrb[0].mxu0
  %v1378 = vadd.f32 0.0, %v1377
  %v1379 = vpop.f32.mrb[0].mxu0
  %v1380 = vpop.f32.mrb[0].mxu0
  %v1381 = vadd.f32 0.0, %v1380
  %v1382 = vpop.f32.mrb[0].mxu0
  %1383 = vmatprep.mubr.bf16.mxu0 0
  %1384 = vmatmul.mubr.bf16.gmra.mrb[0].mxu0 %v1151
  %v1385 = vpop.f32.mrb[0].mxu0
  %v1386 = vadd.f32 0.0, %v1385
  %v1387 = vpop.f32.mrb[0].mxu0
  %v1388 = vpop.f32.mrb[0].mxu0
  %v1389 = vadd.f32 0.0, %v1388
  %v1390 = vpop.f32.mrb[0].mxu0
  %1391 = vmatprep.mubr.bf16.mxu0 0
  %1392 = vmatmul.mubr.bf16.gmra.mrb[0].mxu0 %v1154
  %v1393 = vpop.f32.mrb[0].mxu0
  %v1394 = vadd.f32 0.0, %v1393
  %v1395 = vpop.f32.mrb[0].mxu0
  %v1396 = vpop.f32.mrb[0].mxu0
  %v1397 = vadd.f32 0.0, %v1396
  %v1398 = vpop.f32.mrb[0].mxu0
  %1399 = vmatprep.mubr.bf16.mxu0 0
  %1400 = vmatmul.mubr.bf16.gmra.mrb[0].mxu0 %v1157
  %v1401 = vpop.f32.mrb[0].mxu0
  %v1402 = vadd.f32 0.0, %v1401
  %v1403 = vpop.f32.mrb[0].mxu0
  %v1404 = vpop.f32.mrb[0].mxu0
  %v1405 = vadd.f32 0.0, %v1404
  %v1406 = vpop.f32.mrb[0].mxu0
  %1407 = vmatprep.mubr.bf16.mxu0 0
  %1408 = vmatmul.mubr.bf16.gmra.mrb[0].mxu0 %v1160
  %v1409 = vpop.f32.mrb[0].mxu0
  %v1410 = vadd.f32 0.0, %v1409
  %v1411 = vpop.f32.mrb[0].mxu0
  %v1412 = vpop.f32.mrb[0].mxu0
  %v1413 = vadd.f32 0.0, %v1412
  %v1414 = vpop.f32.mrb[0].mxu0
  %1415 = vmatprep.mubr.bf16.mxu0 0
  %1416 = vmatmul.mubr.bf16.gmra.mrb[0].mxu0 %v1163
  %v1417 = vpop.f32.mrb[0].mxu0
  %v1418 = vadd.f32 0.0, %v1417
  %v1419 = vpop.f32.mrb[0].mxu0
  %v1420 = vpop.f32.mrb[0].mxu0
  %v1421 = vadd.f32 0.0, %v1420
  %v1422 = vpop.f32.mrb[0].mxu0
  %1423 = vmatprep.mubr.bf16.mxu0 0
  %1424 = vmatmul.mubr.bf16.gmra.mrb[0].mxu0 %v1166
  %v1425 = vpop.f32.mrb[0].mxu0
  %v1426 = vadd.f32 0.0, %v1425
  %v1427 = vpop.f32.mrb[0].mxu0
  %v1428 = vpop.f32.mrb[0].mxu0
  %v1429 = vadd.f32 0.0, %v1428
  %v1430 = vpop.f32.mrb[0].mxu0
  %1431 = vmatprep.mubr.bf16.mxu0 0
  %1432 = vmatmul.mubr.bf16.gmra.mrb[0].mxu0 %v1169
  %v1433 = vpop.f32.mrb[0].mxu0
  %v1434 = vadd.f32 0.0, %v1433
  %v1435 = vpop.f32.mrb[0].mxu0
  %v1436 = vpop.f32.mrb[0].mxu0
  %v1437 = vadd.f32 0.0, %v1436
  %v1438 = vpop.f32.mrb[0].mxu0
  %1439 = vmatprep.mubr.bf16.mxu0 0
  %1440 = vmatmul.mubr.bf16.gmra.mrb[0].mxu0 %v1172
  %v1441 = vpop.f32.mrb[0].mxu0
  %v1442 = vadd.f32 0.0, %v1441
  %v1443 = vpop.f32.mrb[0].mxu0
  %v1444 = vpop.f32.mrb[0].mxu0
  %v1445 = vadd.f32 0.0, %v1444
  %v1446 = vpop.f32.mrb[0].mxu0
  %1447 = vmatprep.mubr.bf16.mxu0 0
  %1448 = vmatmul.mubr.bf16.gmra.mrb[0].mxu0 %v1175
  %v1449 = vpop.f32.mrb[0].mxu0
  %v1450 = vadd.f32 0.0, %v1449
  %v1451 = vpop.f32.mrb[0].mxu0
  %v1452 = vpop.f32.mrb[0].mxu0
  %v1453 = vadd.f32 0.0, %v1452
  %v1454 = vpop.f32.mrb[0].mxu0
  %1455 = vmatprep.mubr.bf16.mxu0 0
  %1456 = vmatmul.mubr.bf16.gmra.mrb[0].mxu0 %v1178
  %v1457 = vpop.f32.mrb[0].mxu0
  %v1458 = vadd.f32 0.0, %v1457
  %v1459 = vpop.f32.mrb[0].mxu0
  %v1460 = vpop.f32.mrb[0].mxu0
  %v1461 = vadd.f32 0.0, %v1460
  %v1462 = vpop.f32.mrb[0].mxu0
  %1463 = vmatprep.mubr.bf16.mxu0 0
  %1464 = vmatmul.mubr.bf16.gmra.mrb[0].mxu0 %v1181
  %v1465 = vpop.f32.mrb[0].mxu0
  %v1466 = vadd.f32 0.0, %v1465
  %v1467 = vpop.f32.mrb[0].mxu0
  %v1468 = vpop.f32.mrb[0].mxu0
  %v1469 = vadd.f32 0.0, %v1468
  %v1470 = vpop.f32.mrb[0].mxu0
  %1471 = vdwg.mxu0
  %v1480 = vunpack.c.l.b16 %v950
  %v1481 = vunpack.c.l.b16 %v951
  %v1482 = vunpack.c.l.b16 %v952
  %v1483 = vunpack.c.l.b16 %v953
  %v1484 = vunpack.c.l.b16 %v954
  %v1485 = vunpack.c.l.b16 %v955
  %v1486 = vunpack.c.l.b16 %v956
  %v1487 = vunpack.c.l.b16 %v957
  %v1488 = vpack.c.b16 %v1481, %v1480
  %v1489 = vpack.c.b16 %v1483, %v1482
  %v1490 = vpack.c.b16 %v1485, %v1484
  %v1491 = vpack.c.b16 %v1487, %v1486
  %v1497 = vsel %vm701, %v918, 0
  %v1500 = vsel %vm701, %v919, 0
  %v1503 = vsel %vm701, %v920, 0
  %v1506 = vsel %vm701, %v921, 0
  %v1509 = vsel %vm701, %v922, 0
  %v1512 = vsel %vm701, %v923, 0
  %v1515 = vsel %vm701, %v924, 0
  %v1518 = vsel %vm701, %v925, 0
  %v1521 = vsel %vm701, %v926, 0
  %v1524 = vsel %vm701, %v927, 0
  %v1527 = vsel %vm701, %v928, 0
  %v1530 = vsel %vm701, %v929, 0
  %v1533 = vsel %vm701, %v930, 0
  %v1536 = vsel %vm701, %v931, 0
  %v1539 = vsel %vm701, %v932, 0
  %v1542 = vsel %vm701, %v933, 0
  %v1545 = vsel %vm701, %v934, 0
  %v1548 = vsel %vm701, %v935, 0
  %v1551 = vsel %vm701, %v936, 0
  %v1554 = vsel %vm701, %v937, 0
  %v1557 = vsel %vm701, %v938, 0
  %v1560 = vsel %vm701, %v939, 0
  %v1563 = vsel %vm701, %v940, 0
  %v1566 = vsel %vm701, %v941, 0
  %v1569 = vsel %vm701, %v942, 0
  %v1572 = vsel %vm701, %v943, 0
  %v1575 = vsel %vm701, %v944, 0
  %v1578 = vsel %vm701, %v945, 0
  %v1581 = vsel %vm701, %v946, 0
  %v1584 = vsel %vm701, %v947, 0
  %v1587 = vsel %vm701, %v948, 0
  %v1590 = vsel %vm701, %v949, 0
  %1592 = vmatprep.subr.bf16.mxu0 0
  %1593 = vmatpush1.bf16.msra.mxu0 %v1488
  %1594 = vmatprep.subr.bf16.mxu0 0
  %1595 = vmatpush1.bf16.msra.mxu0 %v1489
  %1596 = vmatprep.subr.bf16.mxu0 0
  %1597 = vmatpush1.bf16.msra.mxu0 %v1490
  %1598 = vmatprep.subr.bf16.mxu0 0
  %1599 = vmatpush1.bf16.msra.mxu0 %v1491
  %1600 = vmatprep.subr.bf16.mxu0 0
  %1601 = vmatpush1.bf16.msra.mxu0 0
  %1602 = vmatprep.subr.bf16.mxu0 0
  %1603 = vmatpush1.bf16.msra.mxu0 0
  %1604 = vmatprep.subr.bf16.mxu0 0
  %1605 = vmatpush1.bf16.msra.mxu0 0
  %1606 = vmatprep.subr.bf16.mxu0 0
  %1607 = vmatpush1.bf16.msra.mxu0 0
  %1608 = vmatprep.subr.bf16.mxu0 0
  %1609 = vmatpush1.bf16.msra.mxu0 0
  %1610 = vmatprep.subr.bf16.mxu0 0
  %1611 = vmatpush1.bf16.msra.mxu0 0
  %1612 = vmatprep.subr.bf16.mxu0 0
  %1613 = vmatpush1.bf16.msra.mxu0 0
  %1614 = vmatprep.subr.bf16.mxu0 0
  %1615 = vmatpush1.bf16.msra.mxu0 0
  %1616 = vmatprep.subr.bf16.mxu0 0
  %1617 = vmatpush1.bf16.msra.mxu0 0
  %1618 = vmatprep.subr.bf16.mxu0 0
  %1619 = vmatpush1.bf16.msra.mxu0 0
  %1620 = vmatprep.subr.bf16.mxu0 0
  %1621 = vmatpush1.bf16.msra.mxu0 0
  %1622 = vmatprep.subr.bf16.mxu0 0
  %1623 = vmatpush1.bf16.msra.mxu0 0
  %1624 = vmatprep.mubr.bf16.mxu0 0
  %1625 = vmatmul.mubr.bf16.gmra.mrb[0].mxu0 %v1497
  %v1626 = vpop.f32.mrb[0].mxu0
  %v1627 = vadd.f32 %v1218, %v1626
  %v1628 = vpop.f32.mrb[0].mxu0
  %v1629 = vpop.f32.mrb[0].mxu0
  %v1630 = vadd.f32 %v1221, %v1629
  %v1631 = vpop.f32.mrb[0].mxu0
  %1632 = vmatprep.mubr.bf16.mxu0 0
  %1633 = vmatmul.mubr.bf16.gmra.mrb[0].mxu0 %v1500
  %v1634 = vpop.f32.mrb[0].mxu0
  %v1635 = vadd.f32 %v1226, %v1634
  %v1636 = vpop.f32.mrb[0].mxu0
  %v1637 = vpop.f32.mrb[0].mxu0
  %v1638 = vadd.f32 %v1229, %v1637
  %v1639 = vpop.f32.mrb[0].mxu0
  %1640 = vmatprep.mubr.bf16.mxu0 0
  %1641 = vmatmul.mubr.bf16.gmra.mrb[0].mxu0 %v1503
  %v1642 = vpop.f32.mrb[0].mxu0
  %v1643 = vadd.f32 %v1234, %v1642
  %v1644 = vpop.f32.mrb[0].mxu0
  %v1645 = vpop.f32.mrb[0].mxu0
  %v1646 = vadd.f32 %v1237, %v1645
  %v1647 = vpop.f32.mrb[0].mxu0
  %1648 = vmatprep.mubr.bf16.mxu0 0
  %1649 = vmatmul.mubr.bf16.gmra.mrb[0].mxu0 %v1506
  %v1650 = vpop.f32.mrb[0].mxu0
  %v1651 = vadd.f32 %v1242, %v1650
  %v1652 = vpop.f32.mrb[0].mxu0
  %v1653 = vpop.f32.mrb[0].mxu0
  %v1654 = vadd.f32 %v1245, %v1653
  %v1655 = vpop.f32.mrb[0].mxu0
  %1656 = vmatprep.mubr.bf16.mxu0 0
  %1657 = vmatmul.mubr.bf16.gmra.mrb[0].mxu0 %v1509
  %v1658 = vpop.f32.mrb[0].mxu0
  %v1659 = vadd.f32 %v1250, %v1658
  %v1660 = vpop.f32.mrb[0].mxu0
  %v1661 = vpop.f32.mrb[0].mxu0
  %v1662 = vadd.f32 %v1253, %v1661
  %v1663 = vpop.f32.mrb[0].mxu0
  %1664 = vmatprep.mubr.bf16.mxu0 0
  %1665 = vmatmul.mubr.bf16.gmra.mrb[0].mxu0 %v1512
  %v1666 = vpop.f32.mrb[0].mxu0
  %v1667 = vadd.f32 %v1258, %v1666
  %v1668 = vpop.f32.mrb[0].mxu0
  %v1669 = vpop.f32.mrb[0].mxu0
  %v1670 = vadd.f32 %v1261, %v1669
  %v1671 = vpop.f32.mrb[0].mxu0
  %1672 = vmatprep.mubr.bf16.mxu0 0
  %1673 = vmatmul.mubr.bf16.gmra.mrb[0].mxu0 %v1515
  %v1674 = vpop.f32.mrb[0].mxu0
  %v1675 = vadd.f32 %v1266, %v1674
  %v1676 = vpop.f32.mrb[0].mxu0
  %v1677 = vpop.f32.mrb[0].mxu0
  %v1678 = vadd.f32 %v1269, %v1677
  %v1679 = vpop.f32.mrb[0].mxu0
  %1680 = vmatprep.mubr.bf16.mxu0 0
  %1681 = vmatmul.mubr.bf16.gmra.mrb[0].mxu0 %v1518
  %v1682 = vpop.f32.mrb[0].mxu0
  %v1683 = vadd.f32 %v1274, %v1682
  %v1684 = vpop.f32.mrb[0].mxu0
  %v1685 = vpop.f32.mrb[0].mxu0
  %v1686 = vadd.f32 %v1277, %v1685
  %v1687 = vpop.f32.mrb[0].mxu0
  %1688 = vmatprep.mubr.bf16.mxu0 0
  %1689 = vmatmul.mubr.bf16.gmra.mrb[0].mxu0 %v1521
  %v1690 = vpop.f32.mrb[0].mxu0
  %v1691 = vadd.f32 %v1282, %v1690
  %v1692 = vpop.f32.mrb[0].mxu0
  %v1693 = vpop.f32.mrb[0].mxu0
  %v1694 = vadd.f32 %v1285, %v1693
  %v1695 = vpop.f32.mrb[0].mxu0
  %1696 = vmatprep.mubr.bf16.mxu0 0
  %1697 = vmatmul.mubr.bf16.gmra.mrb[0].mxu0 %v1524
  %v1698 = vpop.f32.mrb[0].mxu0
  %v1699 = vadd.f32 %v1290, %v1698
  %v1700 = vpop.f32.mrb[0].mxu0
  %v1701 = vpop.f32.mrb[0].mxu0
  %v1702 = vadd.f32 %v1293, %v1701
  %v1703 = vpop.f32.mrb[0].mxu0
  %1704 = vmatprep.mubr.bf16.mxu0 0
  %1705 = vmatmul.mubr.bf16.gmra.mrb[0].mxu0 %v1527
  %v1706 = vpop.f32.mrb[0].mxu0
  %v1707 = vadd.f32 %v1298, %v1706
  %v1708 = vpop.f32.mrb[0].mxu0
  %v1709 = vpop.f32.mrb[0].mxu0
  %v1710 = vadd.f32 %v1301, %v1709
  %v1711 = vpop.f32.mrb[0].mxu0
  %1712 = vmatprep.mubr.bf16.mxu0 0
  %1713 = vmatmul.mubr.bf16.gmra.mrb[0].mxu0 %v1530
  %v1714 = vpop.f32.mrb[0].mxu0
  %v1715 = vadd.f32 %v1306, %v1714
  %v1716 = vpop.f32.mrb[0].mxu0
  %v1717 = vpop.f32.mrb[0].mxu0
  %v1718 = vadd.f32 %v1309, %v1717
  %v1719 = vpop.f32.mrb[0].mxu0
  %1720 = vmatprep.mubr.bf16.mxu0 0
  %1721 = vmatmul.mubr.bf16.gmra.mrb[0].mxu0 %v1533
  %v1722 = vpop.f32.mrb[0].mxu0
  %v1723 = vadd.f32 %v1314, %v1722
  %v1724 = vpop.f32.mrb[0].mxu0
  %v1725 = vpop.f32.mrb[0].mxu0
  %v1726 = vadd.f32 %v1317, %v1725
  %v1727 = vpop.f32.mrb[0].mxu0
  %1728 = vmatprep.mubr.bf16.mxu0 0
  %1729 = vmatmul.mubr.bf16.gmra.mrb[0].mxu0 %v1536
  %v1730 = vpop.f32.mrb[0].mxu0
  %v1731 = vadd.f32 %v1322, %v1730
  %v1732 = vpop.f32.mrb[0].mxu0
  %v1733 = vpop.f32.mrb[0].mxu0
  %v1734 = vadd.f32 %v1325, %v1733
  %v1735 = vpop.f32.mrb[0].mxu0
  %1736 = vmatprep.mubr.bf16.mxu0 0
  %1737 = vmatmul.mubr.bf16.gmra.mrb[0].mxu0 %v1539
  %v1738 = vpop.f32.mrb[0].mxu0
  %v1739 = vadd.f32 %v1330, %v1738
  %v1740 = vpop.f32.mrb[0].mxu0
  %v1741 = vpop.f32.mrb[0].mxu0
  %v1742 = vadd.f32 %v1333, %v1741
  %v1743 = vpop.f32.mrb[0].mxu0
  %1744 = vmatprep.mubr.bf16.mxu0 0
  %1745 = vmatmul.mubr.bf16.gmra.mrb[0].mxu0 %v1542
  %v1746 = vpop.f32.mrb[0].mxu0
  %v1747 = vadd.f32 %v1338, %v1746
  %v1748 = vpop.f32.mrb[0].mxu0
  %v1749 = vpop.f32.mrb[0].mxu0
  %v1750 = vadd.f32 %v1341, %v1749
  %v1751 = vpop.f32.mrb[0].mxu0
  %1752 = vmatprep.mubr.bf16.mxu0 0
  %1753 = vmatmul.mubr.bf16.gmra.mrb[0].mxu0 %v1545
  %v1754 = vpop.f32.mrb[0].mxu0
  %v1755 = vadd.f32 %v1346, %v1754
  %v1756 = vpop.f32.mrb[0].mxu0
  %v1757 = vpop.f32.mrb[0].mxu0
  %v1758 = vadd.f32 %v1349, %v1757
  %v1759 = vpop.f32.mrb[0].mxu0
  %1760 = vmatprep.mubr.bf16.mxu0 0
  %1761 = vmatmul.mubr.bf16.gmra.mrb[0].mxu0 %v1548
  %v1762 = vpop.f32.mrb[0].mxu0
  %v1763 = vadd.f32 %v1354, %v1762
  %v1764 = vpop.f32.mrb[0].mxu0
  %v1765 = vpop.f32.mrb[0].mxu0
  %v1766 = vadd.f32 %v1357, %v1765
  %v1767 = vpop.f32.mrb[0].mxu0
  %1768 = vmatprep.mubr.bf16.mxu0 0
  %1769 = vmatmul.mubr.bf16.gmra.mrb[0].mxu0 %v1551
  %v1770 = vpop.f32.mrb[0].mxu0
  %v1771 = vadd.f32 %v1362, %v1770
  %v1772 = vpop.f32.mrb[0].mxu0
  %v1773 = vpop.f32.mrb[0].mxu0
  %v1774 = vadd.f32 %v1365, %v1773
  %v1775 = vpop.f32.mrb[0].mxu0
  %1776 = vmatprep.mubr.bf16.mxu0 0
  %1777 = vmatmul.mubr.bf16.gmra.mrb[0].mxu0 %v1554
  %v1778 = vpop.f32.mrb[0].mxu0
  %v1779 = vadd.f32 %v1370, %v1778
  %v1780 = vpop.f32.mrb[0].mxu0
  %v1781 = vpop.f32.mrb[0].mxu0
  %v1782 = vadd.f32 %v1373, %v1781
  %v1783 = vpop.f32.mrb[0].mxu0
  %1784 = vmatprep.mubr.bf16.mxu0 0
  %1785 = vmatmul.mubr.bf16.gmra.mrb[0].mxu0 %v1557
  %v1786 = vpop.f32.mrb[0].mxu0
  %v1787 = vadd.f32 %v1378, %v1786
  %v1788 = vpop.f32.mrb[0].mxu0
  %v1789 = vpop.f32.mrb[0].mxu0
  %v1790 = vadd.f32 %v1381, %v1789
  %v1791 = vpop.f32.mrb[0].mxu0
  %1792 = vmatprep.mubr.bf16.mxu0 0
  %1793 = vmatmul.mubr.bf16.gmra.mrb[0].mxu0 %v1560
  %v1794 = vpop.f32.mrb[0].mxu0
  %v1795 = vadd.f32 %v1386, %v1794
  %v1796 = vpop.f32.mrb[0].mxu0
  %v1797 = vpop.f32.mrb[0].mxu0
  %v1798 = vadd.f32 %v1389, %v1797
  %v1799 = vpop.f32.mrb[0].mxu0
  %1800 = vmatprep.mubr.bf16.mxu0 0
  %1801 = vmatmul.mubr.bf16.gmra.mrb[0].mxu0 %v1563
  %v1802 = vpop.f32.mrb[0].mxu0
  %v1803 = vadd.f32 %v1394, %v1802
  %v1804 = vpop.f32.mrb[0].mxu0
  %v1805 = vpop.f32.mrb[0].mxu0
  %v1806 = vadd.f32 %v1397, %v1805
  %v1807 = vpop.f32.mrb[0].mxu0
  %1808 = vmatprep.mubr.bf16.mxu0 0
  %1809 = vmatmul.mubr.bf16.gmra.mrb[0].mxu0 %v1566
  %v1810 = vpop.f32.mrb[0].mxu0
  %v1811 = vadd.f32 %v1402, %v1810
  %v1812 = vpop.f32.mrb[0].mxu0
  %v1813 = vpop.f32.mrb[0].mxu0
  %v1814 = vadd.f32 %v1405, %v1813
  %v1815 = vpop.f32.mrb[0].mxu0
  %1816 = vmatprep.mubr.bf16.mxu0 0
  %1817 = vmatmul.mubr.bf16.gmra.mrb[0].mxu0 %v1569
  %v1818 = vpop.f32.mrb[0].mxu0
  %v1819 = vadd.f32 %v1410, %v1818
  %v1820 = vpop.f32.mrb[0].mxu0
  %v1821 = vpop.f32.mrb[0].mxu0
  %v1822 = vadd.f32 %v1413, %v1821
  %v1823 = vpop.f32.mrb[0].mxu0
  %1824 = vmatprep.mubr.bf16.mxu0 0
  %1825 = vmatmul.mubr.bf16.gmra.mrb[0].mxu0 %v1572
  %v1826 = vpop.f32.mrb[0].mxu0
  %v1827 = vadd.f32 %v1418, %v1826
  %v1828 = vpop.f32.mrb[0].mxu0
  %v1829 = vpop.f32.mrb[0].mxu0
  %v1830 = vadd.f32 %v1421, %v1829
  %v1831 = vpop.f32.mrb[0].mxu0
  %1832 = vmatprep.mubr.bf16.mxu0 0
  %1833 = vmatmul.mubr.bf16.gmra.mrb[0].mxu0 %v1575
  %v1834 = vpop.f32.mrb[0].mxu0
  %v1835 = vadd.f32 %v1426, %v1834
  %v1836 = vpop.f32.mrb[0].mxu0
  %v1837 = vpop.f32.mrb[0].mxu0
  %v1838 = vadd.f32 %v1429, %v1837
  %v1839 = vpop.f32.mrb[0].mxu0
  %1840 = vmatprep.mubr.bf16.mxu0 0
  %1841 = vmatmul.mubr.bf16.gmra.mrb[0].mxu0 %v1578
  %v1842 = vpop.f32.mrb[0].mxu0
  %v1843 = vadd.f32 %v1434, %v1842
  %v1844 = vpop.f32.mrb[0].mxu0
  %v1845 = vpop.f32.mrb[0].mxu0
  %v1846 = vadd.f32 %v1437, %v1845
  %v1847 = vpop.f32.mrb[0].mxu0
  %1848 = vmatprep.mubr.bf16.mxu0 0
  %1849 = vmatmul.mubr.bf16.gmra.mrb[0].mxu0 %v1581
  %v1850 = vpop.f32.mrb[0].mxu0
  %v1851 = vadd.f32 %v1442, %v1850
  %v1852 = vpop.f32.mrb[0].mxu0
  %v1853 = vpop.f32.mrb[0].mxu0
  %v1854 = vadd.f32 %v1445, %v1853
  %v1855 = vpop.f32.mrb[0].mxu0
  %1856 = vmatprep.mubr.bf16.mxu0 0
  %1857 = vmatmul.mubr.bf16.gmra.mrb[0].mxu0 %v1584
  %v1858 = vpop.f32.mrb[0].mxu0
  %v1859 = vadd.f32 %v1450, %v1858
  %v1860 = vpop.f32.mrb[0].mxu0
  %v1861 = vpop.f32.mrb[0].mxu0
  %v1862 = vadd.f32 %v1453, %v1861
  %v1863 = vpop.f32.mrb[0].mxu0
  %1864 = vmatprep.mubr.bf16.mxu0 0
  %1865 = vmatmul.mubr.bf16.gmra.mrb[0].mxu0 %v1587
  %v1866 = vpop.f32.mrb[0].mxu0
  %v1867 = vadd.f32 %v1458, %v1866
  %v1868 = vpop.f32.mrb[0].mxu0
  %v1869 = vpop.f32.mrb[0].mxu0
  %v1870 = vadd.f32 %v1461, %v1869
  %v1871 = vpop.f32.mrb[0].mxu0
  %1872 = vmatprep.mubr.bf16.mxu0 0
  %1873 = vmatmul.mubr.bf16.gmra.mrb[0].mxu0 %v1590
  %v1874 = vpop.f32.mrb[0].mxu0
  %v1875 = vadd.f32 %v1466, %v1874
  %v1876 = vpop.f32.mrb[0].mxu0
  %v1877 = vpop.f32.mrb[0].mxu0
  %v1878 = vadd.f32 %v1469, %v1877
  %v1879 = vpop.f32.mrb[0].mxu0
  %1880 = vdwg.mxu0
  %v1881 = vld [vmem:[#allocation2 + $0x2] sm:$0xff]
  %v1882 = vld [vmem:[#allocation2 + $0xa] sm:$0xff]
  %v1883 = vld [vmem:[#allocation2 + $0x1a] sm:$0xff]
  %v1884 = vld [vmem:[#allocation2 + $0x22] sm:$0xff]
  %v1885 = vld [vmem:[#allocation2 + $0x32] sm:$0xff]
  %v1886 = vld [vmem:[#allocation2 + $0x3a] sm:$0xff]
  %v1887 = vld [vmem:[#allocation2 + $0x4a] sm:$0xff]
  %v1888 = vld [vmem:[#allocation2 + $0x52] sm:$0xff]
  %v1889 = vld [vmem:[#allocation2 + $0x62] sm:$0xff]
  %v1890 = vld [vmem:[#allocation2 + $0x6a] sm:$0xff]
  %v1891 = vld [vmem:[#allocation2 + $0x7a] sm:$0xff]
  %v1892 = vld [vmem:[#allocation2 + $0x82] sm:$0xff]
  %v1893 = vld [vmem:[#allocation2 + $0x92] sm:$0xff]
  %v1894 = vld [vmem:[#allocation2 + $0x9a] sm:$0xff]
  %v1895 = vld [vmem:[#allocation2 + $0xaa] sm:$0xff]
  %v1896 = vld [vmem:[#allocation2 + $0xb2] sm:$0xff]
  %v1897 = vld [vmem:[#allocation2 + $0xc2] sm:$0xff]
  %v1898 = vld [vmem:[#allocation2 + $0xca] sm:$0xff]
  %v1899 = vld [vmem:[#allocation2 + $0xda] sm:$0xff]
  %v1900 = vld [vmem:[#allocation2 + $0xe2] sm:$0xff]
  %v1901 = vld [vmem:[#allocation2 + $0xf2] sm:$0xff]
  %v1902 = vld [vmem:[#allocation2 + $0xfa] sm:$0xff]
  %v1903 = vld [vmem:[#allocation2 + $0x10a] sm:$0xff]
  %v1904 = vld [vmem:[#allocation2 + $0x112] sm:$0xff]
  %v1905 = vld [vmem:[#allocation2 + $0x122] sm:$0xff]
  %v1906 = vld [vmem:[#allocation2 + $0x12a] sm:$0xff]
  %v1907 = vld [vmem:[#allocation2 + $0x13a] sm:$0xff]
  %v1908 = vld [vmem:[#allocation2 + $0x142] sm:$0xff]
  %v1909 = vld [vmem:[#allocation2 + $0x152] sm:$0xff]
  %v1910 = vld [vmem:[#allocation2 + $0x15a] sm:$0xff]
  %v1911 = vld [vmem:[#allocation2 + $0x16a] sm:$0xff]
  %v1912 = vld [vmem:[#allocation2 + $0x172] sm:$0xff]
  %v1913 = vld [vmem:[#allocation2 + $0x1b2] sm:$0xff]
  %v1914 = vld [vmem:[#allocation2 + $0x1ba] sm:$0xff]
  %v1915 = vld [vmem:[#allocation2 + $0x1ca] sm:$0xff]
  %v1916 = vld [vmem:[#allocation2 + $0x1d2] sm:$0xff]
  %v1917 = vld [vmem:[#allocation2 + $0x1e2] sm:$0xff]
  %v1918 = vld [vmem:[#allocation2 + $0x1ea] sm:$0xff]
  %v1919 = vld [vmem:[#allocation2 + $0x1fa] sm:$0xff]
  %v1920 = vld [vmem:[#allocation2 + $0x202] sm:$0xff]
  %v1921 = vld [vmem:[#allocation2 + $0x212] sm:$0xff]
  %v1922 = vld [vmem:[#allocation2 + $0x21a] sm:$0xff]
  %v1923 = vld [vmem:[#allocation2 + $0x22a] sm:$0xff]
  %v1924 = vld [vmem:[#allocation2 + $0x232] sm:$0xff]
  %v1925 = vld [vmem:[#allocation2 + $0x242] sm:$0xff]
  %v1926 = vld [vmem:[#allocation2 + $0x24a] sm:$0xff]
  %v1927 = vld [vmem:[#allocation2 + $0x25a] sm:$0xff]
  %v1928 = vld [vmem:[#allocation2 + $0x262] sm:$0xff]
  %v1929 = vld [vmem:[#allocation2 + $0x272] sm:$0xff]
  %v1930 = vld [vmem:[#allocation2 + $0x27a] sm:$0xff]
  %v1931 = vld [vmem:[#allocation2 + $0x28a] sm:$0xff]
  %v1932 = vld [vmem:[#allocation2 + $0x292] sm:$0xff]
  %v1933 = vld [vmem:[#allocation2 + $0x2a2] sm:$0xff]
  %v1934 = vld [vmem:[#allocation2 + $0x2aa] sm:$0xff]
  %v1935 = vld [vmem:[#allocation2 + $0x2ba] sm:$0xff]
  %v1936 = vld [vmem:[#allocation2 + $0x2c2] sm:$0xff]
  %v1937 = vld [vmem:[#allocation2 + $0x2d2] sm:$0xff]
  %v1938 = vld [vmem:[#allocation2 + $0x2da] sm:$0xff]
  %v1939 = vld [vmem:[#allocation2 + $0x2ea] sm:$0xff]
  %v1940 = vld [vmem:[#allocation2 + $0x2f2] sm:$0xff]
  %v1941 = vld [vmem:[#allocation2 + $0x302] sm:$0xff]
  %v1942 = vld [vmem:[#allocation2 + $0x30a] sm:$0xff]
  %v1943 = vld [vmem:[#allocation2 + $0x31a] sm:$0xff]
  %v1944 = vld [vmem:[#allocation2 + $0x322] sm:$0xff]
  %v1945 = vpack.c.bf16 %v1882, %v1881
  %v1946 = vpack.c.bf16 %v1884, %v1883
  %v1947 = vpack.c.bf16 %v1886, %v1885
  %v1948 = vpack.c.bf16 %v1888, %v1887
  %v1949 = vpack.c.bf16 %v1890, %v1889
  %v1950 = vpack.c.bf16 %v1892, %v1891
  %v1951 = vpack.c.bf16 %v1894, %v1893
  %v1952 = vpack.c.bf16 %v1896, %v1895
  %v1953 = vpack.c.bf16 %v1898, %v1897
  %v1954 = vpack.c.bf16 %v1900, %v1899
  %v1955 = vpack.c.bf16 %v1902, %v1901
  %v1956 = vpack.c.bf16 %v1904, %v1903
  %v1957 = vpack.c.bf16 %v1906, %v1905
  %v1958 = vpack.c.bf16 %v1908, %v1907
  %v1959 = vpack.c.bf16 %v1910, %v1909
  %v1960 = vpack.c.bf16 %v1912, %v1911
  %v1961 = vpack.c.bf16 %v1914, %v1913
  %v1962 = vpack.c.bf16 %v1916, %v1915
  %v1963 = vpack.c.bf16 %v1918, %v1917
  %v1964 = vpack.c.bf16 %v1920, %v1919
  %v1965 = vpack.c.bf16 %v1922, %v1921
  %v1966 = vpack.c.bf16 %v1924, %v1923
  %v1967 = vpack.c.bf16 %v1926, %v1925
  %v1968 = vpack.c.bf16 %v1928, %v1927
  %v1969 = vpack.c.bf16 %v1930, %v1929
  %v1970 = vpack.c.bf16 %v1932, %v1931
  %v1971 = vpack.c.bf16 %v1934, %v1933
  %v1972 = vpack.c.bf16 %v1936, %v1935
  %v1973 = vpack.c.bf16 %v1938, %v1937
  %v1974 = vpack.c.bf16 %v1940, %v1939
  %v1975 = vpack.c.bf16 %v1942, %v1941
  %v1976 = vpack.c.bf16 %v1944, %v1943
  %s1977 = scalar_lea.vmem %s3, 64
  %v1978 = vld [vmem:[%s1977] sm:$0xf]
  %v1979 = vld [vmem:[%s1977 + $0x4] sm:$0xf]
  %v1980 = vld [vmem:[%s1977 + $0x8] sm:$0xf]
  %v1981 = vld [vmem:[%s1977 + $0xc] sm:$0xf]
  %v1982 = vld [vmem:[%s1977 + $0x10] sm:$0xf]
  %v1983 = vld [vmem:[%s1977 + $0x14] sm:$0xf]
  %v1984 = vld [vmem:[%s1977 + $0x18] sm:$0xf]
  %v1985 = vld [vmem:[%s1977 + $0x1c] sm:$0xf]
  %v1994 = vunpack.c.l.b16 %v1978
  %v1995 = vunpack.c.l.b16 %v1979
  %v1996 = vunpack.c.l.b16 %v1980
  %v1997 = vunpack.c.l.b16 %v1981
  %v1998 = vunpack.c.l.b16 %v1982
  %v1999 = vunpack.c.l.b16 %v1983
  %v2000 = vunpack.c.l.b16 %v1984
  %v2001 = vunpack.c.l.b16 %v1985
  %v2002 = vpack.c.b16 %v1995, %v1994
  %v2003 = vpack.c.b16 %v1997, %v1996
  %v2004 = vpack.c.b16 %v1999, %v1998
  %v2005 = vpack.c.b16 %v2001, %v2000
  %v2011 = vsel %vm701, %v1945, 0
  %v2014 = vsel %vm701, %v1946, 0
  %v2017 = vsel %vm701, %v1947, 0
  %v2020 = vsel %vm701, %v1948, 0
  %v2023 = vsel %vm701, %v1949, 0
  %v2026 = vsel %vm701, %v1950, 0
  %v2029 = vsel %vm701, %v1951, 0
  %v2032 = vsel %vm701, %v1952, 0
  %v2035 = vsel %vm701, %v1953, 0
  %v2038 = vsel %vm701, %v1954, 0
  %v2041 = vsel %vm701, %v1955, 0
  %v2044 = vsel %vm701, %v1956, 0
  %v2047 = vsel %vm701, %v1957, 0
  %v2050 = vsel %vm701, %v1958, 0
  %v2053 = vsel %vm701, %v1959, 0
  %v2056 = vsel %vm701, %v1960, 0
  %v2059 = vsel %vm701, %v1961, 0
  %v2062 = vsel %vm701, %v1962, 0
  %v2065 = vsel %vm701, %v1963, 0
  %v2068 = vsel %vm701, %v1964, 0
  %v2071 = vsel %vm701, %v1965, 0
  %v2074 = vsel %vm701, %v1966, 0
  %v2077 = vsel %vm701, %v1967, 0
  %v2080 = vsel %vm701, %v1968, 0
  %v2083 = vsel %vm701, %v1969, 0
  %v2086 = vsel %vm701, %v1970, 0
  %v2089 = vsel %vm701, %v1971, 0
  %v2092 = vsel %vm701, %v1972, 0
  %v2095 = vsel %vm701, %v1973, 0
  %v2098 = vsel %vm701, %v1974, 0
  %v2101 = vsel %vm701, %v1975, 0
  %v2104 = vsel %vm701, %v1976, 0
  %2106 = vmatprep.subr.bf16.mxu0 0
  %2107 = vmatpush1.bf16.msra.mxu0 %v2002
  %2108 = vmatprep.subr.bf16.mxu0 0
  %2109 = vmatpush1.bf16.msra.mxu0 %v2003
  %2110 = vmatprep.subr.bf16.mxu0 0
  %2111 = vmatpush1.bf16.msra.mxu0 %v2004
  %2112 = vmatprep.subr.bf16.mxu0 0
  %2113 = vmatpush1.bf16.msra.mxu0 %v2005
  %2114 = vmatprep.subr.bf16.mxu0 0
  %2115 = vmatpush1.bf16.msra.mxu0 0
  %2116 = vmatprep.subr.bf16.mxu0 0
  %2117 = vmatpush1.bf16.msra.mxu0 0
  %2118 = vmatprep.subr.bf16.mxu0 0
  %2119 = vmatpush1.bf16.msra.mxu0 0
  %2120 = vmatprep.subr.bf16.mxu0 0
  %2121 = vmatpush1.bf16.msra.mxu0 0
  %2122 = vmatprep.subr.bf16.mxu0 0
  %2123 = vmatpush1.bf16.msra.mxu0 0
  %2124 = vmatprep.subr.bf16.mxu0 0
  %2125 = vmatpush1.bf16.msra.mxu0 0
  %2126 = vmatprep.subr.bf16.mxu0 0
  %2127 = vmatpush1.bf16.msra.mxu0 0
  %2128 = vmatprep.subr.bf16.mxu0 0
  %2129 = vmatpush1.bf16.msra.mxu0 0
  %2130 = vmatprep.subr.bf16.mxu0 0
  %2131 = vmatpush1.bf16.msra.mxu0 0
  %2132 = vmatprep.subr.bf16.mxu0 0
  %2133 = vmatpush1.bf16.msra.mxu0 0
  %2134 = vmatprep.subr.bf16.mxu0 0
  %2135 = vmatpush1.bf16.msra.mxu0 0
  %2136 = vmatprep.subr.bf16.mxu0 0
  %2137 = vmatpush1.bf16.msra.mxu0 0
  %2138 = vmatprep.mubr.bf16.mxu0 0
  %2139 = vmatmul.mubr.bf16.gmra.mrb[0].mxu0 %v2011
  %v2140 = vpop.f32.mrb[0].mxu0
  %v2141 = vadd.f32 0.0, %v2140
  %v2142 = vpop.f32.mrb[0].mxu0
  %v2143 = vpop.f32.mrb[0].mxu0
  %v2144 = vadd.f32 0.0, %v2143
  %v2145 = vpop.f32.mrb[0].mxu0
  %2146 = vmatprep.mubr.bf16.mxu0 0
  %2147 = vmatmul.mubr.bf16.gmra.mrb[0].mxu0 %v2014
  %v2148 = vpop.f32.mrb[0].mxu0
  %v2149 = vadd.f32 0.0, %v2148
  %v2150 = vpop.f32.mrb[0].mxu0
  %v2151 = vpop.f32.mrb[0].mxu0
  %v2152 = vadd.f32 0.0, %v2151
  %v2153 = vpop.f32.mrb[0].mxu0
  %2154 = vmatprep.mubr.bf16.mxu0 0
  %2155 = vmatmul.mubr.bf16.gmra.mrb[0].mxu0 %v2017
  %v2156 = vpop.f32.mrb[0].mxu0
  %v2157 = vadd.f32 0.0, %v2156
  %v2158 = vpop.f32.mrb[0].mxu0
  %v2159 = vpop.f32.mrb[0].mxu0
  %v2160 = vadd.f32 0.0, %v2159
  %v2161 = vpop.f32.mrb[0].mxu0
  %2162 = vmatprep.mubr.bf16.mxu0 0
  %2163 = vmatmul.mubr.bf16.gmra.mrb[0].mxu0 %v2020
  %v2164 = vpop.f32.mrb[0].mxu0
  %v2165 = vadd.f32 0.0, %v2164
  %v2166 = vpop.f32.mrb[0].mxu0
  %v2167 = vpop.f32.mrb[0].mxu0
  %v2168 = vadd.f32 0.0, %v2167
  %v2169 = vpop.f32.mrb[0].mxu0
  %2170 = vmatprep.mubr.bf16.mxu0 0
  %2171 = vmatmul.mubr.bf16.gmra.mrb[0].mxu0 %v2023
  %v2172 = vpop.f32.mrb[0].mxu0
  %v2173 = vadd.f32 0.0, %v2172
  %v2174 = vpop.f32.mrb[0].mxu0
  %v2175 = vpop.f32.mrb[0].mxu0
  %v2176 = vadd.f32 0.0, %v2175
  %v2177 = vpop.f32.mrb[0].mxu0
  %2178 = vmatprep.mubr.bf16.mxu0 0
  %2179 = vmatmul.mubr.bf16.gmra.mrb[0].mxu0 %v2026
  %v2180 = vpop.f32.mrb[0].mxu0
  %v2181 = vadd.f32 0.0, %v2180
  %v2182 = vpop.f32.mrb[0].mxu0
  %v2183 = vpop.f32.mrb[0].mxu0
  %v2184 = vadd.f32 0.0, %v2183
  %v2185 = vpop.f32.mrb[0].mxu0
  %2186 = vmatprep.mubr.bf16.mxu0 0
  %2187 = vmatmul.mubr.bf16.gmra.mrb[0].mxu0 %v2029
  %v2188 = vpop.f32.mrb[0].mxu0
  %v2189 = vadd.f32 0.0, %v2188
  %v2190 = vpop.f32.mrb[0].mxu0
  %v2191 = vpop.f32.mrb[0].mxu0
  %v2192 = vadd.f32 0.0, %v2191
  %v2193 = vpop.f32.mrb[0].mxu0
  %2194 = vmatprep.mubr.bf16.mxu0 0
  %2195 = vmatmul.mubr.bf16.gmra.mrb[0].mxu0 %v2032
  %v2196 = vpop.f32.mrb[0].mxu0
  %v2197 = vadd.f32 0.0, %v2196
  %v2198 = vpop.f32.mrb[0].mxu0
  %v2199 = vpop.f32.mrb[0].mxu0
  %v2200 = vadd.f32 0.0, %v2199
  %v2201 = vpop.f32.mrb[0].mxu0
  %2202 = vmatprep.mubr.bf16.mxu0 0
  %2203 = vmatmul.mubr.bf16.gmra.mrb[0].mxu0 %v2035
  %v2204 = vpop.f32.mrb[0].mxu0
  %v2205 = vadd.f32 0.0, %v2204
  %v2206 = vpop.f32.mrb[0].mxu0
  %v2207 = vpop.f32.mrb[0].mxu0
  %v2208 = vadd.f32 0.0, %v2207
  %v2209 = vpop.f32.mrb[0].mxu0
  %2210 = vmatprep.mubr.bf16.mxu0 0
  %2211 = vmatmul.mubr.bf16.gmra.mrb[0].mxu0 %v2038
  %v2212 = vpop.f32.mrb[0].mxu0
  %v2213 = vadd.f32 0.0, %v2212
  %v2214 = vpop.f32.mrb[0].mxu0
  %v2215 = vpop.f32.mrb[0].mxu0
  %v2216 = vadd.f32 0.0, %v2215
  %v2217 = vpop.f32.mrb[0].mxu0
  %2218 = vmatprep.mubr.bf16.mxu0 0
  %2219 = vmatmul.mubr.bf16.gmra.mrb[0].mxu0 %v2041
  %v2220 = vpop.f32.mrb[0].mxu0
  %v2221 = vadd.f32 0.0, %v2220
  %v2222 = vpop.f32.mrb[0].mxu0
  %v2223 = vpop.f32.mrb[0].mxu0
  %v2224 = vadd.f32 0.0, %v2223
  %v2225 = vpop.f32.mrb[0].mxu0
  %2226 = vmatprep.mubr.bf16.mxu0 0
  %2227 = vmatmul.mubr.bf16.gmra.mrb[0].mxu0 %v2044
  %v2228 = vpop.f32.mrb[0].mxu0
  %v2229 = vadd.f32 0.0, %v2228
  %v2230 = vpop.f32.mrb[0].mxu0
  %v2231 = vpop.f32.mrb[0].mxu0
  %v2232 = vadd.f32 0.0, %v2231
  %v2233 = vpop.f32.mrb[0].mxu0
  %2234 = vmatprep.mubr.bf16.mxu0 0
  %2235 = vmatmul.mubr.bf16.gmra.mrb[0].mxu0 %v2047
  %v2236 = vpop.f32.mrb[0].mxu0
  %v2237 = vadd.f32 0.0, %v2236
  %v2238 = vpop.f32.mrb[0].mxu0
  %v2239 = vpop.f32.mrb[0].mxu0
  %v2240 = vadd.f32 0.0, %v2239
  %v2241 = vpop.f32.mrb[0].mxu0
  %2242 = vmatprep.mubr.bf16.mxu0 0
  %2243 = vmatmul.mubr.bf16.gmra.mrb[0].mxu0 %v2050
  %v2244 = vpop.f32.mrb[0].mxu0
  %v2245 = vadd.f32 0.0, %v2244
  %v2246 = vpop.f32.mrb[0].mxu0
  %v2247 = vpop.f32.mrb[0].mxu0
  %v2248 = vadd.f32 0.0, %v2247
  %v2249 = vpop.f32.mrb[0].mxu0
  %2250 = vmatprep.mubr.bf16.mxu0 0
  %2251 = vmatmul.mubr.bf16.gmra.mrb[0].mxu0 %v2053
  %v2252 = vpop.f32.mrb[0].mxu0
  %v2253 = vadd.f32 0.0, %v2252
  %v2254 = vpop.f32.mrb[0].mxu0
  %v2255 = vpop.f32.mrb[0].mxu0
  %v2256 = vadd.f32 0.0, %v2255
  %v2257 = vpop.f32.mrb[0].mxu0
  %2258 = vmatprep.mubr.bf16.mxu0 0
  %2259 = vmatmul.mubr.bf16.gmra.mrb[0].mxu0 %v2056
  %v2260 = vpop.f32.mrb[0].mxu0
  %v2261 = vadd.f32 0.0, %v2260
  %v2262 = vpop.f32.mrb[0].mxu0
  %v2263 = vpop.f32.mrb[0].mxu0
  %v2264 = vadd.f32 0.0, %v2263
  %v2265 = vpop.f32.mrb[0].mxu0
  %2266 = vmatprep.mubr.bf16.mxu0 0
  %2267 = vmatmul.mubr.bf16.gmra.mrb[0].mxu0 %v2059
  %v2268 = vpop.f32.mrb[0].mxu0
  %v2269 = vadd.f32 0.0, %v2268
  %v2270 = vpop.f32.mrb[0].mxu0
  %v2271 = vpop.f32.mrb[0].mxu0
  %v2272 = vadd.f32 0.0, %v2271
  %v2273 = vpop.f32.mrb[0].mxu0
  %2274 = vmatprep.mubr.bf16.mxu0 0
  %2275 = vmatmul.mubr.bf16.gmra.mrb[0].mxu0 %v2062
  %v2276 = vpop.f32.mrb[0].mxu0
  %v2277 = vadd.f32 0.0, %v2276
  %v2278 = vpop.f32.mrb[0].mxu0
  %v2279 = vpop.f32.mrb[0].mxu0
  %v2280 = vadd.f32 0.0, %v2279
  %v2281 = vpop.f32.mrb[0].mxu0
  %2282 = vmatprep.mubr.bf16.mxu0 0
  %2283 = vmatmul.mubr.bf16.gmra.mrb[0].mxu0 %v2065
  %v2284 = vpop.f32.mrb[0].mxu0
  %v2285 = vadd.f32 0.0, %v2284
  %v2286 = vpop.f32.mrb[0].mxu0
  %v2287 = vpop.f32.mrb[0].mxu0
  %v2288 = vadd.f32 0.0, %v2287
  %v2289 = vpop.f32.mrb[0].mxu0
  %2290 = vmatprep.mubr.bf16.mxu0 0
  %2291 = vmatmul.mubr.bf16.gmra.mrb[0].mxu0 %v2068
  %v2292 = vpop.f32.mrb[0].mxu0
  %v2293 = vadd.f32 0.0, %v2292
  %v2294 = vpop.f32.mrb[0].mxu0
  %v2295 = vpop.f32.mrb[0].mxu0
  %v2296 = vadd.f32 0.0, %v2295
  %v2297 = vpop.f32.mrb[0].mxu0
  %2298 = vmatprep.mubr.bf16.mxu0 0
  %2299 = vmatmul.mubr.bf16.gmra.mrb[0].mxu0 %v2071
  %v2300 = vpop.f32.mrb[0].mxu0
  %v2301 = vadd.f32 0.0, %v2300
  %v2302 = vpop.f32.mrb[0].mxu0
  %v2303 = vpop.f32.mrb[0].mxu0
  %v2304 = vadd.f32 0.0, %v2303
  %v2305 = vpop.f32.mrb[0].mxu0
  %2306 = vmatprep.mubr.bf16.mxu0 0
  %2307 = vmatmul.mubr.bf16.gmra.mrb[0].mxu0 %v2074
  %v2308 = vpop.f32.mrb[0].mxu0
  %v2309 = vadd.f32 0.0, %v2308
  %v2310 = vpop.f32.mrb[0].mxu0
  %v2311 = vpop.f32.mrb[0].mxu0
  %v2312 = vadd.f32 0.0, %v2311
  %v2313 = vpop.f32.mrb[0].mxu0
  %2314 = vmatprep.mubr.bf16.mxu0 0
  %2315 = vmatmul.mubr.bf16.gmra.mrb[0].mxu0 %v2077
  %v2316 = vpop.f32.mrb[0].mxu0
  %v2317 = vadd.f32 0.0, %v2316
  %v2318 = vpop.f32.mrb[0].mxu0
  %v2319 = vpop.f32.mrb[0].mxu0
  %v2320 = vadd.f32 0.0, %v2319
  %v2321 = vpop.f32.mrb[0].mxu0
  %2322 = vmatprep.mubr.bf16.mxu0 0
  %2323 = vmatmul.mubr.bf16.gmra.mrb[0].mxu0 %v2080
  %v2324 = vpop.f32.mrb[0].mxu0
  %v2325 = vadd.f32 0.0, %v2324
  %v2326 = vpop.f32.mrb[0].mxu0
  %v2327 = vpop.f32.mrb[0].mxu0
  %v2328 = vadd.f32 0.0, %v2327
  %v2329 = vpop.f32.mrb[0].mxu0
  %2330 = vmatprep.mubr.bf16.mxu0 0
  %2331 = vmatmul.mubr.bf16.gmra.mrb[0].mxu0 %v2083
  %v2332 = vpop.f32.mrb[0].mxu0
  %v2333 = vadd.f32 0.0, %v2332
  %v2334 = vpop.f32.mrb[0].mxu0
  %v2335 = vpop.f32.mrb[0].mxu0
  %v2336 = vadd.f32 0.0, %v2335
  %v2337 = vpop.f32.mrb[0].mxu0
  %2338 = vmatprep.mubr.bf16.mxu0 0
  %2339 = vmatmul.mubr.bf16.gmra.mrb[0].mxu0 %v2086
  %v2340 = vpop.f32.mrb[0].mxu0
  %v2341 = vadd.f32 0.0, %v2340
  %v2342 = vpop.f32.mrb[0].mxu0
  %v2343 = vpop.f32.mrb[0].mxu0
  %v2344 = vadd.f32 0.0, %v2343
  %v2345 = vpop.f32.mrb[0].mxu0
  %2346 = vmatprep.mubr.bf16.mxu0 0
  %2347 = vmatmul.mubr.bf16.gmra.mrb[0].mxu0 %v2089
  %v2348 = vpop.f32.mrb[0].mxu0
  %v2349 = vadd.f32 0.0, %v2348
  %v2350 = vpop.f32.mrb[0].mxu0
  %v2351 = vpop.f32.mrb[0].mxu0
  %v2352 = vadd.f32 0.0, %v2351
  %v2353 = vpop.f32.mrb[0].mxu0
  %2354 = vmatprep.mubr.bf16.mxu0 0
  %2355 = vmatmul.mubr.bf16.gmra.mrb[0].mxu0 %v2092
  %v2356 = vpop.f32.mrb[0].mxu0
  %v2357 = vadd.f32 0.0, %v2356
  %v2358 = vpop.f32.mrb[0].mxu0
  %v2359 = vpop.f32.mrb[0].mxu0
  %v2360 = vadd.f32 0.0, %v2359
  %v2361 = vpop.f32.mrb[0].mxu0
  %2362 = vmatprep.mubr.bf16.mxu0 0
  %2363 = vmatmul.mubr.bf16.gmra.mrb[0].mxu0 %v2095
  %v2364 = vpop.f32.mrb[0].mxu0
  %v2365 = vadd.f32 0.0, %v2364
  %v2366 = vpop.f32.mrb[0].mxu0
  %v2367 = vpop.f32.mrb[0].mxu0
  %v2368 = vadd.f32 0.0, %v2367
  %v2369 = vpop.f32.mrb[0].mxu0
  %2370 = vmatprep.mubr.bf16.mxu0 0
  %2371 = vmatmul.mubr.bf16.gmra.mrb[0].mxu0 %v2098
  %v2372 = vpop.f32.mrb[0].mxu0
  %v2373 = vadd.f32 0.0, %v2372
  %v2374 = vpop.f32.mrb[0].mxu0
  %v2375 = vpop.f32.mrb[0].mxu0
  %v2376 = vadd.f32 0.0, %v2375
  %v2377 = vpop.f32.mrb[0].mxu0
  %2378 = vmatprep.mubr.bf16.mxu0 0
  %2379 = vmatmul.mubr.bf16.gmra.mrb[0].mxu0 %v2101
  %v2380 = vpop.f32.mrb[0].mxu0
  %v2381 = vadd.f32 0.0, %v2380
  %v2382 = vpop.f32.mrb[0].mxu0
  %v2383 = vpop.f32.mrb[0].mxu0
  %v2384 = vadd.f32 0.0, %v2383
  %v2385 = vpop.f32.mrb[0].mxu0
  %2386 = vmatprep.mubr.bf16.mxu0 0
  %2387 = vmatmul.mubr.bf16.gmra.mrb[0].mxu0 %v2104
  %v2388 = vpop.f32.mrb[0].mxu0
  %v2389 = vadd.f32 0.0, %v2388
  %v2390 = vpop.f32.mrb[0].mxu0
  %v2391 = vpop.f32.mrb[0].mxu0
  %v2392 = vadd.f32 0.0, %v2391
  %v2393 = vpop.f32.mrb[0].mxu0
  %2394 = vdwg.mxu0
  %v2395 = vadd.f32 %v1627, %v2141
  %v2396 = vadd.f32 %v1630, %v2144
  %v2397 = vadd.f32 %v1635, %v2149
  %v2398 = vadd.f32 %v1638, %v2152
  %v2399 = vadd.f32 %v1643, %v2157
  %v2400 = vadd.f32 %v1646, %v2160
  %v2401 = vadd.f32 %v1651, %v2165
  %v2402 = vadd.f32 %v1654, %v2168
  %v2403 = vadd.f32 %v1659, %v2173
  %v2404 = vadd.f32 %v1662, %v2176
  %v2405 = vadd.f32 %v1667, %v2181
  %v2406 = vadd.f32 %v1670, %v2184
  %v2407 = vadd.f32 %v1675, %v2189
  %v2408 = vadd.f32 %v1678, %v2192
  %v2409 = vadd.f32 %v1683, %v2197
  %v2410 = vadd.f32 %v1686, %v2200
  %v2411 = vadd.f32 %v1691, %v2205
  %v2412 = vadd.f32 %v1694, %v2208
  %v2413 = vadd.f32 %v1699, %v2213
  %v2414 = vadd.f32 %v1702, %v2216
  %v2415 = vadd.f32 %v1707, %v2221
  %v2416 = vadd.f32 %v1710, %v2224
  %v2417 = vadd.f32 %v1715, %v2229
  %v2418 = vadd.f32 %v1718, %v2232
  %v2419 = vadd.f32 %v1723, %v2237
  %v2420 = vadd.f32 %v1726, %v2240
  %v2421 = vadd.f32 %v1731, %v2245
  %v2422 = vadd.f32 %v1734, %v2248
  %v2423 = vadd.f32 %v1739, %v2253
  %v2424 = vadd.f32 %v1742, %v2256
  %v2425 = vadd.f32 %v1747, %v2261
  %v2426 = vadd.f32 %v1750, %v2264
  %v2427 = vadd.f32 %v1755, %v2269
  %v2428 = vadd.f32 %v1758, %v2272
  %v2429 = vadd.f32 %v1763, %v2277
  %v2430 = vadd.f32 %v1766, %v2280
  %v2431 = vadd.f32 %v1771, %v2285
  %v2432 = vadd.f32 %v1774, %v2288
  %v2433 = vadd.f32 %v1779, %v2293
  %v2434 = vadd.f32 %v1782, %v2296
  %v2435 = vadd.f32 %v1787, %v2301
  %v2436 = vadd.f32 %v1790, %v2304
  %v2437 = vadd.f32 %v1795, %v2309
  %v2438 = vadd.f32 %v1798, %v2312
  %v2439 = vadd.f32 %v1803, %v2317
  %v2440 = vadd.f32 %v1806, %v2320
  %v2441 = vadd.f32 %v1811, %v2325
  %v2442 = vadd.f32 %v1814, %v2328
  %v2443 = vadd.f32 %v1819, %v2333
  %v2444 = vadd.f32 %v1822, %v2336
  %v2445 = vadd.f32 %v1827, %v2341
  %v2446 = vadd.f32 %v1830, %v2344
  %v2447 = vadd.f32 %v1835, %v2349
  %v2448 = vadd.f32 %v1838, %v2352
  %v2449 = vadd.f32 %v1843, %v2357
  %v2450 = vadd.f32 %v1846, %v2360
  %v2451 = vadd.f32 %v1851, %v2365
  %v2452 = vadd.f32 %v1854, %v2368
  %v2453 = vadd.f32 %v1859, %v2373
  %v2454 = vadd.f32 %v1862, %v2376
  %v2455 = vadd.f32 %v1867, %v2381
  %v2456 = vadd.f32 %v1870, %v2384
  %v2457 = vadd.f32 %v1875, %v2389
  %v2458 = vadd.f32 %v1878, %v2392
  %v2459 = vld [vmem:[%s789] sm:$0xff]
  %v2460 = vld [vmem:[%s789 + $0x8] sm:$0xff]
  %v2461 = vld [vmem:[%s789 + $0x18] sm:$0xff]
  %v2462 = vld [vmem:[%s789 + $0x20] sm:$0xff]
  %v2463 = vld [vmem:[%s789 + $0x30] sm:$0xff]
  %v2464 = vld [vmem:[%s789 + $0x38] sm:$0xff]
  %v2465 = vld [vmem:[%s789 + $0x48] sm:$0xff]
  %v2466 = vld [vmem:[%s789 + $0x50] sm:$0xff]
  %v2467 = vld [vmem:[%s789 + $0x60] sm:$0xff]
  %v2468 = vld [vmem:[%s789 + $0x68] sm:$0xff]
  %v2469 = vld [vmem:[%s789 + $0x78] sm:$0xff]
  %v2470 = vld [vmem:[%s789 + $0x80] sm:$0xff]
  %v2471 = vld [vmem:[%s789 + $0x90] sm:$0xff]
  %v2472 = vld [vmem:[%s789 + $0x98] sm:$0xff]
  %v2473 = vld [vmem:[%s789 + $0xa8] sm:$0xff]
  %v2474 = vld [vmem:[%s789 + $0xb0] sm:$0xff]
  %v2475 = vld [vmem:[%s789 + $0xc0] sm:$0xff]
  %v2476 = vld [vmem:[%s789 + $0xc8] sm:$0xff]
  %v2477 = vld [vmem:[%s789 + $0xd8] sm:$0xff]
  %v2478 = vld [vmem:[%s789 + $0xe0] sm:$0xff]
  %v2479 = vld [vmem:[%s789 + $0xf0] sm:$0xff]
  %v2480 = vld [vmem:[%s789 + $0xf8] sm:$0xff]
  %v2481 = vld [vmem:[%s789 + $0x108] sm:$0xff]
  %v2482 = vld [vmem:[%s789 + $0x110] sm:$0xff]
  %v2483 = vld [vmem:[%s789 + $0x120] sm:$0xff]
  %v2484 = vld [vmem:[%s789 + $0x128] sm:$0xff]
  %v2485 = vld [vmem:[%s789 + $0x138] sm:$0xff]
  %v2486 = vld [vmem:[%s789 + $0x140] sm:$0xff]
  %v2487 = vld [vmem:[%s789 + $0x150] sm:$0xff]
  %v2488 = vld [vmem:[%s789 + $0x158] sm:$0xff]
  %v2489 = vld [vmem:[%s789 + $0x168] sm:$0xff]
  %v2490 = vld [vmem:[%s789 + $0x170] sm:$0xff]
  %v2491 = vld [vmem:[%s789 + $0x1b0] sm:$0xff]
  %v2492 = vld [vmem:[%s789 + $0x1b8] sm:$0xff]
  %v2493 = vld [vmem:[%s789 + $0x1c8] sm:$0xff]
  %v2494 = vld [vmem:[%s789 + $0x1d0] sm:$0xff]
  %v2495 = vld [vmem:[%s789 + $0x1e0] sm:$0xff]
  %v2496 = vld [vmem:[%s789 + $0x1e8] sm:$0xff]
  %v2497 = vld [vmem:[%s789 + $0x1f8] sm:$0xff]
  %v2498 = vld [vmem:[%s789 + $0x200] sm:$0xff]
  %v2499 = vld [vmem:[%s789 + $0x210] sm:$0xff]
  %v2500 = vld [vmem:[%s789 + $0x218] sm:$0xff]
  %v2501 = vld [vmem:[%s789 + $0x228] sm:$0xff]
  %v2502 = vld [vmem:[%s789 + $0x230] sm:$0xff]
  %v2503 = vld [vmem:[%s789 + $0x240] sm:$0xff]
  %v2504 = vld [vmem:[%s789 + $0x248] sm:$0xff]
  %v2505 = vld [vmem:[%s789 + $0x258] sm:$0xff]
  %v2506 = vld [vmem:[%s789 + $0x260] sm:$0xff]
  %v2507 = vld [vmem:[%s789 + $0x270] sm:$0xff]
  %v2508 = vld [vmem:[%s789 + $0x278] sm:$0xff]
  %v2509 = vld [vmem:[%s789 + $0x288] sm:$0xff]
  %v2510 = vld [vmem:[%s789 + $0x290] sm:$0xff]
  %v2511 = vld [vmem:[%s789 + $0x2a0] sm:$0xff]
  %v2512 = vld [vmem:[%s789 + $0x2a8] sm:$0xff]
  %v2513 = vld [vmem:[%s789 + $0x2b8] sm:$0xff]
  %v2514 = vld [vmem:[%s789 + $0x2c0] sm:$0xff]
  %v2515 = vld [vmem:[%s789 + $0x2d0] sm:$0xff]
  %v2516 = vld [vmem:[%s789 + $0x2d8] sm:$0xff]
  %v2517 = vld [vmem:[%s789 + $0x2e8] sm:$0xff]
  %v2518 = vld [vmem:[%s789 + $0x2f0] sm:$0xff]
  %v2519 = vld [vmem:[%s789 + $0x300] sm:$0xff]
  %v2520 = vld [vmem:[%s789 + $0x308] sm:$0xff]
  %v2521 = vld [vmem:[%s789 + $0x318] sm:$0xff]
  %v2522 = vld [vmem:[%s789 + $0x320] sm:$0xff]
  %v2523 = vpack.c.bf16 %v2460, %v2459
  %v2524 = vpack.c.bf16 %v2462, %v2461
  %v2525 = vpack.c.bf16 %v2464, %v2463
  %v2526 = vpack.c.bf16 %v2466, %v2465
  %v2527 = vpack.c.bf16 %v2468, %v2467
  %v2528 = vpack.c.bf16 %v2470, %v2469
  %v2529 = vpack.c.bf16 %v2472, %v2471
  %v2530 = vpack.c.bf16 %v2474, %v2473
  %v2531 = vpack.c.bf16 %v2476, %v2475
  %v2532 = vpack.c.bf16 %v2478, %v2477
  %v2533 = vpack.c.bf16 %v2480, %v2479
  %v2534 = vpack.c.bf16 %v2482, %v2481
  %v2535 = vpack.c.bf16 %v2484, %v2483
  %v2536 = vpack.c.bf16 %v2486, %v2485
  %v2537 = vpack.c.bf16 %v2488, %v2487
  %v2538 = vpack.c.bf16 %v2490, %v2489
  %v2539 = vpack.c.bf16 %v2492, %v2491
  %v2540 = vpack.c.bf16 %v2494, %v2493
  %v2541 = vpack.c.bf16 %v2496, %v2495
  %v2542 = vpack.c.bf16 %v2498, %v2497
  %v2543 = vpack.c.bf16 %v2500, %v2499
  %v2544 = vpack.c.bf16 %v2502, %v2501
  %v2545 = vpack.c.bf16 %v2504, %v2503
  %v2546 = vpack.c.bf16 %v2506, %v2505
  %v2547 = vpack.c.bf16 %v2508, %v2507
  %v2548 = vpack.c.bf16 %v2510, %v2509
  %v2549 = vpack.c.bf16 %v2512, %v2511
  %v2550 = vpack.c.bf16 %v2514, %v2513
  %v2551 = vpack.c.bf16 %v2516, %v2515
  %v2552 = vpack.c.bf16 %v2518, %v2517
  %v2553 = vpack.c.bf16 %v2520, %v2519
  %v2554 = vpack.c.bf16 %v2522, %v2521
  %s2555 = scalar_lea.vmem %s3, 96
  %v2556 = vld [vmem:[%s2555] sm:$0xf]
  %v2557 = vld [vmem:[%s2555 + $0x4] sm:$0xf]
  %v2558 = vld [vmem:[%s2555 + $0x8] sm:$0xf]
  %v2559 = vld [vmem:[%s2555 + $0xc] sm:$0xf]
  %v2560 = vld [vmem:[%s2555 + $0x10] sm:$0xf]
  %v2561 = vld [vmem:[%s2555 + $0x14] sm:$0xf]
  %v2562 = vld [vmem:[%s2555 + $0x18] sm:$0xf]
  %v2563 = vld [vmem:[%s2555 + $0x1c] sm:$0xf]
  %v2572 = vunpack.c.l.b16 %v2556
  %v2573 = vunpack.c.l.b16 %v2557
  %v2574 = vunpack.c.l.b16 %v2558
  %v2575 = vunpack.c.l.b16 %v2559
  %v2576 = vunpack.c.l.b16 %v2560
  %v2577 = vunpack.c.l.b16 %v2561
  %v2578 = vunpack.c.l.b16 %v2562
  %v2579 = vunpack.c.l.b16 %v2563
  %v2580 = vpack.c.b16 %v2573, %v2572
  %v2581 = vpack.c.b16 %v2575, %v2574
  %v2582 = vpack.c.b16 %v2577, %v2576
  %v2583 = vpack.c.b16 %v2579, %v2578
  %v2589 = vsel %vm701, %v2523, 0
  %v2592 = vsel %vm701, %v2524, 0
  %v2595 = vsel %vm701, %v2525, 0
  %v2598 = vsel %vm701, %v2526, 0
  %v2601 = vsel %vm701, %v2527, 0
  %v2604 = vsel %vm701, %v2528, 0
  %v2607 = vsel %vm701, %v2529, 0
  %v2610 = vsel %vm701, %v2530, 0
  %v2613 = vsel %vm701, %v2531, 0
  %v2616 = vsel %vm701, %v2532, 0
  %v2619 = vsel %vm701, %v2533, 0
  %v2622 = vsel %vm701, %v2534, 0
  %v2625 = vsel %vm701, %v2535, 0
  %v2628 = vsel %vm701, %v2536, 0
  %v2631 = vsel %vm701, %v2537, 0
  %v2634 = vsel %vm701, %v2538, 0
  %v2637 = vsel %vm701, %v2539, 0
  %v2640 = vsel %vm701, %v2540, 0
  %v2643 = vsel %vm701, %v2541, 0
  %v2646 = vsel %vm701, %v2542, 0
  %v2649 = vsel %vm701, %v2543, 0
  %v2652 = vsel %vm701, %v2544, 0
  %v2655 = vsel %vm701, %v2545, 0
  %v2658 = vsel %vm701, %v2546, 0
  %v2661 = vsel %vm701, %v2547, 0
  %v2664 = vsel %vm701, %v2548, 0
  %v2667 = vsel %vm701, %v2549, 0
  %v2670 = vsel %vm701, %v2550, 0
  %v2673 = vsel %vm701, %v2551, 0
  %v2676 = vsel %vm701, %v2552, 0
  %v2679 = vsel %vm701, %v2553, 0
  %v2682 = vsel %vm701, %v2554, 0
  %2684 = vmatprep.subr.bf16.mxu0 0
  %2685 = vmatpush1.bf16.msra.mxu0 %v2580
  %2686 = vmatprep.subr.bf16.mxu0 0
  %2687 = vmatpush1.bf16.msra.mxu0 %v2581
  %2688 = vmatprep.subr.bf16.mxu0 0
  %2689 = vmatpush1.bf16.msra.mxu0 %v2582
  %2690 = vmatprep.subr.bf16.mxu0 0
  %2691 = vmatpush1.bf16.msra.mxu0 %v2583
  %2692 = vmatprep.subr.bf16.mxu0 0
  %2693 = vmatpush1.bf16.msra.mxu0 0
  %2694 = vmatprep.subr.bf16.mxu0 0
  %2695 = vmatpush1.bf16.msra.mxu0 0
  %2696 = vmatprep.subr.bf16.mxu0 0
  %2697 = vmatpush1.bf16.msra.mxu0 0
  %2698 = vmatprep.subr.bf16.mxu0 0
  %2699 = vmatpush1.bf16.msra.mxu0 0
  %2700 = vmatprep.subr.bf16.mxu0 0
  %2701 = vmatpush1.bf16.msra.mxu0 0
  %2702 = vmatprep.subr.bf16.mxu0 0
  %2703 = vmatpush1.bf16.msra.mxu0 0
  %2704 = vmatprep.subr.bf16.mxu0 0
  %2705 = vmatpush1.bf16.msra.mxu0 0
  %2706 = vmatprep.subr.bf16.mxu0 0
  %2707 = vmatpush1.bf16.msra.mxu0 0
  %2708 = vmatprep.subr.bf16.mxu0 0
  %2709 = vmatpush1.bf16.msra.mxu0 0
  %2710 = vmatprep.subr.bf16.mxu0 0
  %2711 = vmatpush1.bf16.msra.mxu0 0
  %2712 = vmatprep.subr.bf16.mxu0 0
  %2713 = vmatpush1.bf16.msra.mxu0 0
  %2714 = vmatprep.subr.bf16.mxu0 0
  %2715 = vmatpush1.bf16.msra.mxu0 0
  %2716 = vmatprep.mubr.bf16.mxu0 0
  %2717 = vmatmul.mubr.bf16.gmra.mrb[0].mxu0 %v2589
  %v2718 = vpop.f32.mrb[0].mxu0
  %v2719 = vadd.f32 0.0, %v2718
  %v2720 = vpop.f32.mrb[0].mxu0
  %v2721 = vpop.f32.mrb[0].mxu0
  %v2722 = vadd.f32 0.0, %v2721
  %v2723 = vpop.f32.mrb[0].mxu0
  %2724 = vmatprep.mubr.bf16.mxu0 0
  %2725 = vmatmul.mubr.bf16.gmra.mrb[0].mxu0 %v2592
  %v2726 = vpop.f32.mrb[0].mxu0
  %v2727 = vadd.f32 0.0, %v2726
  %v2728 = vpop.f32.mrb[0].mxu0
  %v2729 = vpop.f32.mrb[0].mxu0
  %v2730 = vadd.f32 0.0, %v2729
  %v2731 = vpop.f32.mrb[0].mxu0
  %2732 = vmatprep.mubr.bf16.mxu0 0
  %2733 = vmatmul.mubr.bf16.gmra.mrb[0].mxu0 %v2595
  %v2734 = vpop.f32.mrb[0].mxu0
  %v2735 = vadd.f32 0.0, %v2734
  %v2736 = vpop.f32.mrb[0].mxu0
  %v2737 = vpop.f32.mrb[0].mxu0
  %v2738 = vadd.f32 0.0, %v2737
  %v2739 = vpop.f32.mrb[0].mxu0
  %2740 = vmatprep.mubr.bf16.mxu0 0
  %2741 = vmatmul.mubr.bf16.gmra.mrb[0].mxu0 %v2598
  %v2742 = vpop.f32.mrb[0].mxu0
  %v2743 = vadd.f32 0.0, %v2742
  %v2744 = vpop.f32.mrb[0].mxu0
  %v2745 = vpop.f32.mrb[0].mxu0
  %v2746 = vadd.f32 0.0, %v2745
  %v2747 = vpop.f32.mrb[0].mxu0
  %2748 = vmatprep.mubr.bf16.mxu0 0
  %2749 = vmatmul.mubr.bf16.gmra.mrb[0].mxu0 %v2601
  %v2750 = vpop.f32.mrb[0].mxu0
  %v2751 = vadd.f32 0.0, %v2750
  %v2752 = vpop.f32.mrb[0].mxu0
  %v2753 = vpop.f32.mrb[0].mxu0
  %v2754 = vadd.f32 0.0, %v2753
  %v2755 = vpop.f32.mrb[0].mxu0
  %2756 = vmatprep.mubr.bf16.mxu0 0
  %2757 = vmatmul.mubr.bf16.gmra.mrb[0].mxu0 %v2604
  %v2758 = vpop.f32.mrb[0].mxu0
  %v2759 = vadd.f32 0.0, %v2758
  %v2760 = vpop.f32.mrb[0].mxu0
  %v2761 = vpop.f32.mrb[0].mxu0
  %v2762 = vadd.f32 0.0, %v2761
  %v2763 = vpop.f32.mrb[0].mxu0
  %2764 = vmatprep.mubr.bf16.mxu0 0
  %2765 = vmatmul.mubr.bf16.gmra.mrb[0].mxu0 %v2607
  %v2766 = vpop.f32.mrb[0].mxu0
  %v2767 = vadd.f32 0.0, %v2766
  %v2768 = vpop.f32.mrb[0].mxu0
  %v2769 = vpop.f32.mrb[0].mxu0
  %v2770 = vadd.f32 0.0, %v2769
  %v2771 = vpop.f32.mrb[0].mxu0
  %2772 = vmatprep.mubr.bf16.mxu0 0
  %2773 = vmatmul.mubr.bf16.gmra.mrb[0].mxu0 %v2610
  %v2774 = vpop.f32.mrb[0].mxu0
  %v2775 = vadd.f32 0.0, %v2774
  %v2776 = vpop.f32.mrb[0].mxu0
  %v2777 = vpop.f32.mrb[0].mxu0
  %v2778 = vadd.f32 0.0, %v2777
  %v2779 = vpop.f32.mrb[0].mxu0
  %2780 = vmatprep.mubr.bf16.mxu0 0
  %2781 = vmatmul.mubr.bf16.gmra.mrb[0].mxu0 %v2613
  %v2782 = vpop.f32.mrb[0].mxu0
  %v2783 = vadd.f32 0.0, %v2782
  %v2784 = vpop.f32.mrb[0].mxu0
  %v2785 = vpop.f32.mrb[0].mxu0
  %v2786 = vadd.f32 0.0, %v2785
  %v2787 = vpop.f32.mrb[0].mxu0
  %2788 = vmatprep.mubr.bf16.mxu0 0
  %2789 = vmatmul.mubr.bf16.gmra.mrb[0].mxu0 %v2616
  %v2790 = vpop.f32.mrb[0].mxu0
  %v2791 = vadd.f32 0.0, %v2790
  %v2792 = vpop.f32.mrb[0].mxu0
  %v2793 = vpop.f32.mrb[0].mxu0
  %v2794 = vadd.f32 0.0, %v2793
  %v2795 = vpop.f32.mrb[0].mxu0
  %2796 = vmatprep.mubr.bf16.mxu0 0
  %2797 = vmatmul.mubr.bf16.gmra.mrb[0].mxu0 %v2619
  %v2798 = vpop.f32.mrb[0].mxu0
  %v2799 = vadd.f32 0.0, %v2798
  %v2800 = vpop.f32.mrb[0].mxu0
  %v2801 = vpop.f32.mrb[0].mxu0
  %v2802 = vadd.f32 0.0, %v2801
  %v2803 = vpop.f32.mrb[0].mxu0
  %2804 = vmatprep.mubr.bf16.mxu0 0
  %2805 = vmatmul.mubr.bf16.gmra.mrb[0].mxu0 %v2622
  %v2806 = vpop.f32.mrb[0].mxu0
  %v2807 = vadd.f32 0.0, %v2806
  %v2808 = vpop.f32.mrb[0].mxu0
  %v2809 = vpop.f32.mrb[0].mxu0
  %v2810 = vadd.f32 0.0, %v2809
  %v2811 = vpop.f32.mrb[0].mxu0
  %2812 = vmatprep.mubr.bf16.mxu0 0
  %2813 = vmatmul.mubr.bf16.gmra.mrb[0].mxu0 %v2625
  %v2814 = vpop.f32.mrb[0].mxu0
  %v2815 = vadd.f32 0.0, %v2814
  %v2816 = vpop.f32.mrb[0].mxu0
  %v2817 = vpop.f32.mrb[0].mxu0
  %v2818 = vadd.f32 0.0, %v2817
  %v2819 = vpop.f32.mrb[0].mxu0
  %2820 = vmatprep.mubr.bf16.mxu0 0
  %2821 = vmatmul.mubr.bf16.gmra.mrb[0].mxu0 %v2628
  %v2822 = vpop.f32.mrb[0].mxu0
  %v2823 = vadd.f32 0.0, %v2822
  %v2824 = vpop.f32.mrb[0].mxu0
  %v2825 = vpop.f32.mrb[0].mxu0
  %v2826 = vadd.f32 0.0, %v2825
  %v2827 = vpop.f32.mrb[0].mxu0
  %2828 = vmatprep.mubr.bf16.mxu0 0
  %2829 = vmatmul.mubr.bf16.gmra.mrb[0].mxu0 %v2631
  %v2830 = vpop.f32.mrb[0].mxu0
  %v2831 = vadd.f32 0.0, %v2830
  %v2832 = vpop.f32.mrb[0].mxu0
  %v2833 = vpop.f32.mrb[0].mxu0
  %v2834 = vadd.f32 0.0, %v2833
  %v2835 = vpop.f32.mrb[0].mxu0
  %2836 = vmatprep.mubr.bf16.mxu0 0
  %2837 = vmatmul.mubr.bf16.gmra.mrb[0].mxu0 %v2634
  %v2838 = vpop.f32.mrb[0].mxu0
  %v2839 = vadd.f32 0.0, %v2838
  %v2840 = vpop.f32.mrb[0].mxu0
  %v2841 = vpop.f32.mrb[0].mxu0
  %v2842 = vadd.f32 0.0, %v2841
  %v2843 = vpop.f32.mrb[0].mxu0
  %2844 = vmatprep.mubr.bf16.mxu0 0
  %2845 = vmatmul.mubr.bf16.gmra.mrb[0].mxu0 %v2637
  %v2846 = vpop.f32.mrb[0].mxu0
  %v2847 = vadd.f32 0.0, %v2846
  %v2848 = vpop.f32.mrb[0].mxu0
  %v2849 = vpop.f32.mrb[0].mxu0
  %v2850 = vadd.f32 0.0, %v2849
  %v2851 = vpop.f32.mrb[0].mxu0
  %2852 = vmatprep.mubr.bf16.mxu0 0
  %2853 = vmatmul.mubr.bf16.gmra.mrb[0].mxu0 %v2640
  %v2854 = vpop.f32.mrb[0].mxu0
  %v2855 = vadd.f32 0.0, %v2854
  %v2856 = vpop.f32.mrb[0].mxu0
  %v2857 = vpop.f32.mrb[0].mxu0
  %v2858 = vadd.f32 0.0, %v2857
  %v2859 = vpop.f32.mrb[0].mxu0
  %2860 = vmatprep.mubr.bf16.mxu0 0
  %2861 = vmatmul.mubr.bf16.gmra.mrb[0].mxu0 %v2643
  %v2862 = vpop.f32.mrb[0].mxu0
  %v2863 = vadd.f32 0.0, %v2862
  %v2864 = vpop.f32.mrb[0].mxu0
  %v2865 = vpop.f32.mrb[0].mxu0
  %v2866 = vadd.f32 0.0, %v2865
  %v2867 = vpop.f32.mrb[0].mxu0
  %2868 = vmatprep.mubr.bf16.mxu0 0
  %2869 = vmatmul.mubr.bf16.gmra.mrb[0].mxu0 %v2646
  %v2870 = vpop.f32.mrb[0].mxu0
  %v2871 = vadd.f32 0.0, %v2870
  %v2872 = vpop.f32.mrb[0].mxu0
  %v2873 = vpop.f32.mrb[0].mxu0
  %v2874 = vadd.f32 0.0, %v2873
  %v2875 = vpop.f32.mrb[0].mxu0
  %2876 = vmatprep.mubr.bf16.mxu0 0
  %2877 = vmatmul.mubr.bf16.gmra.mrb[0].mxu0 %v2649
  %v2878 = vpop.f32.mrb[0].mxu0
  %v2879 = vadd.f32 0.0, %v2878
  %v2880 = vpop.f32.mrb[0].mxu0
  %v2881 = vpop.f32.mrb[0].mxu0
  %v2882 = vadd.f32 0.0, %v2881
  %v2883 = vpop.f32.mrb[0].mxu0
  %2884 = vmatprep.mubr.bf16.mxu0 0
  %2885 = vmatmul.mubr.bf16.gmra.mrb[0].mxu0 %v2652
  %v2886 = vpop.f32.mrb[0].mxu0
  %v2887 = vadd.f32 0.0, %v2886
  %v2888 = vpop.f32.mrb[0].mxu0
  %v2889 = vpop.f32.mrb[0].mxu0
  %v2890 = vadd.f32 0.0, %v2889
  %v2891 = vpop.f32.mrb[0].mxu0
  %2892 = vmatprep.mubr.bf16.mxu0 0
  %2893 = vmatmul.mubr.bf16.gmra.mrb[0].mxu0 %v2655
  %v2894 = vpop.f32.mrb[0].mxu0
  %v2895 = vadd.f32 0.0, %v2894
  %v2896 = vpop.f32.mrb[0].mxu0
  %v2897 = vpop.f32.mrb[0].mxu0
  %v2898 = vadd.f32 0.0, %v2897
  %v2899 = vpop.f32.mrb[0].mxu0
  %2900 = vmatprep.mubr.bf16.mxu0 0
  %2901 = vmatmul.mubr.bf16.gmra.mrb[0].mxu0 %v2658
  %v2902 = vpop.f32.mrb[0].mxu0
  %v2903 = vadd.f32 0.0, %v2902
  %v2904 = vpop.f32.mrb[0].mxu0
  %v2905 = vpop.f32.mrb[0].mxu0
  %v2906 = vadd.f32 0.0, %v2905
  %v2907 = vpop.f32.mrb[0].mxu0
  %2908 = vmatprep.mubr.bf16.mxu0 0
  %2909 = vmatmul.mubr.bf16.gmra.mrb[0].mxu0 %v2661
  %v2910 = vpop.f32.mrb[0].mxu0
  %v2911 = vadd.f32 0.0, %v2910
  %v2912 = vpop.f32.mrb[0].mxu0
  %v2913 = vpop.f32.mrb[0].mxu0
  %v2914 = vadd.f32 0.0, %v2913
  %v2915 = vpop.f32.mrb[0].mxu0
  %2916 = vmatprep.mubr.bf16.mxu0 0
  %2917 = vmatmul.mubr.bf16.gmra.mrb[0].mxu0 %v2664
  %v2918 = vpop.f32.mrb[0].mxu0
  %v2919 = vadd.f32 0.0, %v2918
  %v2920 = vpop.f32.mrb[0].mxu0
  %v2921 = vpop.f32.mrb[0].mxu0
  %v2922 = vadd.f32 0.0, %v2921
  %v2923 = vpop.f32.mrb[0].mxu0
  %2924 = vmatprep.mubr.bf16.mxu0 0
  %2925 = vmatmul.mubr.bf16.gmra.mrb[0].mxu0 %v2667
  %v2926 = vpop.f32.mrb[0].mxu0
  %v2927 = vadd.f32 0.0, %v2926
  %v2928 = vpop.f32.mrb[0].mxu0
  %v2929 = vpop.f32.mrb[0].mxu0
  %v2930 = vadd.f32 0.0, %v2929
  %v2931 = vpop.f32.mrb[0].mxu0
  %2932 = vmatprep.mubr.bf16.mxu0 0
  %2933 = vmatmul.mubr.bf16.gmra.mrb[0].mxu0 %v2670
  %v2934 = vpop.f32.mrb[0].mxu0
  %v2935 = vadd.f32 0.0, %v2934
  %v2936 = vpop.f32.mrb[0].mxu0
  %v2937 = vpop.f32.mrb[0].mxu0
  %v2938 = vadd.f32 0.0, %v2937
  %v2939 = vpop.f32.mrb[0].mxu0
  %2940 = vmatprep.mubr.bf16.mxu0 0
  %2941 = vmatmul.mubr.bf16.gmra.mrb[0].mxu0 %v2673
  %v2942 = vpop.f32.mrb[0].mxu0
  %v2943 = vadd.f32 0.0, %v2942
  %v2944 = vpop.f32.mrb[0].mxu0
  %v2945 = vpop.f32.mrb[0].mxu0
  %v2946 = vadd.f32 0.0, %v2945
  %v2947 = vpop.f32.mrb[0].mxu0
  %2948 = vmatprep.mubr.bf16.mxu0 0
  %2949 = vmatmul.mubr.bf16.gmra.mrb[0].mxu0 %v2676
  %v2950 = vpop.f32.mrb[0].mxu0
  %v2951 = vadd.f32 0.0, %v2950
  %v2952 = vpop.f32.mrb[0].mxu0
  %v2953 = vpop.f32.mrb[0].mxu0
  %v2954 = vadd.f32 0.0, %v2953
  %v2955 = vpop.f32.mrb[0].mxu0
  %2956 = vmatprep.mubr.bf16.mxu0 0
  %2957 = vmatmul.mubr.bf16.gmra.mrb[0].mxu0 %v2679
  %v2958 = vpop.f32.mrb[0].mxu0
  %v2959 = vadd.f32 0.0, %v2958
  %v2960 = vpop.f32.mrb[0].mxu0
  %v2961 = vpop.f32.mrb[0].mxu0
  %v2962 = vadd.f32 0.0, %v2961
  %v2963 = vpop.f32.mrb[0].mxu0
  %2964 = vmatprep.mubr.bf16.mxu0 0
  %2965 = vmatmul.mubr.bf16.gmra.mrb[0].mxu0 %v2682
  %v2966 = vpop.f32.mrb[0].mxu0
  %v2967 = vadd.f32 0.0, %v2966
  %v2968 = vpop.f32.mrb[0].mxu0
  %v2969 = vpop.f32.mrb[0].mxu0
  %v2970 = vadd.f32 0.0, %v2969
  %v2971 = vpop.f32.mrb[0].mxu0
  %2972 = vdwg.mxu0
  %v2973 = vadd.f32 %v2395, %v2719
  %v2974 = vadd.f32 %v2396, %v2722
  %v2975 = vadd.f32 %v2397, %v2727
  %v2976 = vadd.f32 %v2398, %v2730
  %v2977 = vadd.f32 %v2399, %v2735
  %v2978 = vadd.f32 %v2400, %v2738
  %v2979 = vadd.f32 %v2401, %v2743
  %v2980 = vadd.f32 %v2402, %v2746
  %v2981 = vadd.f32 %v2403, %v2751
  %v2982 = vadd.f32 %v2404, %v2754
  %v2983 = vadd.f32 %v2405, %v2759
  %v2984 = vadd.f32 %v2406, %v2762
  %v2985 = vadd.f32 %v2407, %v2767
  %v2986 = vadd.f32 %v2408, %v2770
  %v2987 = vadd.f32 %v2409, %v2775
  %v2988 = vadd.f32 %v2410, %v2778
  %v2989 = vadd.f32 %v2411, %v2783
  %v2990 = vadd.f32 %v2412, %v2786
  %v2991 = vadd.f32 %v2413, %v2791
  %v2992 = vadd.f32 %v2414, %v2794
  %v2993 = vadd.f32 %v2415, %v2799
  %v2994 = vadd.f32 %v2416, %v2802
  %v2995 = vadd.f32 %v2417, %v2807
  %v2996 = vadd.f32 %v2418, %v2810
  %v2997 = vadd.f32 %v2419, %v2815
  %v2998 = vadd.f32 %v2420, %v2818
  %v2999 = vadd.f32 %v2421, %v2823
  %v3000 = vadd.f32 %v2422, %v2826
  %v3001 = vadd.f32 %v2423, %v2831
  %v3002 = vadd.f32 %v2424, %v2834
  %v3003 = vadd.f32 %v2425, %v2839
  %v3004 = vadd.f32 %v2426, %v2842
  %v3005 = vadd.f32 %v2427, %v2847
  %v3006 = vadd.f32 %v2428, %v2850
  %v3007 = vadd.f32 %v2429, %v2855
  %v3008 = vadd.f32 %v2430, %v2858
  %v3009 = vadd.f32 %v2431, %v2863
  %v3010 = vadd.f32 %v2432, %v2866
  %v3011 = vadd.f32 %v2433, %v2871
  %v3012 = vadd.f32 %v2434, %v2874
  %v3013 = vadd.f32 %v2435, %v2879
  %v3014 = vadd.f32 %v2436, %v2882
  %v3015 = vadd.f32 %v2437, %v2887
  %v3016 = vadd.f32 %v2438, %v2890
  %v3017 = vadd.f32 %v2439, %v2895
  %v3018 = vadd.f32 %v2440, %v2898
  %v3019 = vadd.f32 %v2441, %v2903
  %v3020 = vadd.f32 %v2442, %v2906
  %v3021 = vadd.f32 %v2443, %v2911
  %v3022 = vadd.f32 %v2444, %v2914
  %v3023 = vadd.f32 %v2445, %v2919
  %v3024 = vadd.f32 %v2446, %v2922
  %v3025 = vadd.f32 %v2447, %v2927
  %v3026 = vadd.f32 %v2448, %v2930
  %v3027 = vadd.f32 %v2449, %v2935
  %v3028 = vadd.f32 %v2450, %v2938
  %v3029 = vadd.f32 %v2451, %v2943
  %v3030 = vadd.f32 %v2452, %v2946
  %v3031 = vadd.f32 %v2453, %v2951
  %v3032 = vadd.f32 %v2454, %v2954
  %v3033 = vadd.f32 %v2455, %v2959
  %v3034 = vadd.f32 %v2456, %v2962
  %v3035 = vadd.f32 %v2457, %v2967
  %v3036 = vadd.f32 %v2458, %v2970
  %v3037 = vld [vmem:[%s789 + $0x1] sm:$0xff]
  %v3038 = vld [vmem:[%s789 + $0x9] sm:$0xff]
  %v3039 = vld [vmem:[%s789 + $0x19] sm:$0xff]
  %v3040 = vld [vmem:[%s789 + $0x21] sm:$0xff]
  %v3041 = vld [vmem:[%s789 + $0x31] sm:$0xff]
  %v3042 = vld [vmem:[%s789 + $0x39] sm:$0xff]
  %v3043 = vld [vmem:[%s789 + $0x49] sm:$0xff]
  %v3044 = vld [vmem:[%s789 + $0x51] sm:$0xff]
  %v3045 = vld [vmem:[%s789 + $0x61] sm:$0xff]
  %v3046 = vld [vmem:[%s789 + $0x69] sm:$0xff]
  %v3047 = vld [vmem:[%s789 + $0x79] sm:$0xff]
  %v3048 = vld [vmem:[%s789 + $0x81] sm:$0xff]
  %v3049 = vld [vmem:[%s789 + $0x91] sm:$0xff]
  %v3050 = vld [vmem:[%s789 + $0x99] sm:$0xff]
  %v3051 = vld [vmem:[%s789 + $0xa9] sm:$0xff]
  %v3052 = vld [vmem:[%s789 + $0xb1] sm:$0xff]
  %v3053 = vld [vmem:[%s789 + $0xc1] sm:$0xff]
  %v3054 = vld [vmem:[%s789 + $0xc9] sm:$0xff]
  %v3055 = vld [vmem:[%s789 + $0xd9] sm:$0xff]
  %v3056 = vld [vmem:[%s789 + $0xe1] sm:$0xff]
  %v3057 = vld [vmem:[%s789 + $0xf1] sm:$0xff]
  %v3058 = vld [vmem:[%s789 + $0xf9] sm:$0xff]
  %v3059 = vld [vmem:[%s789 + $0x109] sm:$0xff]
  %v3060 = vld [vmem:[%s789 + $0x111] sm:$0xff]
  %v3061 = vld [vmem:[%s789 + $0x121] sm:$0xff]
  %v3062 = vld [vmem:[%s789 + $0x129] sm:$0xff]
  %v3063 = vld [vmem:[%s789 + $0x139] sm:$0xff]
  %v3064 = vld [vmem:[%s789 + $0x141] sm:$0xff]
  %v3065 = vld [vmem:[%s789 + $0x151] sm:$0xff]
  %v3066 = vld [vmem:[%s789 + $0x159] sm:$0xff]
  %v3067 = vld [vmem:[%s789 + $0x169] sm:$0xff]
  %v3068 = vld [vmem:[%s789 + $0x171] sm:$0xff]
  %v3069 = vld [vmem:[%s789 + $0x1b1] sm:$0xff]
  %v3070 = vld [vmem:[%s789 + $0x1b9] sm:$0xff]
  %v3071 = vld [vmem:[%s789 + $0x1c9] sm:$0xff]
  %v3072 = vld [vmem:[%s789 + $0x1d1] sm:$0xff]
  %v3073 = vld [vmem:[%s789 + $0x1e1] sm:$0xff]
  %v3074 = vld [vmem:[%s789 + $0x1e9] sm:$0xff]
  %v3075 = vld [vmem:[%s789 + $0x1f9] sm:$0xff]
  %v3076 = vld [vmem:[%s789 + $0x201] sm:$0xff]
  %v3077 = vld [vmem:[%s789 + $0x211] sm:$0xff]
  %v3078 = vld [vmem:[%s789 + $0x219] sm:$0xff]
  %v3079 = vld [vmem:[%s789 + $0x229] sm:$0xff]
  %v3080 = vld [vmem:[%s789 + $0x231] sm:$0xff]
  %v3081 = vld [vmem:[%s789 + $0x241] sm:$0xff]
  %v3082 = vld [vmem:[%s789 + $0x249] sm:$0xff]
  %v3083 = vld [vmem:[%s789 + $0x259] sm:$0xff]
  %v3084 = vld [vmem:[%s789 + $0x261] sm:$0xff]
  %v3085 = vld [vmem:[%s789 + $0x271] sm:$0xff]
  %v3086 = vld [vmem:[%s789 + $0x279] sm:$0xff]
  %v3087 = vld [vmem:[%s789 + $0x289] sm:$0xff]
  %v3088 = vld [vmem:[%s789 + $0x291] sm:$0xff]
  %v3089 = vld [vmem:[%s789 + $0x2a1] sm:$0xff]
  %v3090 = vld [vmem:[%s789 + $0x2a9] sm:$0xff]
  %v3091 = vld [vmem:[%s789 + $0x2b9] sm:$0xff]
  %v3092 = vld [vmem:[%s789 + $0x2c1] sm:$0xff]
  %v3093 = vld [vmem:[%s789 + $0x2d1] sm:$0xff]
  %v3094 = vld [vmem:[%s789 + $0x2d9] sm:$0xff]
  %v3095 = vld [vmem:[%s789 + $0x2e9] sm:$0xff]
  %v3096 = vld [vmem:[%s789 + $0x2f1] sm:$0xff]
  %v3097 = vld [vmem:[%s789 + $0x301] sm:$0xff]
  %v3098 = vld [vmem:[%s789 + $0x309] sm:$0xff]
  %v3099 = vld [vmem:[%s789 + $0x319] sm:$0xff]
  %v3100 = vld [vmem:[%s789 + $0x321] sm:$0xff]
  %v3101 = vpack.c.bf16 %v3038, %v3037
  %v3102 = vpack.c.bf16 %v3040, %v3039
  %v3103 = vpack.c.bf16 %v3042, %v3041
  %v3104 = vpack.c.bf16 %v3044, %v3043
  %v3105 = vpack.c.bf16 %v3046, %v3045
  %v3106 = vpack.c.bf16 %v3048, %v3047
  %v3107 = vpack.c.bf16 %v3050, %v3049
  %v3108 = vpack.c.bf16 %v3052, %v3051
  %v3109 = vpack.c.bf16 %v3054, %v3053
  %v3110 = vpack.c.bf16 %v3056, %v3055
  %v3111 = vpack.c.bf16 %v3058, %v3057
  %v3112 = vpack.c.bf16 %v3060, %v3059
  %v3113 = vpack.c.bf16 %v3062, %v3061
  %v3114 = vpack.c.bf16 %v3064, %v3063
  %v3115 = vpack.c.bf16 %v3066, %v3065
  %v3116 = vpack.c.bf16 %v3068, %v3067
  %v3117 = vpack.c.bf16 %v3070, %v3069
  %v3118 = vpack.c.bf16 %v3072, %v3071
  %v3119 = vpack.c.bf16 %v3074, %v3073
  %v3120 = vpack.c.bf16 %v3076, %v3075
  %v3121 = vpack.c.bf16 %v3078, %v3077
  %v3122 = vpack.c.bf16 %v3080, %v3079
  %v3123 = vpack.c.bf16 %v3082, %v3081
  %v3124 = vpack.c.bf16 %v3084, %v3083
  %v3125 = vpack.c.bf16 %v3086, %v3085
  %v3126 = vpack.c.bf16 %v3088, %v3087
  %v3127 = vpack.c.bf16 %v3090, %v3089
  %v3128 = vpack.c.bf16 %v3092, %v3091
  %v3129 = vpack.c.bf16 %v3094, %v3093
  %v3130 = vpack.c.bf16 %v3096, %v3095
  %v3131 = vpack.c.bf16 %v3098, %v3097
  %v3132 = vpack.c.bf16 %v3100, %v3099
  %s3133 = scalar_lea.vmem %s3, 128
  %v3134 = vld [vmem:[%s3133] sm:$0xf]
  %v3135 = vld [vmem:[%s3133 + $0x4] sm:$0xf]
  %v3136 = vld [vmem:[%s3133 + $0x8] sm:$0xf]
  %v3137 = vld [vmem:[%s3133 + $0xc] sm:$0xf]
  %v3138 = vld [vmem:[%s3133 + $0x10] sm:$0xf]
  %v3139 = vld [vmem:[%s3133 + $0x14] sm:$0xf]
  %v3140 = vld [vmem:[%s3133 + $0x18] sm:$0xf]
  %v3141 = vld [vmem:[%s3133 + $0x1c] sm:$0xf]
  %v3150 = vunpack.c.l.b16 %v3134
  %v3151 = vunpack.c.l.b16 %v3135
  %v3152 = vunpack.c.l.b16 %v3136
  %v3153 = vunpack.c.l.b16 %v3137
  %v3154 = vunpack.c.l.b16 %v3138
  %v3155 = vunpack.c.l.b16 %v3139
  %v3156 = vunpack.c.l.b16 %v3140
  %v3157 = vunpack.c.l.b16 %v3141
  %v3158 = vpack.c.b16 %v3151, %v3150
  %v3159 = vpack.c.b16 %v3153, %v3152
  %v3160 = vpack.c.b16 %v3155, %v3154
  %v3161 = vpack.c.b16 %v3157, %v3156
  %v3167 = vsel %vm701, %v3101, 0
  %v3170 = vsel %vm701, %v3102, 0
  %v3173 = vsel %vm701, %v3103, 0
  %v3176 = vsel %vm701, %v3104, 0
  %v3179 = vsel %vm701, %v3105, 0
  %v3182 = vsel %vm701, %v3106, 0
  %v3185 = vsel %vm701, %v3107, 0
  %v3188 = vsel %vm701, %v3108, 0
  %v3191 = vsel %vm701, %v3109, 0
  %v3194 = vsel %vm701, %v3110, 0
  %v3197 = vsel %vm701, %v3111, 0
  %v3200 = vsel %vm701, %v3112, 0
  %v3203 = vsel %vm701, %v3113, 0
  %v3206 = vsel %vm701, %v3114, 0
  %v3209 = vsel %vm701, %v3115, 0
  %v3212 = vsel %vm701, %v3116, 0
  %v3215 = vsel %vm701, %v3117, 0
  %v3218 = vsel %vm701, %v3118, 0
  %v3221 = vsel %vm701, %v3119, 0
  %v3224 = vsel %vm701, %v3120, 0
  %v3227 = vsel %vm701, %v3121, 0
  %v3230 = vsel %vm701, %v3122, 0
  %v3233 = vsel %vm701, %v3123, 0
  %v3236 = vsel %vm701, %v3124, 0
  %v3239 = vsel %vm701, %v3125, 0
  %v3242 = vsel %vm701, %v3126, 0
  %v3245 = vsel %vm701, %v3127, 0
  %v3248 = vsel %vm701, %v3128, 0
  %v3251 = vsel %vm701, %v3129, 0
  %v3254 = vsel %vm701, %v3130, 0
  %v3257 = vsel %vm701, %v3131, 0
  %v3260 = vsel %vm701, %v3132, 0
  %3262 = vmatprep.subr.bf16.mxu0 0
  %3263 = vmatpush1.bf16.msra.mxu0 %v3158
  %3264 = vmatprep.subr.bf16.mxu0 0
  %3265 = vmatpush1.bf16.msra.mxu0 %v3159
  %3266 = vmatprep.subr.bf16.mxu0 0
  %3267 = vmatpush1.bf16.msra.mxu0 %v3160
  %3268 = vmatprep.subr.bf16.mxu0 0
  %3269 = vmatpush1.bf16.msra.mxu0 %v3161
  %3270 = vmatprep.subr.bf16.mxu0 0
  %3271 = vmatpush1.bf16.msra.mxu0 0
  %3272 = vmatprep.subr.bf16.mxu0 0
  %3273 = vmatpush1.bf16.msra.mxu0 0
  %3274 = vmatprep.subr.bf16.mxu0 0
  %3275 = vmatpush1.bf16.msra.mxu0 0
  %3276 = vmatprep.subr.bf16.mxu0 0
  %3277 = vmatpush1.bf16.msra.mxu0 0
  %3278 = vmatprep.subr.bf16.mxu0 0
  %3279 = vmatpush1.bf16.msra.mxu0 0
  %3280 = vmatprep.subr.bf16.mxu0 0
  %3281 = vmatpush1.bf16.msra.mxu0 0
  %3282 = vmatprep.subr.bf16.mxu0 0
  %3283 = vmatpush1.bf16.msra.mxu0 0
  %3284 = vmatprep.subr.bf16.mxu0 0
  %3285 = vmatpush1.bf16.msra.mxu0 0
  %3286 = vmatprep.subr.bf16.mxu0 0
  %3287 = vmatpush1.bf16.msra.mxu0 0
  %3288 = vmatprep.subr.bf16.mxu0 0
  %3289 = vmatpush1.bf16.msra.mxu0 0
  %3290 = vmatprep.subr.bf16.mxu0 0
  %3291 = vmatpush1.bf16.msra.mxu0 0
  %3292 = vmatprep.subr.bf16.mxu0 0
  %3293 = vmatpush1.bf16.msra.mxu0 0
  %3294 = vmatprep.mubr.bf16.mxu0 0
  %3295 = vmatmul.mubr.bf16.gmra.mrb[0].mxu0 %v3167
  %v3296 = vpop.f32.mrb[0].mxu0
  %v3297 = vadd.f32 0.0, %v3296
  %v3298 = vpop.f32.mrb[0].mxu0
  %v3299 = vpop.f32.mrb[0].mxu0
  %v3300 = vadd.f32 0.0, %v3299
  %v3301 = vpop.f32.mrb[0].mxu0
  %3302 = vmatprep.mubr.bf16.mxu0 0
  %3303 = vmatmul.mubr.bf16.gmra.mrb[0].mxu0 %v3170
  %v3304 = vpop.f32.mrb[0].mxu0
  %v3305 = vadd.f32 0.0, %v3304
  %v3306 = vpop.f32.mrb[0].mxu0
  %v3307 = vpop.f32.mrb[0].mxu0
  %v3308 = vadd.f32 0.0, %v3307
  %v3309 = vpop.f32.mrb[0].mxu0
  %3310 = vmatprep.mubr.bf16.mxu0 0
  %3311 = vmatmul.mubr.bf16.gmra.mrb[0].mxu0 %v3173
  %v3312 = vpop.f32.mrb[0].mxu0
  %v3313 = vadd.f32 0.0, %v3312
  %v3314 = vpop.f32.mrb[0].mxu0
  %v3315 = vpop.f32.mrb[0].mxu0
  %v3316 = vadd.f32 0.0, %v3315
  %v3317 = vpop.f32.mrb[0].mxu0
  %3318 = vmatprep.mubr.bf16.mxu0 0
  %3319 = vmatmul.mubr.bf16.gmra.mrb[0].mxu0 %v3176
  %v3320 = vpop.f32.mrb[0].mxu0
  %v3321 = vadd.f32 0.0, %v3320
  %v3322 = vpop.f32.mrb[0].mxu0
  %v3323 = vpop.f32.mrb[0].mxu0
  %v3324 = vadd.f32 0.0, %v3323
  %v3325 = vpop.f32.mrb[0].mxu0
  %3326 = vmatprep.mubr.bf16.mxu0 0
  %3327 = vmatmul.mubr.bf16.gmra.mrb[0].mxu0 %v3179
  %v3328 = vpop.f32.mrb[0].mxu0
  %v3329 = vadd.f32 0.0, %v3328
  %v3330 = vpop.f32.mrb[0].mxu0
  %v3331 = vpop.f32.mrb[0].mxu0
  %v3332 = vadd.f32 0.0, %v3331
  %v3333 = vpop.f32.mrb[0].mxu0
  %3334 = vmatprep.mubr.bf16.mxu0 0
  %3335 = vmatmul.mubr.bf16.gmra.mrb[0].mxu0 %v3182
  %v3336 = vpop.f32.mrb[0].mxu0
  %v3337 = vadd.f32 0.0, %v3336
  %v3338 = vpop.f32.mrb[0].mxu0
  %v3339 = vpop.f32.mrb[0].mxu0
  %v3340 = vadd.f32 0.0, %v3339
  %v3341 = vpop.f32.mrb[0].mxu0
  %3342 = vmatprep.mubr.bf16.mxu0 0
  %3343 = vmatmul.mubr.bf16.gmra.mrb[0].mxu0 %v3185
  %v3344 = vpop.f32.mrb[0].mxu0
  %v3345 = vadd.f32 0.0, %v3344
  %v3346 = vpop.f32.mrb[0].mxu0
  %v3347 = vpop.f32.mrb[0].mxu0
  %v3348 = vadd.f32 0.0, %v3347
  %v3349 = vpop.f32.mrb[0].mxu0
  %3350 = vmatprep.mubr.bf16.mxu0 0
  %3351 = vmatmul.mubr.bf16.gmra.mrb[0].mxu0 %v3188
  %v3352 = vpop.f32.mrb[0].mxu0
  %v3353 = vadd.f32 0.0, %v3352
  %v3354 = vpop.f32.mrb[0].mxu0
  %v3355 = vpop.f32.mrb[0].mxu0
  %v3356 = vadd.f32 0.0, %v3355
  %v3357 = vpop.f32.mrb[0].mxu0
  %3358 = vmatprep.mubr.bf16.mxu0 0
  %3359 = vmatmul.mubr.bf16.gmra.mrb[0].mxu0 %v3191
  %v3360 = vpop.f32.mrb[0].mxu0
  %v3361 = vadd.f32 0.0, %v3360
  %v3362 = vpop.f32.mrb[0].mxu0
  %v3363 = vpop.f32.mrb[0].mxu0
  %v3364 = vadd.f32 0.0, %v3363
  %v3365 = vpop.f32.mrb[0].mxu0
  %3366 = vmatprep.mubr.bf16.mxu0 0
  %3367 = vmatmul.mubr.bf16.gmra.mrb[0].mxu0 %v3194
  %v3368 = vpop.f32.mrb[0].mxu0
  %v3369 = vadd.f32 0.0, %v3368
  %v3370 = vpop.f32.mrb[0].mxu0
  %v3371 = vpop.f32.mrb[0].mxu0
  %v3372 = vadd.f32 0.0, %v3371
  %v3373 = vpop.f32.mrb[0].mxu0
  %3374 = vmatprep.mubr.bf16.mxu0 0
  %3375 = vmatmul.mubr.bf16.gmra.mrb[0].mxu0 %v3197
  %v3376 = vpop.f32.mrb[0].mxu0
  %v3377 = vadd.f32 0.0, %v3376
  %v3378 = vpop.f32.mrb[0].mxu0
  %v3379 = vpop.f32.mrb[0].mxu0
  %v3380 = vadd.f32 0.0, %v3379
  %v3381 = vpop.f32.mrb[0].mxu0
  %3382 = vmatprep.mubr.bf16.mxu0 0
  %3383 = vmatmul.mubr.bf16.gmra.mrb[0].mxu0 %v3200
  %v3384 = vpop.f32.mrb[0].mxu0
  %v3385 = vadd.f32 0.0, %v3384
  %v3386 = vpop.f32.mrb[0].mxu0
  %v3387 = vpop.f32.mrb[0].mxu0
  %v3388 = vadd.f32 0.0, %v3387
  %v3389 = vpop.f32.mrb[0].mxu0
  %3390 = vmatprep.mubr.bf16.mxu0 0
  %3391 = vmatmul.mubr.bf16.gmra.mrb[0].mxu0 %v3203
  %v3392 = vpop.f32.mrb[0].mxu0
  %v3393 = vadd.f32 0.0, %v3392
  %v3394 = vpop.f32.mrb[0].mxu0
  %v3395 = vpop.f32.mrb[0].mxu0
  %v3396 = vadd.f32 0.0, %v3395
  %v3397 = vpop.f32.mrb[0].mxu0
  %3398 = vmatprep.mubr.bf16.mxu0 0
  %3399 = vmatmul.mubr.bf16.gmra.mrb[0].mxu0 %v3206
  %v3400 = vpop.f32.mrb[0].mxu0
  %v3401 = vadd.f32 0.0, %v3400
  %v3402 = vpop.f32.mrb[0].mxu0
  %v3403 = vpop.f32.mrb[0].mxu0
  %v3404 = vadd.f32 0.0, %v3403
  %v3405 = vpop.f32.mrb[0].mxu0
  %3406 = vmatprep.mubr.bf16.mxu0 0
  %3407 = vmatmul.mubr.bf16.gmra.mrb[0].mxu0 %v3209
  %v3408 = vpop.f32.mrb[0].mxu0
  %v3409 = vadd.f32 0.0, %v3408
  %v3410 = vpop.f32.mrb[0].mxu0
  %v3411 = vpop.f32.mrb[0].mxu0
  %v3412 = vadd.f32 0.0, %v3411
  %v3413 = vpop.f32.mrb[0].mxu0
  %3414 = vmatprep.mubr.bf16.mxu0 0
  %3415 = vmatmul.mubr.bf16.gmra.mrb[0].mxu0 %v3212
  %v3416 = vpop.f32.mrb[0].mxu0
  %v3417 = vadd.f32 0.0, %v3416
  %v3418 = vpop.f32.mrb[0].mxu0
  %v3419 = vpop.f32.mrb[0].mxu0
  %v3420 = vadd.f32 0.0, %v3419
  %v3421 = vpop.f32.mrb[0].mxu0
  %3422 = vmatprep.mubr.bf16.mxu0 0
  %3423 = vmatmul.mubr.bf16.gmra.mrb[0].mxu0 %v3215
  %v3424 = vpop.f32.mrb[0].mxu0
  %v3425 = vadd.f32 0.0, %v3424
  %v3426 = vpop.f32.mrb[0].mxu0
  %v3427 = vpop.f32.mrb[0].mxu0
  %v3428 = vadd.f32 0.0, %v3427
  %v3429 = vpop.f32.mrb[0].mxu0
  %3430 = vmatprep.mubr.bf16.mxu0 0
  %3431 = vmatmul.mubr.bf16.gmra.mrb[0].mxu0 %v3218
  %v3432 = vpop.f32.mrb[0].mxu0
  %v3433 = vadd.f32 0.0, %v3432
  %v3434 = vpop.f32.mrb[0].mxu0
  %v3435 = vpop.f32.mrb[0].mxu0
  %v3436 = vadd.f32 0.0, %v3435
  %v3437 = vpop.f32.mrb[0].mxu0
  %3438 = vmatprep.mubr.bf16.mxu0 0
  %3439 = vmatmul.mubr.bf16.gmra.mrb[0].mxu0 %v3221
  %v3440 = vpop.f32.mrb[0].mxu0
  %v3441 = vadd.f32 0.0, %v3440
  %v3442 = vpop.f32.mrb[0].mxu0
  %v3443 = vpop.f32.mrb[0].mxu0
  %v3444 = vadd.f32 0.0, %v3443
  %v3445 = vpop.f32.mrb[0].mxu0
  %3446 = vmatprep.mubr.bf16.mxu0 0
  %3447 = vmatmul.mubr.bf16.gmra.mrb[0].mxu0 %v3224
  %v3448 = vpop.f32.mrb[0].mxu0
  %v3449 = vadd.f32 0.0, %v3448
  %v3450 = vpop.f32.mrb[0].mxu0
  %v3451 = vpop.f32.mrb[0].mxu0
  %v3452 = vadd.f32 0.0, %v3451
  %v3453 = vpop.f32.mrb[0].mxu0
  %3454 = vmatprep.mubr.bf16.mxu0 0
  %3455 = vmatmul.mubr.bf16.gmra.mrb[0].mxu0 %v3227
  %v3456 = vpop.f32.mrb[0].mxu0
  %v3457 = vadd.f32 0.0, %v3456
  %v3458 = vpop.f32.mrb[0].mxu0
  %v3459 = vpop.f32.mrb[0].mxu0
  %v3460 = vadd.f32 0.0, %v3459
  %v3461 = vpop.f32.mrb[0].mxu0
  %3462 = vmatprep.mubr.bf16.mxu0 0
  %3463 = vmatmul.mubr.bf16.gmra.mrb[0].mxu0 %v3230
  %v3464 = vpop.f32.mrb[0].mxu0
  %v3465 = vadd.f32 0.0, %v3464
  %v3466 = vpop.f32.mrb[0].mxu0
  %v3467 = vpop.f32.mrb[0].mxu0
  %v3468 = vadd.f32 0.0, %v3467
  %v3469 = vpop.f32.mrb[0].mxu0
  %3470 = vmatprep.mubr.bf16.mxu0 0
  %3471 = vmatmul.mubr.bf16.gmra.mrb[0].mxu0 %v3233
  %v3472 = vpop.f32.mrb[0].mxu0
  %v3473 = vadd.f32 0.0, %v3472
  %v3474 = vpop.f32.mrb[0].mxu0
  %v3475 = vpop.f32.mrb[0].mxu0
  %v3476 = vadd.f32 0.0, %v3475
  %v3477 = vpop.f32.mrb[0].mxu0
  %3478 = vmatprep.mubr.bf16.mxu0 0
  %3479 = vmatmul.mubr.bf16.gmra.mrb[0].mxu0 %v3236
  %v3480 = vpop.f32.mrb[0].mxu0
  %v3481 = vadd.f32 0.0, %v3480
  %v3482 = vpop.f32.mrb[0].mxu0
  %v3483 = vpop.f32.mrb[0].mxu0
  %v3484 = vadd.f32 0.0, %v3483
  %v3485 = vpop.f32.mrb[0].mxu0
  %3486 = vmatprep.mubr.bf16.mxu0 0
  %3487 = vmatmul.mubr.bf16.gmra.mrb[0].mxu0 %v3239
  %v3488 = vpop.f32.mrb[0].mxu0
  %v3489 = vadd.f32 0.0, %v3488
  %v3490 = vpop.f32.mrb[0].mxu0
  %v3491 = vpop.f32.mrb[0].mxu0
  %v3492 = vadd.f32 0.0, %v3491
  %v3493 = vpop.f32.mrb[0].mxu0
  %3494 = vmatprep.mubr.bf16.mxu0 0
  %3495 = vmatmul.mubr.bf16.gmra.mrb[0].mxu0 %v3242
  %v3496 = vpop.f32.mrb[0].mxu0
  %v3497 = vadd.f32 0.0, %v3496
  %v3498 = vpop.f32.mrb[0].mxu0
  %v3499 = vpop.f32.mrb[0].mxu0
  %v3500 = vadd.f32 0.0, %v3499
  %v3501 = vpop.f32.mrb[0].mxu0
  %3502 = vmatprep.mubr.bf16.mxu0 0
  %3503 = vmatmul.mubr.bf16.gmra.mrb[0].mxu0 %v3245
  %v3504 = vpop.f32.mrb[0].mxu0
  %v3505 = vadd.f32 0.0, %v3504
  %v3506 = vpop.f32.mrb[0].mxu0
  %v3507 = vpop.f32.mrb[0].mxu0
  %v3508 = vadd.f32 0.0, %v3507
  %v3509 = vpop.f32.mrb[0].mxu0
  %3510 = vmatprep.mubr.bf16.mxu0 0
  %3511 = vmatmul.mubr.bf16.gmra.mrb[0].mxu0 %v3248
  %v3512 = vpop.f32.mrb[0].mxu0
  %v3513 = vadd.f32 0.0, %v3512
  %v3514 = vpop.f32.mrb[0].mxu0
  %v3515 = vpop.f32.mrb[0].mxu0
  %v3516 = vadd.f32 0.0, %v3515
  %v3517 = vpop.f32.mrb[0].mxu0
  %3518 = vmatprep.mubr.bf16.mxu0 0
  %3519 = vmatmul.mubr.bf16.gmra.mrb[0].mxu0 %v3251
  %v3520 = vpop.f32.mrb[0].mxu0
  %v3521 = vadd.f32 0.0, %v3520
  %v3522 = vpop.f32.mrb[0].mxu0
  %v3523 = vpop.f32.mrb[0].mxu0
  %v3524 = vadd.f32 0.0, %v3523
  %v3525 = vpop.f32.mrb[0].mxu0
  %3526 = vmatprep.mubr.bf16.mxu0 0
  %3527 = vmatmul.mubr.bf16.gmra.mrb[0].mxu0 %v3254
  %v3528 = vpop.f32.mrb[0].mxu0
  %v3529 = vadd.f32 0.0, %v3528
  %v3530 = vpop.f32.mrb[0].mxu0
  %v3531 = vpop.f32.mrb[0].mxu0
  %v3532 = vadd.f32 0.0, %v3531
  %v3533 = vpop.f32.mrb[0].mxu0
  %3534 = vmatprep.mubr.bf16.mxu0 0
  %3535 = vmatmul.mubr.bf16.gmra.mrb[0].mxu0 %v3257
  %v3536 = vpop.f32.mrb[0].mxu0
  %v3537 = vadd.f32 0.0, %v3536
  %v3538 = vpop.f32.mrb[0].mxu0
  %v3539 = vpop.f32.mrb[0].mxu0
  %v3540 = vadd.f32 0.0, %v3539
  %v3541 = vpop.f32.mrb[0].mxu0
  %3542 = vmatprep.mubr.bf16.mxu0 0
  %3543 = vmatmul.mubr.bf16.gmra.mrb[0].mxu0 %v3260
  %v3544 = vpop.f32.mrb[0].mxu0
  %v3545 = vadd.f32 0.0, %v3544
  %v3546 = vpop.f32.mrb[0].mxu0
  %v3547 = vpop.f32.mrb[0].mxu0
  %v3548 = vadd.f32 0.0, %v3547
  %v3549 = vpop.f32.mrb[0].mxu0
  %3550 = vdwg.mxu0
  %v3551 = vadd.f32 %v2973, %v3297
  %v3552 = vadd.f32 %v2974, %v3300
  %v3553 = vadd.f32 %v2975, %v3305
  %v3554 = vadd.f32 %v2976, %v3308
  %v3555 = vadd.f32 %v2977, %v3313
  %v3556 = vadd.f32 %v2978, %v3316
  %v3557 = vadd.f32 %v2979, %v3321
  %v3558 = vadd.f32 %v2980, %v3324
  %v3559 = vadd.f32 %v2981, %v3329
  %v3560 = vadd.f32 %v2982, %v3332
  %v3561 = vadd.f32 %v2983, %v3337
  %v3562 = vadd.f32 %v2984, %v3340
  %v3563 = vadd.f32 %v2985, %v3345
  %v3564 = vadd.f32 %v2986, %v3348
  %v3565 = vadd.f32 %v2987, %v3353
  %v3566 = vadd.f32 %v2988, %v3356
  %v3567 = vadd.f32 %v2989, %v3361
  %v3568 = vadd.f32 %v2990, %v3364
  %v3569 = vadd.f32 %v2991, %v3369
  %v3570 = vadd.f32 %v2992, %v3372
  %v3571 = vadd.f32 %v2993, %v3377
  %v3572 = vadd.f32 %v2994, %v3380
  %v3573 = vadd.f32 %v2995, %v3385
  %v3574 = vadd.f32 %v2996, %v3388
  %v3575 = vadd.f32 %v2997, %v3393
  %v3576 = vadd.f32 %v2998, %v3396
  %v3577 = vadd.f32 %v2999, %v3401
  %v3578 = vadd.f32 %v3000, %v3404
  %v3579 = vadd.f32 %v3001, %v3409
  %v3580 = vadd.f32 %v3002, %v3412
  %v3581 = vadd.f32 %v3003, %v3417
  %v3582 = vadd.f32 %v3004, %v3420
  %v3583 = vadd.f32 %v3005, %v3425
  %v3584 = vadd.f32 %v3006, %v3428
  %v3585 = vadd.f32 %v3007, %v3433
  %v3586 = vadd.f32 %v3008, %v3436
  %v3587 = vadd.f32 %v3009, %v3441
  %v3588 = vadd.f32 %v3010, %v3444
  %v3589 = vadd.f32 %v3011, %v3449
  %v3590 = vadd.f32 %v3012, %v3452
  %v3591 = vadd.f32 %v3013, %v3457
  %v3592 = vadd.f32 %v3014, %v3460
  %v3593 = vadd.f32 %v3015, %v3465
  %v3594 = vadd.f32 %v3016, %v3468
  %v3595 = vadd.f32 %v3017, %v3473
  %v3596 = vadd.f32 %v3018, %v3476
  %v3597 = vadd.f32 %v3019, %v3481
  %v3598 = vadd.f32 %v3020, %v3484
  %v3599 = vadd.f32 %v3021, %v3489
  %v3600 = vadd.f32 %v3022, %v3492
  %v3601 = vadd.f32 %v3023, %v3497
  %v3602 = vadd.f32 %v3024, %v3500
  %v3603 = vadd.f32 %v3025, %v3505
  %v3604 = vadd.f32 %v3026, %v3508
  %v3605 = vadd.f32 %v3027, %v3513
  %v3606 = vadd.f32 %v3028, %v3516
  %v3607 = vadd.f32 %v3029, %v3521
  %v3608 = vadd.f32 %v3030, %v3524
  %v3609 = vadd.f32 %v3031, %v3529
  %v3610 = vadd.f32 %v3032, %v3532
  %v3611 = vadd.f32 %v3033, %v3537
  %v3612 = vadd.f32 %v3034, %v3540
  %v3613 = vadd.f32 %v3035, %v3545
  %v3614 = vadd.f32 %v3036, %v3548
  %v3615 = vld [vmem:[%s789 + $0x2] sm:$0xff]
  %v3616 = vld [vmem:[%s789 + $0xa] sm:$0xff]
  %v3617 = vld [vmem:[%s789 + $0x1a] sm:$0xff]
  %v3618 = vld [vmem:[%s789 + $0x22] sm:$0xff]
  %v3619 = vld [vmem:[%s789 + $0x32] sm:$0xff]
  %v3620 = vld [vmem:[%s789 + $0x3a] sm:$0xff]
  %v3621 = vld [vmem:[%s789 + $0x4a] sm:$0xff]
  %v3622 = vld [vmem:[%s789 + $0x52] sm:$0xff]
  %v3623 = vld [vmem:[%s789 + $0x62] sm:$0xff]
  %v3624 = vld [vmem:[%s789 + $0x6a] sm:$0xff]
  %v3625 = vld [vmem:[%s789 + $0x7a] sm:$0xff]
  %v3626 = vld [vmem:[%s789 + $0x82] sm:$0xff]
  %v3627 = vld [vmem:[%s789 + $0x92] sm:$0xff]
  %v3628 = vld [vmem:[%s789 + $0x9a] sm:$0xff]
  %v3629 = vld [vmem:[%s789 + $0xaa] sm:$0xff]
  %v3630 = vld [vmem:[%s789 + $0xb2] sm:$0xff]
  %v3631 = vld [vmem:[%s789 + $0xc2] sm:$0xff]
  %v3632 = vld [vmem:[%s789 + $0xca] sm:$0xff]
  %v3633 = vld [vmem:[%s789 + $0xda] sm:$0xff]
  %v3634 = vld [vmem:[%s789 + $0xe2] sm:$0xff]
  %v3635 = vld [vmem:[%s789 + $0xf2] sm:$0xff]
  %v3636 = vld [vmem:[%s789 + $0xfa] sm:$0xff]
  %v3637 = vld [vmem:[%s789 + $0x10a] sm:$0xff]
  %v3638 = vld [vmem:[%s789 + $0x112] sm:$0xff]
  %v3639 = vld [vmem:[%s789 + $0x122] sm:$0xff]
  %v3640 = vld [vmem:[%s789 + $0x12a] sm:$0xff]
  %v3641 = vld [vmem:[%s789 + $0x13a] sm:$0xff]
  %v3642 = vld [vmem:[%s789 + $0x142] sm:$0xff]
  %v3643 = vld [vmem:[%s789 + $0x152] sm:$0xff]
  %v3644 = vld [vmem:[%s789 + $0x15a] sm:$0xff]
  %v3645 = vld [vmem:[%s789 + $0x16a] sm:$0xff]
  %v3646 = vld [vmem:[%s789 + $0x172] sm:$0xff]
  %v3647 = vld [vmem:[%s789 + $0x1b2] sm:$0xff]
  %v3648 = vld [vmem:[%s789 + $0x1ba] sm:$0xff]
  %v3649 = vld [vmem:[%s789 + $0x1ca] sm:$0xff]
  %v3650 = vld [vmem:[%s789 + $0x1d2] sm:$0xff]
  %v3651 = vld [vmem:[%s789 + $0x1e2] sm:$0xff]
  %v3652 = vld [vmem:[%s789 + $0x1ea] sm:$0xff]
  %v3653 = vld [vmem:[%s789 + $0x1fa] sm:$0xff]
  %v3654 = vld [vmem:[%s789 + $0x202] sm:$0xff]
  %v3655 = vld [vmem:[%s789 + $0x212] sm:$0xff]
  %v3656 = vld [vmem:[%s789 + $0x21a] sm:$0xff]
  %v3657 = vld [vmem:[%s789 + $0x22a] sm:$0xff]
  %v3658 = vld [vmem:[%s789 + $0x232] sm:$0xff]
  %v3659 = vld [vmem:[%s789 + $0x242] sm:$0xff]
  %v3660 = vld [vmem:[%s789 + $0x24a] sm:$0xff]
  %v3661 = vld [vmem:[%s789 + $0x25a] sm:$0xff]
  %v3662 = vld [vmem:[%s789 + $0x262] sm:$0xff]
  %v3663 = vld [vmem:[%s789 + $0x272] sm:$0xff]
  %v3664 = vld [vmem:[%s789 + $0x27a] sm:$0xff]
  %v3665 = vld [vmem:[%s789 + $0x28a] sm:$0xff]
  %v3666 = vld [vmem:[%s789 + $0x292] sm:$0xff]
  %v3667 = vld [vmem:[%s789 + $0x2a2] sm:$0xff]
  %v3668 = vld [vmem:[%s789 + $0x2aa] sm:$0xff]
  %v3669 = vld [vmem:[%s789 + $0x2ba] sm:$0xff]
  %v3670 = vld [vmem:[%s789 + $0x2c2] sm:$0xff]
  %v3671 = vld [vmem:[%s789 + $0x2d2] sm:$0xff]
  %v3672 = vld [vmem:[%s789 + $0x2da] sm:$0xff]
  %v3673 = vld [vmem:[%s789 + $0x2ea] sm:$0xff]
  %v3674 = vld [vmem:[%s789 + $0x2f2] sm:$0xff]
  %v3675 = vld [vmem:[%s789 + $0x302] sm:$0xff]
  %v3676 = vld [vmem:[%s789 + $0x30a] sm:$0xff]
  %v3677 = vld [vmem:[%s789 + $0x31a] sm:$0xff]
  %v3678 = vld [vmem:[%s789 + $0x322] sm:$0xff]
  %v3679 = vpack.c.bf16 %v3616, %v3615
  %v3680 = vpack.c.bf16 %v3618, %v3617
  %v3681 = vpack.c.bf16 %v3620, %v3619
  %v3682 = vpack.c.bf16 %v3622, %v3621
  %v3683 = vpack.c.bf16 %v3624, %v3623
  %v3684 = vpack.c.bf16 %v3626, %v3625
  %v3685 = vpack.c.bf16 %v3628, %v3627
  %v3686 = vpack.c.bf16 %v3630, %v3629
  %v3687 = vpack.c.bf16 %v3632, %v3631
  %v3688 = vpack.c.bf16 %v3634, %v3633
  %v3689 = vpack.c.bf16 %v3636, %v3635
  %v3690 = vpack.c.bf16 %v3638, %v3637
  %v3691 = vpack.c.bf16 %v3640, %v3639
  %v3692 = vpack.c.bf16 %v3642, %v3641
  %v3693 = vpack.c.bf16 %v3644, %v3643
  %v3694 = vpack.c.bf16 %v3646, %v3645
  %v3695 = vpack.c.bf16 %v3648, %v3647
  %v3696 = vpack.c.bf16 %v3650, %v3649
  %v3697 = vpack.c.bf16 %v3652, %v3651
  %v3698 = vpack.c.bf16 %v3654, %v3653
  %v3699 = vpack.c.bf16 %v3656, %v3655
  %v3700 = vpack.c.bf16 %v3658, %v3657
  %v3701 = vpack.c.bf16 %v3660, %v3659
  %v3702 = vpack.c.bf16 %v3662, %v3661
  %v3703 = vpack.c.bf16 %v3664, %v3663
  %v3704 = vpack.c.bf16 %v3666, %v3665
  %v3705 = vpack.c.bf16 %v3668, %v3667
  %v3706 = vpack.c.bf16 %v3670, %v3669
  %v3707 = vpack.c.bf16 %v3672, %v3671
  %v3708 = vpack.c.bf16 %v3674, %v3673
  %v3709 = vpack.c.bf16 %v3676, %v3675
  %v3710 = vpack.c.bf16 %v3678, %v3677
  %s3711 = scalar_lea.vmem %s3, 160
  %v3712 = vld [vmem:[%s3711] sm:$0xf]
  %v3713 = vld [vmem:[%s3711 + $0x4] sm:$0xf]
  %v3714 = vld [vmem:[%s3711 + $0x8] sm:$0xf]
  %v3715 = vld [vmem:[%s3711 + $0xc] sm:$0xf]
  %v3716 = vld [vmem:[%s3711 + $0x10] sm:$0xf]
  %v3717 = vld [vmem:[%s3711 + $0x14] sm:$0xf]
  %v3718 = vld [vmem:[%s3711 + $0x18] sm:$0xf]
  %v3719 = vld [vmem:[%s3711 + $0x1c] sm:$0xf]
  %v3728 = vunpack.c.l.b16 %v3712
  %v3729 = vunpack.c.l.b16 %v3713
  %v3730 = vunpack.c.l.b16 %v3714
  %v3731 = vunpack.c.l.b16 %v3715
  %v3732 = vunpack.c.l.b16 %v3716
  %v3733 = vunpack.c.l.b16 %v3717
  %v3734 = vunpack.c.l.b16 %v3718
  %v3735 = vunpack.c.l.b16 %v3719
  %v3736 = vpack.c.b16 %v3729, %v3728
  %v3737 = vpack.c.b16 %v3731, %v3730
  %v3738 = vpack.c.b16 %v3733, %v3732
  %v3739 = vpack.c.b16 %v3735, %v3734
  %v3745 = vsel %vm701, %v3679, 0
  %v3748 = vsel %vm701, %v3680, 0
  %v3751 = vsel %vm701, %v3681, 0
  %v3754 = vsel %vm701, %v3682, 0
  %v3757 = vsel %vm701, %v3683, 0
  %v3760 = vsel %vm701, %v3684, 0
  %v3763 = vsel %vm701, %v3685, 0
  %v3766 = vsel %vm701, %v3686, 0
  %v3769 = vsel %vm701, %v3687, 0
  %v3772 = vsel %vm701, %v3688, 0
  %v3775 = vsel %vm701, %v3689, 0
  %v3778 = vsel %vm701, %v3690, 0
  %v3781 = vsel %vm701, %v3691, 0
  %v3784 = vsel %vm701, %v3692, 0
  %v3787 = vsel %vm701, %v3693, 0
  %v3790 = vsel %vm701, %v3694, 0
  %v3793 = vsel %vm701, %v3695, 0
  %v3796 = vsel %vm701, %v3696, 0
  %v3799 = vsel %vm701, %v3697, 0
  %v3802 = vsel %vm701, %v3698, 0
  %v3805 = vsel %vm701, %v3699, 0
  %v3808 = vsel %vm701, %v3700, 0
  %v3811 = vsel %vm701, %v3701, 0
  %v3814 = vsel %vm701, %v3702, 0
  %v3817 = vsel %vm701, %v3703, 0
  %v3820 = vsel %vm701, %v3704, 0
  %v3823 = vsel %vm701, %v3705, 0
  %v3826 = vsel %vm701, %v3706, 0
  %v3829 = vsel %vm701, %v3707, 0
  %v3832 = vsel %vm701, %v3708, 0
  %v3835 = vsel %vm701, %v3709, 0
  %v3838 = vsel %vm701, %v3710, 0
  %3840 = vmatprep.subr.bf16.mxu0 0
  %3841 = vmatpush1.bf16.msra.mxu0 %v3736
  %3842 = vmatprep.subr.bf16.mxu0 0
  %3843 = vmatpush1.bf16.msra.mxu0 %v3737
  %3844 = vmatprep.subr.bf16.mxu0 0
  %3845 = vmatpush1.bf16.msra.mxu0 %v3738
  %3846 = vmatprep.subr.bf16.mxu0 0
  %3847 = vmatpush1.bf16.msra.mxu0 %v3739
  %3848 = vmatprep.subr.bf16.mxu0 0
  %3849 = vmatpush1.bf16.msra.mxu0 0
  %3850 = vmatprep.subr.bf16.mxu0 0
  %3851 = vmatpush1.bf16.msra.mxu0 0
  %3852 = vmatprep.subr.bf16.mxu0 0
  %3853 = vmatpush1.bf16.msra.mxu0 0
  %3854 = vmatprep.subr.bf16.mxu0 0
  %3855 = vmatpush1.bf16.msra.mxu0 0
  %3856 = vmatprep.subr.bf16.mxu0 0
  %3857 = vmatpush1.bf16.msra.mxu0 0
  %3858 = vmatprep.subr.bf16.mxu0 0
  %3859 = vmatpush1.bf16.msra.mxu0 0
  %3860 = vmatprep.subr.bf16.mxu0 0
  %3861 = vmatpush1.bf16.msra.mxu0 0
  %3862 = vmatprep.subr.bf16.mxu0 0
  %3863 = vmatpush1.bf16.msra.mxu0 0
  %3864 = vmatprep.subr.bf16.mxu0 0
  %3865 = vmatpush1.bf16.msra.mxu0 0
  %3866 = vmatprep.subr.bf16.mxu0 0
  %3867 = vmatpush1.bf16.msra.mxu0 0
  %3868 = vmatprep.subr.bf16.mxu0 0
  %3869 = vmatpush1.bf16.msra.mxu0 0
  %3870 = vmatprep.subr.bf16.mxu0 0
  %3871 = vmatpush1.bf16.msra.mxu0 0
  %3872 = vmatprep.mubr.bf16.mxu0 0
  %3873 = vmatmul.mubr.bf16.gmra.mrb[0].mxu0 %v3745
  %v3874 = vpop.f32.mrb[0].mxu0
  %v3875 = vadd.f32 0.0, %v3874
  %v3876 = vpop.f32.mrb[0].mxu0
  %v3877 = vpop.f32.mrb[0].mxu0
  %v3878 = vadd.f32 0.0, %v3877
  %v3879 = vpop.f32.mrb[0].mxu0
  %3880 = vmatprep.mubr.bf16.mxu0 0
  %3881 = vmatmul.mubr.bf16.gmra.mrb[0].mxu0 %v3748
  %v3882 = vpop.f32.mrb[0].mxu0
  %v3883 = vadd.f32 0.0, %v3882
  %v3884 = vpop.f32.mrb[0].mxu0
  %v3885 = vpop.f32.mrb[0].mxu0
  %v3886 = vadd.f32 0.0, %v3885
  %v3887 = vpop.f32.mrb[0].mxu0
  %3888 = vmatprep.mubr.bf16.mxu0 0
  %3889 = vmatmul.mubr.bf16.gmra.mrb[0].mxu0 %v3751
  %v3890 = vpop.f32.mrb[0].mxu0
  %v3891 = vadd.f32 0.0, %v3890
  %v3892 = vpop.f32.mrb[0].mxu0
  %v3893 = vpop.f32.mrb[0].mxu0
  %v3894 = vadd.f32 0.0, %v3893
  %v3895 = vpop.f32.mrb[0].mxu0
  %3896 = vmatprep.mubr.bf16.mxu0 0
  %3897 = vmatmul.mubr.bf16.gmra.mrb[0].mxu0 %v3754
  %v3898 = vpop.f32.mrb[0].mxu0
  %v3899 = vadd.f32 0.0, %v3898
  %v3900 = vpop.f32.mrb[0].mxu0
  %v3901 = vpop.f32.mrb[0].mxu0
  %v3902 = vadd.f32 0.0, %v3901
  %v3903 = vpop.f32.mrb[0].mxu0
  %3904 = vmatprep.mubr.bf16.mxu0 0
  %3905 = vmatmul.mubr.bf16.gmra.mrb[0].mxu0 %v3757
  %v3906 = vpop.f32.mrb[0].mxu0
  %v3907 = vadd.f32 0.0, %v3906
  %v3908 = vpop.f32.mrb[0].mxu0
  %v3909 = vpop.f32.mrb[0].mxu0
  %v3910 = vadd.f32 0.0, %v3909
  %v3911 = vpop.f32.mrb[0].mxu0
  %3912 = vmatprep.mubr.bf16.mxu0 0
  %3913 = vmatmul.mubr.bf16.gmra.mrb[0].mxu0 %v3760
  %v3914 = vpop.f32.mrb[0].mxu0
  %v3915 = vadd.f32 0.0, %v3914
  %v3916 = vpop.f32.mrb[0].mxu0
  %v3917 = vpop.f32.mrb[0].mxu0
  %v3918 = vadd.f32 0.0, %v3917
  %v3919 = vpop.f32.mrb[0].mxu0
  %3920 = vmatprep.mubr.bf16.mxu0 0
  %3921 = vmatmul.mubr.bf16.gmra.mrb[0].mxu0 %v3763
  %v3922 = vpop.f32.mrb[0].mxu0
  %v3923 = vadd.f32 0.0, %v3922
  %v3924 = vpop.f32.mrb[0].mxu0
  %v3925 = vpop.f32.mrb[0].mxu0
  %v3926 = vadd.f32 0.0, %v3925
  %v3927 = vpop.f32.mrb[0].mxu0
  %3928 = vmatprep.mubr.bf16.mxu0 0
  %3929 = vmatmul.mubr.bf16.gmra.mrb[0].mxu0 %v3766
  %v3930 = vpop.f32.mrb[0].mxu0
  %v3931 = vadd.f32 0.0, %v3930
  %v3932 = vpop.f32.mrb[0].mxu0
  %v3933 = vpop.f32.mrb[0].mxu0
  %v3934 = vadd.f32 0.0, %v3933
  %v3935 = vpop.f32.mrb[0].mxu0
  %3936 = vmatprep.mubr.bf16.mxu0 0
  %3937 = vmatmul.mubr.bf16.gmra.mrb[0].mxu0 %v3769
  %v3938 = vpop.f32.mrb[0].mxu0
  %v3939 = vadd.f32 0.0, %v3938
  %v3940 = vpop.f32.mrb[0].mxu0
  %v3941 = vpop.f32.mrb[0].mxu0
  %v3942 = vadd.f32 0.0, %v3941
  %v3943 = vpop.f32.mrb[0].mxu0
  %3944 = vmatprep.mubr.bf16.mxu0 0
  %3945 = vmatmul.mubr.bf16.gmra.mrb[0].mxu0 %v3772
  %v3946 = vpop.f32.mrb[0].mxu0
  %v3947 = vadd.f32 0.0, %v3946
  %v3948 = vpop.f32.mrb[0].mxu0
  %v3949 = vpop.f32.mrb[0].mxu0
  %v3950 = vadd.f32 0.0, %v3949
  %v3951 = vpop.f32.mrb[0].mxu0
  %3952 = vmatprep.mubr.bf16.mxu0 0
  %3953 = vmatmul.mubr.bf16.gmra.mrb[0].mxu0 %v3775
  %v3954 = vpop.f32.mrb[0].mxu0
  %v3955 = vadd.f32 0.0, %v3954
  %v3956 = vpop.f32.mrb[0].mxu0
  %v3957 = vpop.f32.mrb[0].mxu0
  %v3958 = vadd.f32 0.0, %v3957
  %v3959 = vpop.f32.mrb[0].mxu0
  %3960 = vmatprep.mubr.bf16.mxu0 0
  %3961 = vmatmul.mubr.bf16.gmra.mrb[0].mxu0 %v3778
  %v3962 = vpop.f32.mrb[0].mxu0
  %v3963 = vadd.f32 0.0, %v3962
  %v3964 = vpop.f32.mrb[0].mxu0
  %v3965 = vpop.f32.mrb[0].mxu0
  %v3966 = vadd.f32 0.0, %v3965
  %v3967 = vpop.f32.mrb[0].mxu0
  %3968 = vmatprep.mubr.bf16.mxu0 0
  %3969 = vmatmul.mubr.bf16.gmra.mrb[0].mxu0 %v3781
  %v3970 = vpop.f32.mrb[0].mxu0
  %v3971 = vadd.f32 0.0, %v3970
  %v3972 = vpop.f32.mrb[0].mxu0
  %v3973 = vpop.f32.mrb[0].mxu0
  %v3974 = vadd.f32 0.0, %v3973
  %v3975 = vpop.f32.mrb[0].mxu0
  %3976 = vmatprep.mubr.bf16.mxu0 0
  %3977 = vmatmul.mubr.bf16.gmra.mrb[0].mxu0 %v3784
  %v3978 = vpop.f32.mrb[0].mxu0
  %v3979 = vadd.f32 0.0, %v3978
  %v3980 = vpop.f32.mrb[0].mxu0
  %v3981 = vpop.f32.mrb[0].mxu0
  %v3982 = vadd.f32 0.0, %v3981
  %v3983 = vpop.f32.mrb[0].mxu0
  %3984 = vmatprep.mubr.bf16.mxu0 0
  %3985 = vmatmul.mubr.bf16.gmra.mrb[0].mxu0 %v3787
  %v3986 = vpop.f32.mrb[0].mxu0
  %v3987 = vadd.f32 0.0, %v3986
  %v3988 = vpop.f32.mrb[0].mxu0
  %v3989 = vpop.f32.mrb[0].mxu0
  %v3990 = vadd.f32 0.0, %v3989
  %v3991 = vpop.f32.mrb[0].mxu0
  %3992 = vmatprep.mubr.bf16.mxu0 0
  %3993 = vmatmul.mubr.bf16.gmra.mrb[0].mxu0 %v3790
  %v3994 = vpop.f32.mrb[0].mxu0
  %v3995 = vadd.f32 0.0, %v3994
  %v3996 = vpop.f32.mrb[0].mxu0
  %v3997 = vpop.f32.mrb[0].mxu0
  %v3998 = vadd.f32 0.0, %v3997
  %v3999 = vpop.f32.mrb[0].mxu0
  %4000 = vmatprep.mubr.bf16.mxu0 0
  %4001 = vmatmul.mubr.bf16.gmra.mrb[0].mxu0 %v3793
  %v4002 = vpop.f32.mrb[0].mxu0
  %v4003 = vadd.f32 0.0, %v4002
  %v4004 = vpop.f32.mrb[0].mxu0
  %v4005 = vpop.f32.mrb[0].mxu0
  %v4006 = vadd.f32 0.0, %v4005
  %v4007 = vpop.f32.mrb[0].mxu0
  %4008 = vmatprep.mubr.bf16.mxu0 0
  %4009 = vmatmul.mubr.bf16.gmra.mrb[0].mxu0 %v3796
  %v4010 = vpop.f32.mrb[0].mxu0
  %v4011 = vadd.f32 0.0, %v4010
  %v4012 = vpop.f32.mrb[0].mxu0
  %v4013 = vpop.f32.mrb[0].mxu0
  %v4014 = vadd.f32 0.0, %v4013
  %v4015 = vpop.f32.mrb[0].mxu0
  %4016 = vmatprep.mubr.bf16.mxu0 0
  %4017 = vmatmul.mubr.bf16.gmra.mrb[0].mxu0 %v3799
  %v4018 = vpop.f32.mrb[0].mxu0
  %v4019 = vadd.f32 0.0, %v4018
  %v4020 = vpop.f32.mrb[0].mxu0
  %v4021 = vpop.f32.mrb[0].mxu0
  %v4022 = vadd.f32 0.0, %v4021
  %v4023 = vpop.f32.mrb[0].mxu0
  %4024 = vmatprep.mubr.bf16.mxu0 0
  %4025 = vmatmul.mubr.bf16.gmra.mrb[0].mxu0 %v3802
  %v4026 = vpop.f32.mrb[0].mxu0
  %v4027 = vadd.f32 0.0, %v4026
  %v4028 = vpop.f32.mrb[0].mxu0
  %v4029 = vpop.f32.mrb[0].mxu0
  %v4030 = vadd.f32 0.0, %v4029
  %v4031 = vpop.f32.mrb[0].mxu0
  %4032 = vmatprep.mubr.bf16.mxu0 0
  %4033 = vmatmul.mubr.bf16.gmra.mrb[0].mxu0 %v3805
  %v4034 = vpop.f32.mrb[0].mxu0
  %v4035 = vadd.f32 0.0, %v4034
  %v4036 = vpop.f32.mrb[0].mxu0
  %v4037 = vpop.f32.mrb[0].mxu0
  %v4038 = vadd.f32 0.0, %v4037
  %v4039 = vpop.f32.mrb[0].mxu0
  %4040 = vmatprep.mubr.bf16.mxu0 0
  %4041 = vmatmul.mubr.bf16.gmra.mrb[0].mxu0 %v3808
  %v4042 = vpop.f32.mrb[0].mxu0
  %v4043 = vadd.f32 0.0, %v4042
  %v4044 = vpop.f32.mrb[0].mxu0
  %v4045 = vpop.f32.mrb[0].mxu0
  %v4046 = vadd.f32 0.0, %v4045
  %v4047 = vpop.f32.mrb[0].mxu0
  %4048 = vmatprep.mubr.bf16.mxu0 0
  %4049 = vmatmul.mubr.bf16.gmra.mrb[0].mxu0 %v3811
  %v4050 = vpop.f32.mrb[0].mxu0
  %v4051 = vadd.f32 0.0, %v4050
  %v4052 = vpop.f32.mrb[0].mxu0
  %v4053 = vpop.f32.mrb[0].mxu0
  %v4054 = vadd.f32 0.0, %v4053
  %v4055 = vpop.f32.mrb[0].mxu0
  %4056 = vmatprep.mubr.bf16.mxu0 0
  %4057 = vmatmul.mubr.bf16.gmra.mrb[0].mxu0 %v3814
  %v4058 = vpop.f32.mrb[0].mxu0
  %v4059 = vadd.f32 0.0, %v4058
  %v4060 = vpop.f32.mrb[0].mxu0
  %v4061 = vpop.f32.mrb[0].mxu0
  %v4062 = vadd.f32 0.0, %v4061
  %v4063 = vpop.f32.mrb[0].mxu0
  %4064 = vmatprep.mubr.bf16.mxu0 0
  %4065 = vmatmul.mubr.bf16.gmra.mrb[0].mxu0 %v3817
  %v4066 = vpop.f32.mrb[0].mxu0
  %v4067 = vadd.f32 0.0, %v4066
  %v4068 = vpop.f32.mrb[0].mxu0
  %v4069 = vpop.f32.mrb[0].mxu0
  %v4070 = vadd.f32 0.0, %v4069
  %v4071 = vpop.f32.mrb[0].mxu0
  %4072 = vmatprep.mubr.bf16.mxu0 0
  %4073 = vmatmul.mubr.bf16.gmra.mrb[0].mxu0 %v3820
  %v4074 = vpop.f32.mrb[0].mxu0
  %v4075 = vadd.f32 0.0, %v4074
  %v4076 = vpop.f32.mrb[0].mxu0
  %v4077 = vpop.f32.mrb[0].mxu0
  %v4078 = vadd.f32 0.0, %v4077
  %v4079 = vpop.f32.mrb[0].mxu0
  %4080 = vmatprep.mubr.bf16.mxu0 0
  %4081 = vmatmul.mubr.bf16.gmra.mrb[0].mxu0 %v3823
  %v4082 = vpop.f32.mrb[0].mxu0
  %v4083 = vadd.f32 0.0, %v4082
  %v4084 = vpop.f32.mrb[0].mxu0
  %v4085 = vpop.f32.mrb[0].mxu0
  %v4086 = vadd.f32 0.0, %v4085
  %v4087 = vpop.f32.mrb[0].mxu0
  %4088 = vmatprep.mubr.bf16.mxu0 0
  %4089 = vmatmul.mubr.bf16.gmra.mrb[0].mxu0 %v3826
  %v4090 = vpop.f32.mrb[0].mxu0
  %v4091 = vadd.f32 0.0, %v4090
  %v4092 = vpop.f32.mrb[0].mxu0
  %v4093 = vpop.f32.mrb[0].mxu0
  %v4094 = vadd.f32 0.0, %v4093
  %v4095 = vpop.f32.mrb[0].mxu0
  %4096 = vmatprep.mubr.bf16.mxu0 0
  %4097 = vmatmul.mubr.bf16.gmra.mrb[0].mxu0 %v3829
  %v4098 = vpop.f32.mrb[0].mxu0
  %v4099 = vadd.f32 0.0, %v4098
  %v4100 = vpop.f32.mrb[0].mxu0
  %v4101 = vpop.f32.mrb[0].mxu0
  %v4102 = vadd.f32 0.0, %v4101
  %v4103 = vpop.f32.mrb[0].mxu0
  %4104 = vmatprep.mubr.bf16.mxu0 0
  %4105 = vmatmul.mubr.bf16.gmra.mrb[0].mxu0 %v3832
  %v4106 = vpop.f32.mrb[0].mxu0
  %v4107 = vadd.f32 0.0, %v4106
  %v4108 = vpop.f32.mrb[0].mxu0
  %v4109 = vpop.f32.mrb[0].mxu0
  %v4110 = vadd.f32 0.0, %v4109
  %v4111 = vpop.f32.mrb[0].mxu0
  %4112 = vmatprep.mubr.bf16.mxu0 0
  %4113 = vmatmul.mubr.bf16.gmra.mrb[0].mxu0 %v3835
  %v4114 = vpop.f32.mrb[0].mxu0
  %v4115 = vadd.f32 0.0, %v4114
  %v4116 = vpop.f32.mrb[0].mxu0
  %v4117 = vpop.f32.mrb[0].mxu0
  %v4118 = vadd.f32 0.0, %v4117
  %v4119 = vpop.f32.mrb[0].mxu0
  %4120 = vmatprep.mubr.bf16.mxu0 0
  %4121 = vmatmul.mubr.bf16.gmra.mrb[0].mxu0 %v3838
  %v4122 = vpop.f32.mrb[0].mxu0
  %v4123 = vadd.f32 0.0, %v4122
  %v4124 = vpop.f32.mrb[0].mxu0
  %v4125 = vpop.f32.mrb[0].mxu0
  %v4126 = vadd.f32 0.0, %v4125
  %v4127 = vpop.f32.mrb[0].mxu0
  %4128 = vdwg.mxu0
  %v4129 = vadd.f32 %v3551, %v3875
  %v4130 = vadd.f32 %v3552, %v3878
  %v4131 = vadd.f32 %v3553, %v3883
  %v4132 = vadd.f32 %v3554, %v3886
  %v4133 = vadd.f32 %v3555, %v3891
  %v4134 = vadd.f32 %v3556, %v3894
  %v4135 = vadd.f32 %v3557, %v3899
  %v4136 = vadd.f32 %v3558, %v3902
  %v4137 = vadd.f32 %v3559, %v3907
  %v4138 = vadd.f32 %v3560, %v3910
  %v4139 = vadd.f32 %v3561, %v3915
  %v4140 = vadd.f32 %v3562, %v3918
  %v4141 = vadd.f32 %v3563, %v3923
  %v4142 = vadd.f32 %v3564, %v3926
  %v4143 = vadd.f32 %v3565, %v3931
  %v4144 = vadd.f32 %v3566, %v3934
  %v4145 = vadd.f32 %v3567, %v3939
  %v4146 = vadd.f32 %v3568, %v3942
  %v4147 = vadd.f32 %v3569, %v3947
  %v4148 = vadd.f32 %v3570, %v3950
  %v4149 = vadd.f32 %v3571, %v3955
  %v4150 = vadd.f32 %v3572, %v3958
  %v4151 = vadd.f32 %v3573, %v3963
  %v4152 = vadd.f32 %v3574, %v3966
  %v4153 = vadd.f32 %v3575, %v3971
  %v4154 = vadd.f32 %v3576, %v3974
  %v4155 = vadd.f32 %v3577, %v3979
  %v4156 = vadd.f32 %v3578, %v3982
  %v4157 = vadd.f32 %v3579, %v3987
  %v4158 = vadd.f32 %v3580, %v3990
  %v4159 = vadd.f32 %v3581, %v3995
  %v4160 = vadd.f32 %v3582, %v3998
  %v4161 = vadd.f32 %v3583, %v4003
  %v4162 = vadd.f32 %v3584, %v4006
  %v4163 = vadd.f32 %v3585, %v4011
  %v4164 = vadd.f32 %v3586, %v4014
  %v4165 = vadd.f32 %v3587, %v4019
  %v4166 = vadd.f32 %v3588, %v4022
  %v4167 = vadd.f32 %v3589, %v4027
  %v4168 = vadd.f32 %v3590, %v4030
  %v4169 = vadd.f32 %v3591, %v4035
  %v4170 = vadd.f32 %v3592, %v4038
  %v4171 = vadd.f32 %v3593, %v4043
  %v4172 = vadd.f32 %v3594, %v4046
  %v4173 = vadd.f32 %v3595, %v4051
  %v4174 = vadd.f32 %v3596, %v4054
  %v4175 = vadd.f32 %v3597, %v4059
  %v4176 = vadd.f32 %v3598, %v4062
  %v4177 = vadd.f32 %v3599, %v4067
  %v4178 = vadd.f32 %v3600, %v4070
  %v4179 = vadd.f32 %v3601, %v4075
  %v4180 = vadd.f32 %v3602, %v4078
  %v4181 = vadd.f32 %v3603, %v4083
  %v4182 = vadd.f32 %v3604, %v4086
  %v4183 = vadd.f32 %v3605, %v4091
  %v4184 = vadd.f32 %v3606, %v4094
  %v4185 = vadd.f32 %v3607, %v4099
  %v4186 = vadd.f32 %v3608, %v4102
  %v4187 = vadd.f32 %v3609, %v4107
  %v4188 = vadd.f32 %v3610, %v4110
  %v4189 = vadd.f32 %v3611, %v4115
  %v4190 = vadd.f32 %v3612, %v4118
  %v4191 = vadd.f32 %v3613, %v4123
  %v4192 = vadd.f32 %v3614, %v4126
  %s4193 = scalar_lea.vmem [#allocation2], 48
  %v4194 = vld [vmem:[%s4193] sm:$0xff]
  %v4195 = vld [vmem:[%s4193 + $0x8] sm:$0xff]
  %v4196 = vld [vmem:[%s4193 + $0x18] sm:$0xff]
  %v4197 = vld [vmem:[%s4193 + $0x20] sm:$0xff]
  %v4198 = vld [vmem:[%s4193 + $0x30] sm:$0xff]
  %v4199 = vld [vmem:[%s4193 + $0x38] sm:$0xff]
  %v4200 = vld [vmem:[%s4193 + $0x48] sm:$0xff]
  %v4201 = vld [vmem:[%s4193 + $0x50] sm:$0xff]
  %v4202 = vld [vmem:[%s4193 + $0x60] sm:$0xff]
  %v4203 = vld [vmem:[%s4193 + $0x68] sm:$0xff]
  %v4204 = vld [vmem:[%s4193 + $0x78] sm:$0xff]
  %v4205 = vld [vmem:[%s4193 + $0x80] sm:$0xff]
  %v4206 = vld [vmem:[%s4193 + $0x90] sm:$0xff]
  %v4207 = vld [vmem:[%s4193 + $0x98] sm:$0xff]
  %v4208 = vld [vmem:[%s4193 + $0xa8] sm:$0xff]
  %v4209 = vld [vmem:[%s4193 + $0xb0] sm:$0xff]
  %v4210 = vld [vmem:[%s4193 + $0xc0] sm:$0xff]
  %v4211 = vld [vmem:[%s4193 + $0xc8] sm:$0xff]
  %v4212 = vld [vmem:[%s4193 + $0xd8] sm:$0xff]
  %v4213 = vld [vmem:[%s4193 + $0xe0] sm:$0xff]
  %v4214 = vld [vmem:[%s4193 + $0xf0] sm:$0xff]
  %v4215 = vld [vmem:[%s4193 + $0xf8] sm:$0xff]
  %v4216 = vld [vmem:[%s4193 + $0x108] sm:$0xff]
  %v4217 = vld [vmem:[%s4193 + $0x110] sm:$0xff]
  %v4218 = vld [vmem:[%s4193 + $0x120] sm:$0xff]
  %v4219 = vld [vmem:[%s4193 + $0x128] sm:$0xff]
  %v4220 = vld [vmem:[%s4193 + $0x138] sm:$0xff]
  %v4221 = vld [vmem:[%s4193 + $0x140] sm:$0xff]
  %v4222 = vld [vmem:[%s4193 + $0x150] sm:$0xff]
  %v4223 = vld [vmem:[%s4193 + $0x158] sm:$0xff]
  %v4224 = vld [vmem:[%s4193 + $0x168] sm:$0xff]
  %v4225 = vld [vmem:[%s4193 + $0x170] sm:$0xff]
  %v4226 = vld [vmem:[%s4193 + $0x1b0] sm:$0xff]
  %v4227 = vld [vmem:[%s4193 + $0x1b8] sm:$0xff]
  %v4228 = vld [vmem:[%s4193 + $0x1c8] sm:$0xff]
  %v4229 = vld [vmem:[%s4193 + $0x1d0] sm:$0xff]
  %v4230 = vld [vmem:[%s4193 + $0x1e0] sm:$0xff]
  %v4231 = vld [vmem:[%s4193 + $0x1e8] sm:$0xff]
  %v4232 = vld [vmem:[%s4193 + $0x1f8] sm:$0xff]
  %v4233 = vld [vmem:[%s4193 + $0x200] sm:$0xff]
  %v4234 = vld [vmem:[%s4193 + $0x210] sm:$0xff]
  %v4235 = vld [vmem:[%s4193 + $0x218] sm:$0xff]
  %v4236 = vld [vmem:[%s4193 + $0x228] sm:$0xff]
  %v4237 = vld [vmem:[%s4193 + $0x230] sm:$0xff]
  %v4238 = vld [vmem:[%s4193 + $0x240] sm:$0xff]
  %v4239 = vld [vmem:[%s4193 + $0x248] sm:$0xff]
  %v4240 = vld [vmem:[%s4193 + $0x258] sm:$0xff]
  %v4241 = vld [vmem:[%s4193 + $0x260] sm:$0xff]
  %v4242 = vld [vmem:[%s4193 + $0x270] sm:$0xff]
  %v4243 = vld [vmem:[%s4193 + $0x278] sm:$0xff]
  %v4244 = vld [vmem:[%s4193 + $0x288] sm:$0xff]
  %v4245 = vld [vmem:[%s4193 + $0x290] sm:$0xff]
  %v4246 = vld [vmem:[%s4193 + $0x2a0] sm:$0xff]
  %v4247 = vld [vmem:[%s4193 + $0x2a8] sm:$0xff]
  %v4248 = vld [vmem:[%s4193 + $0x2b8] sm:$0xff]
  %v4249 = vld [vmem:[%s4193 + $0x2c0] sm:$0xff]
  %v4250 = vld [vmem:[%s4193 + $0x2d0] sm:$0xff]
  %v4251 = vld [vmem:[%s4193 + $0x2d8] sm:$0xff]
  %v4252 = vld [vmem:[%s4193 + $0x2e8] sm:$0xff]
  %v4253 = vld [vmem:[%s4193 + $0x2f0] sm:$0xff]
  %v4254 = vld [vmem:[%s4193 + $0x300] sm:$0xff]
  %v4255 = vld [vmem:[%s4193 + $0x308] sm:$0xff]
  %v4256 = vld [vmem:[%s4193 + $0x318] sm:$0xff]
  %v4257 = vld [vmem:[%s4193 + $0x320] sm:$0xff]
  %v4258 = vpack.c.bf16 %v4195, %v4194
  %v4259 = vpack.c.bf16 %v4197, %v4196
  %v4260 = vpack.c.bf16 %v4199, %v4198
  %v4261 = vpack.c.bf16 %v4201, %v4200
  %v4262 = vpack.c.bf16 %v4203, %v4202
  %v4263 = vpack.c.bf16 %v4205, %v4204
  %v4264 = vpack.c.bf16 %v4207, %v4206
  %v4265 = vpack.c.bf16 %v4209, %v4208
  %v4266 = vpack.c.bf16 %v4211, %v4210
  %v4267 = vpack.c.bf16 %v4213, %v4212
  %v4268 = vpack.c.bf16 %v4215, %v4214
  %v4269 = vpack.c.bf16 %v4217, %v4216
  %v4270 = vpack.c.bf16 %v4219, %v4218
  %v4271 = vpack.c.bf16 %v4221, %v4220
  %v4272 = vpack.c.bf16 %v4223, %v4222
  %v4273 = vpack.c.bf16 %v4225, %v4224
  %v4274 = vpack.c.bf16 %v4227, %v4226
  %v4275 = vpack.c.bf16 %v4229, %v4228
  %v4276 = vpack.c.bf16 %v4231, %v4230
  %v4277 = vpack.c.bf16 %v4233, %v4232
  %v4278 = vpack.c.bf16 %v4235, %v4234
  %v4279 = vpack.c.bf16 %v4237, %v4236
  %v4280 = vpack.c.bf16 %v4239, %v4238
  %v4281 = vpack.c.bf16 %v4241, %v4240
  %v4282 = vpack.c.bf16 %v4243, %v4242
  %v4283 = vpack.c.bf16 %v4245, %v4244
  %v4284 = vpack.c.bf16 %v4247, %v4246
  %v4285 = vpack.c.bf16 %v4249, %v4248
  %v4286 = vpack.c.bf16 %v4251, %v4250
  %v4287 = vpack.c.bf16 %v4253, %v4252
  %v4288 = vpack.c.bf16 %v4255, %v4254
  %v4289 = vpack.c.bf16 %v4257, %v4256
  %s4290 = scalar_lea.vmem %s3, 192
  %v4291 = vld [vmem:[%s4290] sm:$0xf]
  %v4292 = vld [vmem:[%s4290 + $0x4] sm:$0xf]
  %v4293 = vld [vmem:[%s4290 + $0x8] sm:$0xf]
  %v4294 = vld [vmem:[%s4290 + $0xc] sm:$0xf]
  %v4295 = vld [vmem:[%s4290 + $0x10] sm:$0xf]
  %v4296 = vld [vmem:[%s4290 + $0x14] sm:$0xf]
  %v4297 = vld [vmem:[%s4290 + $0x18] sm:$0xf]
  %v4298 = vld [vmem:[%s4290 + $0x1c] sm:$0xf]
  %v4307 = vunpack.c.l.b16 %v4291
  %v4308 = vunpack.c.l.b16 %v4292
  %v4309 = vunpack.c.l.b16 %v4293
  %v4310 = vunpack.c.l.b16 %v4294
  %v4311 = vunpack.c.l.b16 %v4295
  %v4312 = vunpack.c.l.b16 %v4296
  %v4313 = vunpack.c.l.b16 %v4297
  %v4314 = vunpack.c.l.b16 %v4298
  %v4315 = vpack.c.b16 %v4308, %v4307
  %v4316 = vpack.c.b16 %v4310, %v4309
  %v4317 = vpack.c.b16 %v4312, %v4311
  %v4318 = vpack.c.b16 %v4314, %v4313
  %v4324 = vsel %vm701, %v4258, 0
  %v4327 = vsel %vm701, %v4259, 0
  %v4330 = vsel %vm701, %v4260, 0
  %v4333 = vsel %vm701, %v4261, 0
  %v4336 = vsel %vm701, %v4262, 0
  %v4339 = vsel %vm701, %v4263, 0
  %v4342 = vsel %vm701, %v4264, 0
  %v4345 = vsel %vm701, %v4265, 0
  %v4348 = vsel %vm701, %v4266, 0
  %v4351 = vsel %vm701, %v4267, 0
  %v4354 = vsel %vm701, %v4268, 0
  %v4357 = vsel %vm701, %v4269, 0
  %v4360 = vsel %vm701, %v4270, 0
  %v4363 = vsel %vm701, %v4271, 0
  %v4366 = vsel %vm701, %v4272, 0
  %v4369 = vsel %vm701, %v4273, 0
  %v4372 = vsel %vm701, %v4274, 0
  %v4375 = vsel %vm701, %v4275, 0
  %v4378 = vsel %vm701, %v4276, 0
  %v4381 = vsel %vm701, %v4277, 0
  %v4384 = vsel %vm701, %v4278, 0
  %v4387 = vsel %vm701, %v4279, 0
  %v4390 = vsel %vm701, %v4280, 0
  %v4393 = vsel %vm701, %v4281, 0
  %v4396 = vsel %vm701, %v4282, 0
  %v4399 = vsel %vm701, %v4283, 0
  %v4402 = vsel %vm701, %v4284, 0
  %v4405 = vsel %vm701, %v4285, 0
  %v4408 = vsel %vm701, %v4286, 0
  %v4411 = vsel %vm701, %v4287, 0
  %v4414 = vsel %vm701, %v4288, 0
  %v4417 = vsel %vm701, %v4289, 0
  %4419 = vmatprep.subr.bf16.mxu0 0
  %4420 = vmatpush1.bf16.msra.mxu0 %v4315
  %4421 = vmatprep.subr.bf16.mxu0 0
  %4422 = vmatpush1.bf16.msra.mxu0 %v4316
  %4423 = vmatprep.subr.bf16.mxu0 0
  %4424 = vmatpush1.bf16.msra.mxu0 %v4317
  %4425 = vmatprep.subr.bf16.mxu0 0
  %4426 = vmatpush1.bf16.msra.mxu0 %v4318
  %4427 = vmatprep.subr.bf16.mxu0 0
  %4428 = vmatpush1.bf16.msra.mxu0 0
  %4429 = vmatprep.subr.bf16.mxu0 0
  %4430 = vmatpush1.bf16.msra.mxu0 0
  %4431 = vmatprep.subr.bf16.mxu0 0
  %4432 = vmatpush1.bf16.msra.mxu0 0
  %4433 = vmatprep.subr.bf16.mxu0 0
  %4434 = vmatpush1.bf16.msra.mxu0 0
  %4435 = vmatprep.subr.bf16.mxu0 0
  %4436 = vmatpush1.bf16.msra.mxu0 0
  %4437 = vmatprep.subr.bf16.mxu0 0
  %4438 = vmatpush1.bf16.msra.mxu0 0
  %4439 = vmatprep.subr.bf16.mxu0 0
  %4440 = vmatpush1.bf16.msra.mxu0 0
  %4441 = vmatprep.subr.bf16.mxu0 0
  %4442 = vmatpush1.bf16.msra.mxu0 0
  %4443 = vmatprep.subr.bf16.mxu0 0
  %4444 = vmatpush1.bf16.msra.mxu0 0
  %4445 = vmatprep.subr.bf16.mxu0 0
  %4446 = vmatpush1.bf16.msra.mxu0 0
  %4447 = vmatprep.subr.bf16.mxu0 0
  %4448 = vmatpush1.bf16.msra.mxu0 0
  %4449 = vmatprep.subr.bf16.mxu0 0
  %4450 = vmatpush1.bf16.msra.mxu0 0
  %4451 = vmatprep.mubr.bf16.mxu0 0
  %4452 = vmatmul.mubr.bf16.gmra.mrb[0].mxu0 %v4324
  %v4453 = vpop.f32.mrb[0].mxu0
  %v4454 = vadd.f32 0.0, %v4453
  %v4455 = vpop.f32.mrb[0].mxu0
  %v4456 = vpop.f32.mrb[0].mxu0
  %v4457 = vadd.f32 0.0, %v4456
  %v4458 = vpop.f32.mrb[0].mxu0
  %4459 = vmatprep.mubr.bf16.mxu0 0
  %4460 = vmatmul.mubr.bf16.gmra.mrb[0].mxu0 %v4327
  %v4461 = vpop.f32.mrb[0].mxu0
  %v4462 = vadd.f32 0.0, %v4461
  %v4463 = vpop.f32.mrb[0].mxu0
  %v4464 = vpop.f32.mrb[0].mxu0
  %v4465 = vadd.f32 0.0, %v4464
  %v4466 = vpop.f32.mrb[0].mxu0
  %4467 = vmatprep.mubr.bf16.mxu0 0
  %4468 = vmatmul.mubr.bf16.gmra.mrb[0].mxu0 %v4330
  %v4469 = vpop.f32.mrb[0].mxu0
  %v4470 = vadd.f32 0.0, %v4469
  %v4471 = vpop.f32.mrb[0].mxu0
  %v4472 = vpop.f32.mrb[0].mxu0
  %v4473 = vadd.f32 0.0, %v4472
  %v4474 = vpop.f32.mrb[0].mxu0
  %4475 = vmatprep.mubr.bf16.mxu0 0
  %4476 = vmatmul.mubr.bf16.gmra.mrb[0].mxu0 %v4333
  %v4477 = vpop.f32.mrb[0].mxu0
  %v4478 = vadd.f32 0.0, %v4477
  %v4479 = vpop.f32.mrb[0].mxu0
  %v4480 = vpop.f32.mrb[0].mxu0
  %v4481 = vadd.f32 0.0, %v4480
  %v4482 = vpop.f32.mrb[0].mxu0
  %4483 = vmatprep.mubr.bf16.mxu0 0
  %4484 = vmatmul.mubr.bf16.gmra.mrb[0].mxu0 %v4336
  %v4485 = vpop.f32.mrb[0].mxu0
  %v4486 = vadd.f32 0.0, %v4485
  %v4487 = vpop.f32.mrb[0].mxu0
  %v4488 = vpop.f32.mrb[0].mxu0
  %v4489 = vadd.f32 0.0, %v4488
  %v4490 = vpop.f32.mrb[0].mxu0
  %4491 = vmatprep.mubr.bf16.mxu0 0
  %4492 = vmatmul.mubr.bf16.gmra.mrb[0].mxu0 %v4339
  %v4493 = vpop.f32.mrb[0].mxu0
  %v4494 = vadd.f32 0.0, %v4493
  %v4495 = vpop.f32.mrb[0].mxu0
  %v4496 = vpop.f32.mrb[0].mxu0
  %v4497 = vadd.f32 0.0, %v4496
  %v4498 = vpop.f32.mrb[0].mxu0
  %4499 = vmatprep.mubr.bf16.mxu0 0
  %4500 = vmatmul.mubr.bf16.gmra.mrb[0].mxu0 %v4342
  %v4501 = vpop.f32.mrb[0].mxu0
  %v4502 = vadd.f32 0.0, %v4501
  %v4503 = vpop.f32.mrb[0].mxu0
  %v4504 = vpop.f32.mrb[0].mxu0
  %v4505 = vadd.f32 0.0, %v4504
  %v4506 = vpop.f32.mrb[0].mxu0
  %4507 = vmatprep.mubr.bf16.mxu0 0
  %4508 = vmatmul.mubr.bf16.gmra.mrb[0].mxu0 %v4345
  %v4509 = vpop.f32.mrb[0].mxu0
  %v4510 = vadd.f32 0.0, %v4509
  %v4511 = vpop.f32.mrb[0].mxu0
  %v4512 = vpop.f32.mrb[0].mxu0
  %v4513 = vadd.f32 0.0, %v4512
  %v4514 = vpop.f32.mrb[0].mxu0
  %4515 = vmatprep.mubr.bf16.mxu0 0
  %4516 = vmatmul.mubr.bf16.gmra.mrb[0].mxu0 %v4348
  %v4517 = vpop.f32.mrb[0].mxu0
  %v4518 = vadd.f32 0.0, %v4517
  %v4519 = vpop.f32.mrb[0].mxu0
  %v4520 = vpop.f32.mrb[0].mxu0
  %v4521 = vadd.f32 0.0, %v4520
  %v4522 = vpop.f32.mrb[0].mxu0
  %4523 = vmatprep.mubr.bf16.mxu0 0
  %4524 = vmatmul.mubr.bf16.gmra.mrb[0].mxu0 %v4351
  %v4525 = vpop.f32.mrb[0].mxu0
  %v4526 = vadd.f32 0.0, %v4525
  %v4527 = vpop.f32.mrb[0].mxu0
  %v4528 = vpop.f32.mrb[0].mxu0
  %v4529 = vadd.f32 0.0, %v4528
  %v4530 = vpop.f32.mrb[0].mxu0
  %4531 = vmatprep.mubr.bf16.mxu0 0
  %4532 = vmatmul.mubr.bf16.gmra.mrb[0].mxu0 %v4354
  %v4533 = vpop.f32.mrb[0].mxu0
  %v4534 = vadd.f32 0.0, %v4533
  %v4535 = vpop.f32.mrb[0].mxu0
  %v4536 = vpop.f32.mrb[0].mxu0
  %v4537 = vadd.f32 0.0, %v4536
  %v4538 = vpop.f32.mrb[0].mxu0
  %4539 = vmatprep.mubr.bf16.mxu0 0
  %4540 = vmatmul.mubr.bf16.gmra.mrb[0].mxu0 %v4357
  %v4541 = vpop.f32.mrb[0].mxu0
  %v4542 = vadd.f32 0.0, %v4541
  %v4543 = vpop.f32.mrb[0].mxu0
  %v4544 = vpop.f32.mrb[0].mxu0
  %v4545 = vadd.f32 0.0, %v4544
  %v4546 = vpop.f32.mrb[0].mxu0
  %4547 = vmatprep.mubr.bf16.mxu0 0
  %4548 = vmatmul.mubr.bf16.gmra.mrb[0].mxu0 %v4360
  %v4549 = vpop.f32.mrb[0].mxu0
  %v4550 = vadd.f32 0.0, %v4549
  %v4551 = vpop.f32.mrb[0].mxu0
  %v4552 = vpop.f32.mrb[0].mxu0
  %v4553 = vadd.f32 0.0, %v4552
  %v4554 = vpop.f32.mrb[0].mxu0
  %4555 = vmatprep.mubr.bf16.mxu0 0
  %4556 = vmatmul.mubr.bf16.gmra.mrb[0].mxu0 %v4363
  %v4557 = vpop.f32.mrb[0].mxu0
  %v4558 = vadd.f32 0.0, %v4557
  %v4559 = vpop.f32.mrb[0].mxu0
  %v4560 = vpop.f32.mrb[0].mxu0
  %v4561 = vadd.f32 0.0, %v4560
  %v4562 = vpop.f32.mrb[0].mxu0
  %4563 = vmatprep.mubr.bf16.mxu0 0
  %4564 = vmatmul.mubr.bf16.gmra.mrb[0].mxu0 %v4366
  %v4565 = vpop.f32.mrb[0].mxu0
  %v4566 = vadd.f32 0.0, %v4565
  %v4567 = vpop.f32.mrb[0].mxu0
  %v4568 = vpop.f32.mrb[0].mxu0
  %v4569 = vadd.f32 0.0, %v4568
  %v4570 = vpop.f32.mrb[0].mxu0
  %4571 = vmatprep.mubr.bf16.mxu0 0
  %4572 = vmatmul.mubr.bf16.gmra.mrb[0].mxu0 %v4369
  %v4573 = vpop.f32.mrb[0].mxu0
  %v4574 = vadd.f32 0.0, %v4573
  %v4575 = vpop.f32.mrb[0].mxu0
  %v4576 = vpop.f32.mrb[0].mxu0
  %v4577 = vadd.f32 0.0, %v4576
  %v4578 = vpop.f32.mrb[0].mxu0
  %4579 = vmatprep.mubr.bf16.mxu0 0
  %4580 = vmatmul.mubr.bf16.gmra.mrb[0].mxu0 %v4372
  %v4581 = vpop.f32.mrb[0].mxu0
  %v4582 = vadd.f32 0.0, %v4581
  %v4583 = vpop.f32.mrb[0].mxu0
  %v4584 = vpop.f32.mrb[0].mxu0
  %v4585 = vadd.f32 0.0, %v4584
  %v4586 = vpop.f32.mrb[0].mxu0
  %4587 = vmatprep.mubr.bf16.mxu0 0
  %4588 = vmatmul.mubr.bf16.gmra.mrb[0].mxu0 %v4375
  %v4589 = vpop.f32.mrb[0].mxu0
  %v4590 = vadd.f32 0.0, %v4589
  %v4591 = vpop.f32.mrb[0].mxu0
  %v4592 = vpop.f32.mrb[0].mxu0
  %v4593 = vadd.f32 0.0, %v4592
  %v4594 = vpop.f32.mrb[0].mxu0
  %4595 = vmatprep.mubr.bf16.mxu0 0
  %4596 = vmatmul.mubr.bf16.gmra.mrb[0].mxu0 %v4378
  %v4597 = vpop.f32.mrb[0].mxu0
  %v4598 = vadd.f32 0.0, %v4597
  %v4599 = vpop.f32.mrb[0].mxu0
  %v4600 = vpop.f32.mrb[0].mxu0
  %v4601 = vadd.f32 0.0, %v4600
  %v4602 = vpop.f32.mrb[0].mxu0
  %4603 = vmatprep.mubr.bf16.mxu0 0
  %4604 = vmatmul.mubr.bf16.gmra.mrb[0].mxu0 %v4381
  %v4605 = vpop.f32.mrb[0].mxu0
  %v4606 = vadd.f32 0.0, %v4605
  %v4607 = vpop.f32.mrb[0].mxu0
  %v4608 = vpop.f32.mrb[0].mxu0
  %v4609 = vadd.f32 0.0, %v4608
  %v4610 = vpop.f32.mrb[0].mxu0
  %4611 = vmatprep.mubr.bf16.mxu0 0
  %4612 = vmatmul.mubr.bf16.gmra.mrb[0].mxu0 %v4384
  %v4613 = vpop.f32.mrb[0].mxu0
  %v4614 = vadd.f32 0.0, %v4613
  %v4615 = vpop.f32.mrb[0].mxu0
  %v4616 = vpop.f32.mrb[0].mxu0
  %v4617 = vadd.f32 0.0, %v4616
  %v4618 = vpop.f32.mrb[0].mxu0
  %4619 = vmatprep.mubr.bf16.mxu0 0
  %4620 = vmatmul.mubr.bf16.gmra.mrb[0].mxu0 %v4387
  %v4621 = vpop.f32.mrb[0].mxu0
  %v4622 = vadd.f32 0.0, %v4621
  %v4623 = vpop.f32.mrb[0].mxu0
  %v4624 = vpop.f32.mrb[0].mxu0
  %v4625 = vadd.f32 0.0, %v4624
  %v4626 = vpop.f32.mrb[0].mxu0
  %4627 = vmatprep.mubr.bf16.mxu0 0
  %4628 = vmatmul.mubr.bf16.gmra.mrb[0].mxu0 %v4390
  %v4629 = vpop.f32.mrb[0].mxu0
  %v4630 = vadd.f32 0.0, %v4629
  %v4631 = vpop.f32.mrb[0].mxu0
  %v4632 = vpop.f32.mrb[0].mxu0
  %v4633 = vadd.f32 0.0, %v4632
  %v4634 = vpop.f32.mrb[0].mxu0
  %4635 = vmatprep.mubr.bf16.mxu0 0
  %4636 = vmatmul.mubr.bf16.gmra.mrb[0].mxu0 %v4393
  %v4637 = vpop.f32.mrb[0].mxu0
  %v4638 = vadd.f32 0.0, %v4637
  %v4639 = vpop.f32.mrb[0].mxu0
  %v4640 = vpop.f32.mrb[0].mxu0
  %v4641 = vadd.f32 0.0, %v4640
  %v4642 = vpop.f32.mrb[0].mxu0
  %4643 = vmatprep.mubr.bf16.mxu0 0
  %4644 = vmatmul.mubr.bf16.gmra.mrb[0].mxu0 %v4396
  %v4645 = vpop.f32.mrb[0].mxu0
  %v4646 = vadd.f32 0.0, %v4645
  %v4647 = vpop.f32.mrb[0].mxu0
  %v4648 = vpop.f32.mrb[0].mxu0
  %v4649 = vadd.f32 0.0, %v4648
  %v4650 = vpop.f32.mrb[0].mxu0
  %4651 = vmatprep.mubr.bf16.mxu0 0
  %4652 = vmatmul.mubr.bf16.gmra.mrb[0].mxu0 %v4399
  %v4653 = vpop.f32.mrb[0].mxu0
  %v4654 = vadd.f32 0.0, %v4653
  %v4655 = vpop.f32.mrb[0].mxu0
  %v4656 = vpop.f32.mrb[0].mxu0
  %v4657 = vadd.f32 0.0, %v4656
  %v4658 = vpop.f32.mrb[0].mxu0
  %4659 = vmatprep.mubr.bf16.mxu0 0
  %4660 = vmatmul.mubr.bf16.gmra.mrb[0].mxu0 %v4402
  %v4661 = vpop.f32.mrb[0].mxu0
  %v4662 = vadd.f32 0.0, %v4661
  %v4663 = vpop.f32.mrb[0].mxu0
  %v4664 = vpop.f32.mrb[0].mxu0
  %v4665 = vadd.f32 0.0, %v4664
  %v4666 = vpop.f32.mrb[0].mxu0
  %4667 = vmatprep.mubr.bf16.mxu0 0
  %4668 = vmatmul.mubr.bf16.gmra.mrb[0].mxu0 %v4405
  %v4669 = vpop.f32.mrb[0].mxu0
  %v4670 = vadd.f32 0.0, %v4669
  %v4671 = vpop.f32.mrb[0].mxu0
  %v4672 = vpop.f32.mrb[0].mxu0
  %v4673 = vadd.f32 0.0, %v4672
  %v4674 = vpop.f32.mrb[0].mxu0
  %4675 = vmatprep.mubr.bf16.mxu0 0
  %4676 = vmatmul.mubr.bf16.gmra.mrb[0].mxu0 %v4408
  %v4677 = vpop.f32.mrb[0].mxu0
  %v4678 = vadd.f32 0.0, %v4677
  %v4679 = vpop.f32.mrb[0].mxu0
  %v4680 = vpop.f32.mrb[0].mxu0
  %v4681 = vadd.f32 0.0, %v4680
  %v4682 = vpop.f32.mrb[0].mxu0
  %4683 = vmatprep.mubr.bf16.mxu0 0
  %4684 = vmatmul.mubr.bf16.gmra.mrb[0].mxu0 %v4411
  %v4685 = vpop.f32.mrb[0].mxu0
  %v4686 = vadd.f32 0.0, %v4685
  %v4687 = vpop.f32.mrb[0].mxu0
  %v4688 = vpop.f32.mrb[0].mxu0
  %v4689 = vadd.f32 0.0, %v4688
  %v4690 = vpop.f32.mrb[0].mxu0
  %4691 = vmatprep.mubr.bf16.mxu0 0
  %4692 = vmatmul.mubr.bf16.gmra.mrb[0].mxu0 %v4414
  %v4693 = vpop.f32.mrb[0].mxu0
  %v4694 = vadd.f32 0.0, %v4693
  %v4695 = vpop.f32.mrb[0].mxu0
  %v4696 = vpop.f32.mrb[0].mxu0
  %v4697 = vadd.f32 0.0, %v4696
  %v4698 = vpop.f32.mrb[0].mxu0
  %4699 = vmatprep.mubr.bf16.mxu0 0
  %4700 = vmatmul.mubr.bf16.gmra.mrb[0].mxu0 %v4417
  %v4701 = vpop.f32.mrb[0].mxu0
  %v4702 = vadd.f32 0.0, %v4701
  %v4703 = vpop.f32.mrb[0].mxu0
  %v4704 = vpop.f32.mrb[0].mxu0
  %v4705 = vadd.f32 0.0, %v4704
  %v4706 = vpop.f32.mrb[0].mxu0
  %4707 = vdwg.mxu0
  %v4708 = vadd.f32 %v4129, %v4454
  %v4709 = vadd.f32 %v4130, %v4457
  %v4710 = vadd.f32 %v4131, %v4462
  %v4711 = vadd.f32 %v4132, %v4465
  %v4712 = vadd.f32 %v4133, %v4470
  %v4713 = vadd.f32 %v4134, %v4473
  %v4714 = vadd.f32 %v4135, %v4478
  %v4715 = vadd.f32 %v4136, %v4481
  %v4716 = vadd.f32 %v4137, %v4486
  %v4717 = vadd.f32 %v4138, %v4489
  %v4718 = vadd.f32 %v4139, %v4494
  %v4719 = vadd.f32 %v4140, %v4497
  %v4720 = vadd.f32 %v4141, %v4502
  %v4721 = vadd.f32 %v4142, %v4505
  %v4722 = vadd.f32 %v4143, %v4510
  %v4723 = vadd.f32 %v4144, %v4513
  %v4724 = vadd.f32 %v4145, %v4518
  %v4725 = vadd.f32 %v4146, %v4521
  %v4726 = vadd.f32 %v4147, %v4526
  %v4727 = vadd.f32 %v4148, %v4529
  %v4728 = vadd.f32 %v4149, %v4534
  %v4729 = vadd.f32 %v4150, %v4537
  %v4730 = vadd.f32 %v4151, %v4542
  %v4731 = vadd.f32 %v4152, %v4545
  %v4732 = vadd.f32 %v4153, %v4550
  %v4733 = vadd.f32 %v4154, %v4553
  %v4734 = vadd.f32 %v4155, %v4558
  %v4735 = vadd.f32 %v4156, %v4561
  %v4736 = vadd.f32 %v4157, %v4566
  %v4737 = vadd.f32 %v4158, %v4569
  %v4738 = vadd.f32 %v4159, %v4574
  %v4739 = vadd.f32 %v4160, %v4577
  %v4740 = vadd.f32 %v4161, %v4582
  %v4741 = vadd.f32 %v4162, %v4585
  %v4742 = vadd.f32 %v4163, %v4590
  %v4743 = vadd.f32 %v4164, %v4593
  %v4744 = vadd.f32 %v4165, %v4598
  %v4745 = vadd.f32 %v4166, %v4601
  %v4746 = vadd.f32 %v4167, %v4606
  %v4747 = vadd.f32 %v4168, %v4609
  %v4748 = vadd.f32 %v4169, %v4614
  %v4749 = vadd.f32 %v4170, %v4617
  %v4750 = vadd.f32 %v4171, %v4622
  %v4751 = vadd.f32 %v4172, %v4625
  %v4752 = vadd.f32 %v4173, %v4630
  %v4753 = vadd.f32 %v4174, %v4633
  %v4754 = vadd.f32 %v4175, %v4638
  %v4755 = vadd.f32 %v4176, %v4641
  %v4756 = vadd.f32 %v4177, %v4646
  %v4757 = vadd.f32 %v4178, %v4649
  %v4758 = vadd.f32 %v4179, %v4654
  %v4759 = vadd.f32 %v4180, %v4657
  %v4760 = vadd.f32 %v4181, %v4662
  %v4761 = vadd.f32 %v4182, %v4665
  %v4762 = vadd.f32 %v4183, %v4670
  %v4763 = vadd.f32 %v4184, %v4673
  %v4764 = vadd.f32 %v4185, %v4678
  %v4765 = vadd.f32 %v4186, %v4681
  %v4766 = vadd.f32 %v4187, %v4686
  %v4767 = vadd.f32 %v4188, %v4689
  %v4768 = vadd.f32 %v4189, %v4694
  %v4769 = vadd.f32 %v4190, %v4697
  %v4770 = vadd.f32 %v4191, %v4702
  %v4771 = vadd.f32 %v4192, %v4705
  %v4772 = vld [vmem:[%s4193 + $0x1] sm:$0xff]
  %v4773 = vld [vmem:[%s4193 + $0x9] sm:$0xff]
  %v4774 = vld [vmem:[%s4193 + $0x19] sm:$0xff]
  %v4775 = vld [vmem:[%s4193 + $0x21] sm:$0xff]
  %v4776 = vld [vmem:[%s4193 + $0x31] sm:$0xff]
  %v4777 = vld [vmem:[%s4193 + $0x39] sm:$0xff]
  %v4778 = vld [vmem:[%s4193 + $0x49] sm:$0xff]
  %v4779 = vld [vmem:[%s4193 + $0x51] sm:$0xff]
  %v4780 = vld [vmem:[%s4193 + $0x61] sm:$0xff]
  %v4781 = vld [vmem:[%s4193 + $0x69] sm:$0xff]
  %v4782 = vld [vmem:[%s4193 + $0x79] sm:$0xff]
  %v4783 = vld [vmem:[%s4193 + $0x81] sm:$0xff]
  %v4784 = vld [vmem:[%s4193 + $0x91] sm:$0xff]
  %v4785 = vld [vmem:[%s4193 + $0x99] sm:$0xff]
  %v4786 = vld [vmem:[%s4193 + $0xa9] sm:$0xff]
  %v4787 = vld [vmem:[%s4193 + $0xb1] sm:$0xff]
  %v4788 = vld [vmem:[%s4193 + $0xc1] sm:$0xff]
  %v4789 = vld [vmem:[%s4193 + $0xc9] sm:$0xff]
  %v4790 = vld [vmem:[%s4193 + $0xd9] sm:$0xff]
  %v4791 = vld [vmem:[%s4193 + $0xe1] sm:$0xff]
  %v4792 = vld [vmem:[%s4193 + $0xf1] sm:$0xff]
  %v4793 = vld [vmem:[%s4193 + $0xf9] sm:$0xff]
  %v4794 = vld [vmem:[%s4193 + $0x109] sm:$0xff]
  %v4795 = vld [vmem:[%s4193 + $0x111] sm:$0xff]
  %v4796 = vld [vmem:[%s4193 + $0x121] sm:$0xff]
  %v4797 = vld [vmem:[%s4193 + $0x129] sm:$0xff]
  %v4798 = vld [vmem:[%s4193 + $0x139] sm:$0xff]
  %v4799 = vld [vmem:[%s4193 + $0x141] sm:$0xff]
  %v4800 = vld [vmem:[%s4193 + $0x151] sm:$0xff]
  %v4801 = vld [vmem:[%s4193 + $0x159] sm:$0xff]
  %v4802 = vld [vmem:[%s4193 + $0x169] sm:$0xff]
  %v4803 = vld [vmem:[%s4193 + $0x171] sm:$0xff]
  %v4804 = vld [vmem:[%s4193 + $0x1b1] sm:$0xff]
  %v4805 = vld [vmem:[%s4193 + $0x1b9] sm:$0xff]
  %v4806 = vld [vmem:[%s4193 + $0x1c9] sm:$0xff]
  %v4807 = vld [vmem:[%s4193 + $0x1d1] sm:$0xff]
  %v4808 = vld [vmem:[%s4193 + $0x1e1] sm:$0xff]
  %v4809 = vld [vmem:[%s4193 + $0x1e9] sm:$0xff]
  %v4810 = vld [vmem:[%s4193 + $0x1f9] sm:$0xff]
  %v4811 = vld [vmem:[%s4193 + $0x201] sm:$0xff]
  %v4812 = vld [vmem:[%s4193 + $0x211] sm:$0xff]
  %v4813 = vld [vmem:[%s4193 + $0x219] sm:$0xff]
  %v4814 = vld [vmem:[%s4193 + $0x229] sm:$0xff]
  %v4815 = vld [vmem:[%s4193 + $0x231] sm:$0xff]
  %v4816 = vld [vmem:[%s4193 + $0x241] sm:$0xff]
  %v4817 = vld [vmem:[%s4193 + $0x249] sm:$0xff]
  %v4818 = vld [vmem:[%s4193 + $0x259] sm:$0xff]
  %v4819 = vld [vmem:[%s4193 + $0x261] sm:$0xff]
  %v4820 = vld [vmem:[%s4193 + $0x271] sm:$0xff]
  %v4821 = vld [vmem:[%s4193 + $0x279] sm:$0xff]
  %v4822 = vld [vmem:[%s4193 + $0x289] sm:$0xff]
  %v4823 = vld [vmem:[%s4193 + $0x291] sm:$0xff]
  %v4824 = vld [vmem:[%s4193 + $0x2a1] sm:$0xff]
  %v4825 = vld [vmem:[%s4193 + $0x2a9] sm:$0xff]
  %v4826 = vld [vmem:[%s4193 + $0x2b9] sm:$0xff]
  %v4827 = vld [vmem:[%s4193 + $0x2c1] sm:$0xff]
  %v4828 = vld [vmem:[%s4193 + $0x2d1] sm:$0xff]
  %v4829 = vld [vmem:[%s4193 + $0x2d9] sm:$0xff]
  %v4830 = vld [vmem:[%s4193 + $0x2e9] sm:$0xff]
  %v4831 = vld [vmem:[%s4193 + $0x2f1] sm:$0xff]
  %v4832 = vld [vmem:[%s4193 + $0x301] sm:$0xff]
  %v4833 = vld [vmem:[%s4193 + $0x309] sm:$0xff]
  %v4834 = vld [vmem:[%s4193 + $0x319] sm:$0xff]
  %v4835 = vld [vmem:[%s4193 + $0x321] sm:$0xff]
  %v4836 = vpack.c.bf16 %v4773, %v4772
  %v4837 = vpack.c.bf16 %v4775, %v4774
  %v4838 = vpack.c.bf16 %v4777, %v4776
  %v4839 = vpack.c.bf16 %v4779, %v4778
  %v4840 = vpack.c.bf16 %v4781, %v4780
  %v4841 = vpack.c.bf16 %v4783, %v4782
  %v4842 = vpack.c.bf16 %v4785, %v4784
  %v4843 = vpack.c.bf16 %v4787, %v4786
  %v4844 = vpack.c.bf16 %v4789, %v4788
  %v4845 = vpack.c.bf16 %v4791, %v4790
  %v4846 = vpack.c.bf16 %v4793, %v4792
  %v4847 = vpack.c.bf16 %v4795, %v4794
  %v4848 = vpack.c.bf16 %v4797, %v4796
  %v4849 = vpack.c.bf16 %v4799, %v4798
  %v4850 = vpack.c.bf16 %v4801, %v4800
  %v4851 = vpack.c.bf16 %v4803, %v4802
  %v4852 = vpack.c.bf16 %v4805, %v4804
  %v4853 = vpack.c.bf16 %v4807, %v4806
  %v4854 = vpack.c.bf16 %v4809, %v4808
  %v4855 = vpack.c.bf16 %v4811, %v4810
  %v4856 = vpack.c.bf16 %v4813, %v4812
  %v4857 = vpack.c.bf16 %v4815, %v4814
  %v4858 = vpack.c.bf16 %v4817, %v4816
  %v4859 = vpack.c.bf16 %v4819, %v4818
  %v4860 = vpack.c.bf16 %v4821, %v4820
  %v4861 = vpack.c.bf16 %v4823, %v4822
  %v4862 = vpack.c.bf16 %v4825, %v4824
  %v4863 = vpack.c.bf16 %v4827, %v4826
  %v4864 = vpack.c.bf16 %v4829, %v4828
  %v4865 = vpack.c.bf16 %v4831, %v4830
  %v4866 = vpack.c.bf16 %v4833, %v4832
  %v4867 = vpack.c.bf16 %v4835, %v4834
  %s4868 = scalar_lea.vmem %s3, 224
  %v4869 = vld [vmem:[%s4868] sm:$0xf]
  %v4870 = vld [vmem:[%s4868 + $0x4] sm:$0xf]
  %v4871 = vld [vmem:[%s4868 + $0x8] sm:$0xf]
  %v4872 = vld [vmem:[%s4868 + $0xc] sm:$0xf]
  %v4873 = vld [vmem:[%s4868 + $0x10] sm:$0xf]
  %v4874 = vld [vmem:[%s4868 + $0x14] sm:$0xf]
  %v4875 = vld [vmem:[%s4868 + $0x18] sm:$0xf]
  %v4876 = vld [vmem:[%s4868 + $0x1c] sm:$0xf]
  %v4885 = vunpack.c.l.b16 %v4869
  %v4886 = vunpack.c.l.b16 %v4870
  %v4887 = vunpack.c.l.b16 %v4871
  %v4888 = vunpack.c.l.b16 %v4872
  %v4889 = vunpack.c.l.b16 %v4873
  %v4890 = vunpack.c.l.b16 %v4874
  %v4891 = vunpack.c.l.b16 %v4875
  %v4892 = vunpack.c.l.b16 %v4876
  %v4893 = vpack.c.b16 %v4886, %v4885
  %v4894 = vpack.c.b16 %v4888, %v4887
  %v4895 = vpack.c.b16 %v4890, %v4889
  %v4896 = vpack.c.b16 %v4892, %v4891
  %v4902 = vsel %vm701, %v4836, 0
  %v4905 = vsel %vm701, %v4837, 0
  %v4908 = vsel %vm701, %v4838, 0
  %v4911 = vsel %vm701, %v4839, 0
  %v4914 = vsel %vm701, %v4840, 0
  %v4917 = vsel %vm701, %v4841, 0
  %v4920 = vsel %vm701, %v4842, 0
  %v4923 = vsel %vm701, %v4843, 0
  %v4926 = vsel %vm701, %v4844, 0
  %v4929 = vsel %vm701, %v4845, 0
  %v4932 = vsel %vm701, %v4846, 0
  %v4935 = vsel %vm701, %v4847, 0
  %v4938 = vsel %vm701, %v4848, 0
  %v4941 = vsel %vm701, %v4849, 0
  %v4944 = vsel %vm701, %v4850, 0
  %v4947 = vsel %vm701, %v4851, 0
  %v4950 = vsel %vm701, %v4852, 0
  %v4953 = vsel %vm701, %v4853, 0
  %v4956 = vsel %vm701, %v4854, 0
  %v4959 = vsel %vm701, %v4855, 0
  %v4962 = vsel %vm701, %v4856, 0
  %v4965 = vsel %vm701, %v4857, 0
  %v4968 = vsel %vm701, %v4858, 0
  %v4971 = vsel %vm701, %v4859, 0
  %v4974 = vsel %vm701, %v4860, 0
  %v4977 = vsel %vm701, %v4861, 0
  %v4980 = vsel %vm701, %v4862, 0
  %v4983 = vsel %vm701, %v4863, 0
  %v4986 = vsel %vm701, %v4864, 0
  %v4989 = vsel %vm701, %v4865, 0
  %v4992 = vsel %vm701, %v4866, 0
  %v4995 = vsel %vm701, %v4867, 0
  %4997 = vmatprep.subr.bf16.mxu0 0
  %4998 = vmatpush1.bf16.msra.mxu0 %v4893
  %4999 = vmatprep.subr.bf16.mxu0 0
  %5000 = vmatpush1.bf16.msra.mxu0 %v4894
  %5001 = vmatprep.subr.bf16.mxu0 0
  %5002 = vmatpush1.bf16.msra.mxu0 %v4895
  %5003 = vmatprep.subr.bf16.mxu0 0
  %5004 = vmatpush1.bf16.msra.mxu0 %v4896
  %5005 = vmatprep.subr.bf16.mxu0 0
  %5006 = vmatpush1.bf16.msra.mxu0 0
  %5007 = vmatprep.subr.bf16.mxu0 0
  %5008 = vmatpush1.bf16.msra.mxu0 0
  %5009 = vmatprep.subr.bf16.mxu0 0
  %5010 = vmatpush1.bf16.msra.mxu0 0
  %5011 = vmatprep.subr.bf16.mxu0 0
  %5012 = vmatpush1.bf16.msra.mxu0 0
  %5013 = vmatprep.subr.bf16.mxu0 0
  %5014 = vmatpush1.bf16.msra.mxu0 0
  %5015 = vmatprep.subr.bf16.mxu0 0
  %5016 = vmatpush1.bf16.msra.mxu0 0
  %5017 = vmatprep.subr.bf16.mxu0 0
  %5018 = vmatpush1.bf16.msra.mxu0 0
  %5019 = vmatprep.subr.bf16.mxu0 0
  %5020 = vmatpush1.bf16.msra.mxu0 0
  %5021 = vmatprep.subr.bf16.mxu0 0
  %5022 = vmatpush1.bf16.msra.mxu0 0
  %5023 = vmatprep.subr.bf16.mxu0 0
  %5024 = vmatpush1.bf16.msra.mxu0 0
  %5025 = vmatprep.subr.bf16.mxu0 0
  %5026 = vmatpush1.bf16.msra.mxu0 0
  %5027 = vmatprep.subr.bf16.mxu0 0
  %5028 = vmatpush1.bf16.msra.mxu0 0
  %5029 = vmatprep.mubr.bf16.mxu0 0
  %5030 = vmatmul.mubr.bf16.gmra.mrb[0].mxu0 %v4902
  %v5031 = vpop.f32.mrb[0].mxu0
  %v5032 = vadd.f32 0.0, %v5031
  %v5033 = vpop.f32.mrb[0].mxu0
  %v5034 = vpop.f32.mrb[0].mxu0
  %v5035 = vadd.f32 0.0, %v5034
  %v5036 = vpop.f32.mrb[0].mxu0
  %5037 = vmatprep.mubr.bf16.mxu0 0
  %5038 = vmatmul.mubr.bf16.gmra.mrb[0].mxu0 %v4905
  %v5039 = vpop.f32.mrb[0].mxu0
  %v5040 = vadd.f32 0.0, %v5039
  %v5041 = vpop.f32.mrb[0].mxu0
  %v5042 = vpop.f32.mrb[0].mxu0
  %v5043 = vadd.f32 0.0, %v5042
  %v5044 = vpop.f32.mrb[0].mxu0
  %5045 = vmatprep.mubr.bf16.mxu0 0
  %5046 = vmatmul.mubr.bf16.gmra.mrb[0].mxu0 %v4908
  %v5047 = vpop.f32.mrb[0].mxu0
  %v5048 = vadd.f32 0.0, %v5047
  %v5049 = vpop.f32.mrb[0].mxu0
  %v5050 = vpop.f32.mrb[0].mxu0
  %v5051 = vadd.f32 0.0, %v5050
  %v5052 = vpop.f32.mrb[0].mxu0
  %5053 = vmatprep.mubr.bf16.mxu0 0
  %5054 = vmatmul.mubr.bf16.gmra.mrb[0].mxu0 %v4911
  %v5055 = vpop.f32.mrb[0].mxu0
  %v5056 = vadd.f32 0.0, %v5055
  %v5057 = vpop.f32.mrb[0].mxu0
  %v5058 = vpop.f32.mrb[0].mxu0
  %v5059 = vadd.f32 0.0, %v5058
  %v5060 = vpop.f32.mrb[0].mxu0
  %5061 = vmatprep.mubr.bf16.mxu0 0
  %5062 = vmatmul.mubr.bf16.gmra.mrb[0].mxu0 %v4914
  %v5063 = vpop.f32.mrb[0].mxu0
  %v5064 = vadd.f32 0.0, %v5063
  %v5065 = vpop.f32.mrb[0].mxu0
  %v5066 = vpop.f32.mrb[0].mxu0
  %v5067 = vadd.f32 0.0, %v5066
  %v5068 = vpop.f32.mrb[0].mxu0
  %5069 = vmatprep.mubr.bf16.mxu0 0
  %5070 = vmatmul.mubr.bf16.gmra.mrb[0].mxu0 %v4917
  %v5071 = vpop.f32.mrb[0].mxu0
  %v5072 = vadd.f32 0.0, %v5071
  %v5073 = vpop.f32.mrb[0].mxu0
  %v5074 = vpop.f32.mrb[0].mxu0
  %v5075 = vadd.f32 0.0, %v5074
  %v5076 = vpop.f32.mrb[0].mxu0
  %5077 = vmatprep.mubr.bf16.mxu0 0
  %5078 = vmatmul.mubr.bf16.gmra.mrb[0].mxu0 %v4920
  %v5079 = vpop.f32.mrb[0].mxu0
  %v5080 = vadd.f32 0.0, %v5079
  %v5081 = vpop.f32.mrb[0].mxu0
  %v5082 = vpop.f32.mrb[0].mxu0
  %v5083 = vadd.f32 0.0, %v5082
  %v5084 = vpop.f32.mrb[0].mxu0
  %5085 = vmatprep.mubr.bf16.mxu0 0
  %5086 = vmatmul.mubr.bf16.gmra.mrb[0].mxu0 %v4923
  %v5087 = vpop.f32.mrb[0].mxu0
  %v5088 = vadd.f32 0.0, %v5087
  %v5089 = vpop.f32.mrb[0].mxu0
  %v5090 = vpop.f32.mrb[0].mxu0
  %v5091 = vadd.f32 0.0, %v5090
  %v5092 = vpop.f32.mrb[0].mxu0
  %5093 = vmatprep.mubr.bf16.mxu0 0
  %5094 = vmatmul.mubr.bf16.gmra.mrb[0].mxu0 %v4926
  %v5095 = vpop.f32.mrb[0].mxu0
  %v5096 = vadd.f32 0.0, %v5095
  %v5097 = vpop.f32.mrb[0].mxu0
  %v5098 = vpop.f32.mrb[0].mxu0
  %v5099 = vadd.f32 0.0, %v5098
  %v5100 = vpop.f32.mrb[0].mxu0
  %5101 = vmatprep.mubr.bf16.mxu0 0
  %5102 = vmatmul.mubr.bf16.gmra.mrb[0].mxu0 %v4929
  %v5103 = vpop.f32.mrb[0].mxu0
  %v5104 = vadd.f32 0.0, %v5103
  %v5105 = vpop.f32.mrb[0].mxu0
  %v5106 = vpop.f32.mrb[0].mxu0
  %v5107 = vadd.f32 0.0, %v5106
  %v5108 = vpop.f32.mrb[0].mxu0
  %5109 = vmatprep.mubr.bf16.mxu0 0
  %5110 = vmatmul.mubr.bf16.gmra.mrb[0].mxu0 %v4932
  %v5111 = vpop.f32.mrb[0].mxu0
  %v5112 = vadd.f32 0.0, %v5111
  %v5113 = vpop.f32.mrb[0].mxu0
  %v5114 = vpop.f32.mrb[0].mxu0
  %v5115 = vadd.f32 0.0, %v5114
  %v5116 = vpop.f32.mrb[0].mxu0
  %5117 = vmatprep.mubr.bf16.mxu0 0
  %5118 = vmatmul.mubr.bf16.gmra.mrb[0].mxu0 %v4935
  %v5119 = vpop.f32.mrb[0].mxu0
  %v5120 = vadd.f32 0.0, %v5119
  %v5121 = vpop.f32.mrb[0].mxu0
  %v5122 = vpop.f32.mrb[0].mxu0
  %v5123 = vadd.f32 0.0, %v5122
  %v5124 = vpop.f32.mrb[0].mxu0
  %5125 = vmatprep.mubr.bf16.mxu0 0
  %5126 = vmatmul.mubr.bf16.gmra.mrb[0].mxu0 %v4938
  %v5127 = vpop.f32.mrb[0].mxu0
  %v5128 = vadd.f32 0.0, %v5127
  %v5129 = vpop.f32.mrb[0].mxu0
  %v5130 = vpop.f32.mrb[0].mxu0
  %v5131 = vadd.f32 0.0, %v5130
  %v5132 = vpop.f32.mrb[0].mxu0
  %5133 = vmatprep.mubr.bf16.mxu0 0
  %5134 = vmatmul.mubr.bf16.gmra.mrb[0].mxu0 %v4941
  %v5135 = vpop.f32.mrb[0].mxu0
  %v5136 = vadd.f32 0.0, %v5135
  %v5137 = vpop.f32.mrb[0].mxu0
  %v5138 = vpop.f32.mrb[0].mxu0
  %v5139 = vadd.f32 0.0, %v5138
  %v5140 = vpop.f32.mrb[0].mxu0
  %5141 = vmatprep.mubr.bf16.mxu0 0
  %5142 = vmatmul.mubr.bf16.gmra.mrb[0].mxu0 %v4944
  %v5143 = vpop.f32.mrb[0].mxu0
  %v5144 = vadd.f32 0.0, %v5143
  %v5145 = vpop.f32.mrb[0].mxu0
  %v5146 = vpop.f32.mrb[0].mxu0
  %v5147 = vadd.f32 0.0, %v5146
  %v5148 = vpop.f32.mrb[0].mxu0
  %5149 = vmatprep.mubr.bf16.mxu0 0
  %5150 = vmatmul.mubr.bf16.gmra.mrb[0].mxu0 %v4947
  %v5151 = vpop.f32.mrb[0].mxu0
  %v5152 = vadd.f32 0.0, %v5151
  %v5153 = vpop.f32.mrb[0].mxu0
  %v5154 = vpop.f32.mrb[0].mxu0
  %v5155 = vadd.f32 0.0, %v5154
  %v5156 = vpop.f32.mrb[0].mxu0
  %5157 = vmatprep.mubr.bf16.mxu0 0
  %5158 = vmatmul.mubr.bf16.gmra.mrb[0].mxu0 %v4950
  %v5159 = vpop.f32.mrb[0].mxu0
  %v5160 = vadd.f32 0.0, %v5159
  %v5161 = vpop.f32.mrb[0].mxu0
  %v5162 = vpop.f32.mrb[0].mxu0
  %v5163 = vadd.f32 0.0, %v5162
  %v5164 = vpop.f32.mrb[0].mxu0
  %5165 = vmatprep.mubr.bf16.mxu0 0
  %5166 = vmatmul.mubr.bf16.gmra.mrb[0].mxu0 %v4953
  %v5167 = vpop.f32.mrb[0].mxu0
  %v5168 = vadd.f32 0.0, %v5167
  %v5169 = vpop.f32.mrb[0].mxu0
  %v5170 = vpop.f32.mrb[0].mxu0
  %v5171 = vadd.f32 0.0, %v5170
  %v5172 = vpop.f32.mrb[0].mxu0
  %5173 = vmatprep.mubr.bf16.mxu0 0
  %5174 = vmatmul.mubr.bf16.gmra.mrb[0].mxu0 %v4956
  %v5175 = vpop.f32.mrb[0].mxu0
  %v5176 = vadd.f32 0.0, %v5175
  %v5177 = vpop.f32.mrb[0].mxu0
  %v5178 = vpop.f32.mrb[0].mxu0
  %v5179 = vadd.f32 0.0, %v5178
  %v5180 = vpop.f32.mrb[0].mxu0
  %5181 = vmatprep.mubr.bf16.mxu0 0
  %5182 = vmatmul.mubr.bf16.gmra.mrb[0].mxu0 %v4959
  %v5183 = vpop.f32.mrb[0].mxu0
  %v5184 = vadd.f32 0.0, %v5183
  %v5185 = vpop.f32.mrb[0].mxu0
  %v5186 = vpop.f32.mrb[0].mxu0
  %v5187 = vadd.f32 0.0, %v5186
  %v5188 = vpop.f32.mrb[0].mxu0
  %5189 = vmatprep.mubr.bf16.mxu0 0
  %5190 = vmatmul.mubr.bf16.gmra.mrb[0].mxu0 %v4962
  %v5191 = vpop.f32.mrb[0].mxu0
  %v5192 = vadd.f32 0.0, %v5191
  %v5193 = vpop.f32.mrb[0].mxu0
  %v5194 = vpop.f32.mrb[0].mxu0
  %v5195 = vadd.f32 0.0, %v5194
  %v5196 = vpop.f32.mrb[0].mxu0
  %5197 = vmatprep.mubr.bf16.mxu0 0
  %5198 = vmatmul.mubr.bf16.gmra.mrb[0].mxu0 %v4965
  %v5199 = vpop.f32.mrb[0].mxu0
  %v5200 = vadd.f32 0.0, %v5199
  %v5201 = vpop.f32.mrb[0].mxu0
  %v5202 = vpop.f32.mrb[0].mxu0
  %v5203 = vadd.f32 0.0, %v5202
  %v5204 = vpop.f32.mrb[0].mxu0
  %5205 = vmatprep.mubr.bf16.mxu0 0
  %5206 = vmatmul.mubr.bf16.gmra.mrb[0].mxu0 %v4968
  %v5207 = vpop.f32.mrb[0].mxu0
  %v5208 = vadd.f32 0.0, %v5207
  %v5209 = vpop.f32.mrb[0].mxu0
  %v5210 = vpop.f32.mrb[0].mxu0
  %v5211 = vadd.f32 0.0, %v5210
  %v5212 = vpop.f32.mrb[0].mxu0
  %5213 = vmatprep.mubr.bf16.mxu0 0
  %5214 = vmatmul.mubr.bf16.gmra.mrb[0].mxu0 %v4971
  %v5215 = vpop.f32.mrb[0].mxu0
  %v5216 = vadd.f32 0.0, %v5215
  %v5217 = vpop.f32.mrb[0].mxu0
  %v5218 = vpop.f32.mrb[0].mxu0
  %v5219 = vadd.f32 0.0, %v5218
  %v5220 = vpop.f32.mrb[0].mxu0
  %5221 = vmatprep.mubr.bf16.mxu0 0
  %5222 = vmatmul.mubr.bf16.gmra.mrb[0].mxu0 %v4974
  %v5223 = vpop.f32.mrb[0].mxu0
  %v5224 = vadd.f32 0.0, %v5223
  %v5225 = vpop.f32.mrb[0].mxu0
  %v5226 = vpop.f32.mrb[0].mxu0
  %v5227 = vadd.f32 0.0, %v5226
  %v5228 = vpop.f32.mrb[0].mxu0
  %5229 = vmatprep.mubr.bf16.mxu0 0
  %5230 = vmatmul.mubr.bf16.gmra.mrb[0].mxu0 %v4977
  %v5231 = vpop.f32.mrb[0].mxu0
  %v5232 = vadd.f32 0.0, %v5231
  %v5233 = vpop.f32.mrb[0].mxu0
  %v5234 = vpop.f32.mrb[0].mxu0
  %v5235 = vadd.f32 0.0, %v5234
  %v5236 = vpop.f32.mrb[0].mxu0
  %5237 = vmatprep.mubr.bf16.mxu0 0
  %5238 = vmatmul.mubr.bf16.gmra.mrb[0].mxu0 %v4980
  %v5239 = vpop.f32.mrb[0].mxu0
  %v5240 = vadd.f32 0.0, %v5239
  %v5241 = vpop.f32.mrb[0].mxu0
  %v5242 = vpop.f32.mrb[0].mxu0
  %v5243 = vadd.f32 0.0, %v5242
  %v5244 = vpop.f32.mrb[0].mxu0
  %5245 = vmatprep.mubr.bf16.mxu0 0
  %5246 = vmatmul.mubr.bf16.gmra.mrb[0].mxu0 %v4983
  %v5247 = vpop.f32.mrb[0].mxu0
  %v5248 = vadd.f32 0.0, %v5247
  %v5249 = vpop.f32.mrb[0].mxu0
  %v5250 = vpop.f32.mrb[0].mxu0
  %v5251 = vadd.f32 0.0, %v5250
  %v5252 = vpop.f32.mrb[0].mxu0
  %5253 = vmatprep.mubr.bf16.mxu0 0
  %5254 = vmatmul.mubr.bf16.gmra.mrb[0].mxu0 %v4986
  %v5255 = vpop.f32.mrb[0].mxu0
  %v5256 = vadd.f32 0.0, %v5255
  %v5257 = vpop.f32.mrb[0].mxu0
  %v5258 = vpop.f32.mrb[0].mxu0
  %v5259 = vadd.f32 0.0, %v5258
  %v5260 = vpop.f32.mrb[0].mxu0
  %5261 = vmatprep.mubr.bf16.mxu0 0
  %5262 = vmatmul.mubr.bf16.gmra.mrb[0].mxu0 %v4989
  %v5263 = vpop.f32.mrb[0].mxu0
  %v5264 = vadd.f32 0.0, %v5263
  %v5265 = vpop.f32.mrb[0].mxu0
  %v5266 = vpop.f32.mrb[0].mxu0
  %v5267 = vadd.f32 0.0, %v5266
  %v5268 = vpop.f32.mrb[0].mxu0
  %5269 = vmatprep.mubr.bf16.mxu0 0
  %5270 = vmatmul.mubr.bf16.gmra.mrb[0].mxu0 %v4992
  %v5271 = vpop.f32.mrb[0].mxu0
  %v5272 = vadd.f32 0.0, %v5271
  %v5273 = vpop.f32.mrb[0].mxu0
  %v5274 = vpop.f32.mrb[0].mxu0
  %v5275 = vadd.f32 0.0, %v5274
  %v5276 = vpop.f32.mrb[0].mxu0
  %5277 = vmatprep.mubr.bf16.mxu0 0
  %5278 = vmatmul.mubr.bf16.gmra.mrb[0].mxu0 %v4995
  %v5279 = vpop.f32.mrb[0].mxu0
  %v5280 = vadd.f32 0.0, %v5279
  %v5281 = vpop.f32.mrb[0].mxu0
  %v5282 = vpop.f32.mrb[0].mxu0
  %v5283 = vadd.f32 0.0, %v5282
  %v5284 = vpop.f32.mrb[0].mxu0
  %5285 = vdwg.mxu0
  %v5286 = vadd.f32 %v4708, %v5032
  %v5287 = vadd.f32 %v4709, %v5035
  %v5288 = vadd.f32 %v4710, %v5040
  %v5289 = vadd.f32 %v4711, %v5043
  %v5290 = vadd.f32 %v4712, %v5048
  %v5291 = vadd.f32 %v4713, %v5051
  %v5292 = vadd.f32 %v4714, %v5056
  %v5293 = vadd.f32 %v4715, %v5059
  %v5294 = vadd.f32 %v4716, %v5064
  %v5295 = vadd.f32 %v4717, %v5067
  %v5296 = vadd.f32 %v4718, %v5072
  %v5297 = vadd.f32 %v4719, %v5075
  %v5298 = vadd.f32 %v4720, %v5080
  %v5299 = vadd.f32 %v4721, %v5083
  %v5300 = vadd.f32 %v4722, %v5088
  %v5301 = vadd.f32 %v4723, %v5091
  %v5302 = vadd.f32 %v4724, %v5096
  %v5303 = vadd.f32 %v4725, %v5099
  %v5304 = vadd.f32 %v4726, %v5104
  %v5305 = vadd.f32 %v4727, %v5107
  %v5306 = vadd.f32 %v4728, %v5112
  %v5307 = vadd.f32 %v4729, %v5115
  %v5308 = vadd.f32 %v4730, %v5120
  %v5309 = vadd.f32 %v4731, %v5123
  %v5310 = vadd.f32 %v4732, %v5128
  %v5311 = vadd.f32 %v4733, %v5131
  %v5312 = vadd.f32 %v4734, %v5136
  %v5313 = vadd.f32 %v4735, %v5139
  %v5314 = vadd.f32 %v4736, %v5144
  %v5315 = vadd.f32 %v4737, %v5147
  %v5316 = vadd.f32 %v4738, %v5152
  %v5317 = vadd.f32 %v4739, %v5155
  %v5318 = vadd.f32 %v4740, %v5160
  %v5319 = vadd.f32 %v4741, %v5163
  %v5320 = vadd.f32 %v4742, %v5168
  %v5321 = vadd.f32 %v4743, %v5171
  %v5322 = vadd.f32 %v4744, %v5176
  %v5323 = vadd.f32 %v4745, %v5179
  %v5324 = vadd.f32 %v4746, %v5184
  %v5325 = vadd.f32 %v4747, %v5187
  %v5326 = vadd.f32 %v4748, %v5192
  %v5327 = vadd.f32 %v4749, %v5195
  %v5328 = vadd.f32 %v4750, %v5200
  %v5329 = vadd.f32 %v4751, %v5203
  %v5330 = vadd.f32 %v4752, %v5208
  %v5331 = vadd.f32 %v4753, %v5211
  %v5332 = vadd.f32 %v4754, %v5216
  %v5333 = vadd.f32 %v4755, %v5219
  %v5334 = vadd.f32 %v4756, %v5224
  %v5335 = vadd.f32 %v4757, %v5227
  %v5336 = vadd.f32 %v4758, %v5232
  %v5337 = vadd.f32 %v4759, %v5235
  %v5338 = vadd.f32 %v4760, %v5240
  %v5339 = vadd.f32 %v4761, %v5243
  %v5340 = vadd.f32 %v4762, %v5248
  %v5341 = vadd.f32 %v4763, %v5251
  %v5342 = vadd.f32 %v4764, %v5256
  %v5343 = vadd.f32 %v4765, %v5259
  %v5344 = vadd.f32 %v4766, %v5264
  %v5345 = vadd.f32 %v4767, %v5267
  %v5346 = vadd.f32 %v4768, %v5272
  %v5347 = vadd.f32 %v4769, %v5275
  %v5348 = vadd.f32 %v4770, %v5280
  %v5349 = vadd.f32 %v4771, %v5283
  %v5350 = vld [vmem:[%s4193 + $0x2] sm:$0xff]
  %v5351 = vld [vmem:[%s4193 + $0xa] sm:$0xff]
  %v5352 = vld [vmem:[%s4193 + $0x1a] sm:$0xff]
  %v5353 = vld [vmem:[%s4193 + $0x22] sm:$0xff]
  %v5354 = vld [vmem:[%s4193 + $0x32] sm:$0xff]
  %v5355 = vld [vmem:[%s4193 + $0x3a] sm:$0xff]
  %v5356 = vld [vmem:[%s4193 + $0x4a] sm:$0xff]
  %v5357 = vld [vmem:[%s4193 + $0x52] sm:$0xff]
  %v5358 = vld [vmem:[%s4193 + $0x62] sm:$0xff]
  %v5359 = vld [vmem:[%s4193 + $0x6a] sm:$0xff]
  %v5360 = vld [vmem:[%s4193 + $0x7a] sm:$0xff]
  %v5361 = vld [vmem:[%s4193 + $0x82] sm:$0xff]
  %v5362 = vld [vmem:[%s4193 + $0x92] sm:$0xff]
  %v5363 = vld [vmem:[%s4193 + $0x9a] sm:$0xff]
  %v5364 = vld [vmem:[%s4193 + $0xaa] sm:$0xff]
  %v5365 = vld [vmem:[%s4193 + $0xb2] sm:$0xff]
  %v5366 = vld [vmem:[%s4193 + $0xc2] sm:$0xff]
  %v5367 = vld [vmem:[%s4193 + $0xca] sm:$0xff]
  %v5368 = vld [vmem:[%s4193 + $0xda] sm:$0xff]
  %v5369 = vld [vmem:[%s4193 + $0xe2] sm:$0xff]
  %v5370 = vld [vmem:[%s4193 + $0xf2] sm:$0xff]
  %v5371 = vld [vmem:[%s4193 + $0xfa] sm:$0xff]
  %v5372 = vld [vmem:[%s4193 + $0x10a] sm:$0xff]
  %v5373 = vld [vmem:[%s4193 + $0x112] sm:$0xff]
  %v5374 = vld [vmem:[%s4193 + $0x122] sm:$0xff]
  %v5375 = vld [vmem:[%s4193 + $0x12a] sm:$0xff]
  %v5376 = vld [vmem:[%s4193 + $0x13a] sm:$0xff]
  %v5377 = vld [vmem:[%s4193 + $0x142] sm:$0xff]
  %v5378 = vld [vmem:[%s4193 + $0x152] sm:$0xff]
  %v5379 = vld [vmem:[%s4193 + $0x15a] sm:$0xff]
  %v5380 = vld [vmem:[%s4193 + $0x16a] sm:$0xff]
  %v5381 = vld [vmem:[%s4193 + $0x172] sm:$0xff]
  %v5382 = vld [vmem:[%s4193 + $0x1b2] sm:$0xff]
  %v5383 = vld [vmem:[%s4193 + $0x1ba] sm:$0xff]
  %v5384 = vld [vmem:[%s4193 + $0x1ca] sm:$0xff]
  %v5385 = vld [vmem:[%s4193 + $0x1d2] sm:$0xff]
  %v5386 = vld [vmem:[%s4193 + $0x1e2] sm:$0xff]
  %v5387 = vld [vmem:[%s4193 + $0x1ea] sm:$0xff]
  %v5388 = vld [vmem:[%s4193 + $0x1fa] sm:$0xff]
  %v5389 = vld [vmem:[%s4193 + $0x202] sm:$0xff]
  %v5390 = vld [vmem:[%s4193 + $0x212] sm:$0xff]
  %v5391 = vld [vmem:[%s4193 + $0x21a] sm:$0xff]
  %v5392 = vld [vmem:[%s4193 + $0x22a] sm:$0xff]
  %v5393 = vld [vmem:[%s4193 + $0x232] sm:$0xff]
  %v5394 = vld [vmem:[%s4193 + $0x242] sm:$0xff]
  %v5395 = vld [vmem:[%s4193 + $0x24a] sm:$0xff]
  %v5396 = vld [vmem:[%s4193 + $0x25a] sm:$0xff]
  %v5397 = vld [vmem:[%s4193 + $0x262] sm:$0xff]
  %v5398 = vld [vmem:[%s4193 + $0x272] sm:$0xff]
  %v5399 = vld [vmem:[%s4193 + $0x27a] sm:$0xff]
  %v5400 = vld [vmem:[%s4193 + $0x28a] sm:$0xff]
  %v5401 = vld [vmem:[%s4193 + $0x292] sm:$0xff]
  %v5402 = vld [vmem:[%s4193 + $0x2a2] sm:$0xff]
  %v5403 = vld [vmem:[%s4193 + $0x2aa] sm:$0xff]
  %v5404 = vld [vmem:[%s4193 + $0x2ba] sm:$0xff]
  %v5405 = vld [vmem:[%s4193 + $0x2c2] sm:$0xff]
  %v5406 = vld [vmem:[%s4193 + $0x2d2] sm:$0xff]
  %v5407 = vld [vmem:[%s4193 + $0x2da] sm:$0xff]
  %v5408 = vld [vmem:[%s4193 + $0x2ea] sm:$0xff]
  %v5409 = vld [vmem:[%s4193 + $0x2f2] sm:$0xff]
  %v5410 = vld [vmem:[%s4193 + $0x302] sm:$0xff]
  %v5411 = vld [vmem:[%s4193 + $0x30a] sm:$0xff]
  %v5412 = vld [vmem:[%s4193 + $0x31a] sm:$0xff]
  %v5413 = vld [vmem:[%s4193 + $0x322] sm:$0xff]
  %v5414 = vpack.c.bf16 %v5351, %v5350
  %v5415 = vpack.c.bf16 %v5353, %v5352
  %v5416 = vpack.c.bf16 %v5355, %v5354
  %v5417 = vpack.c.bf16 %v5357, %v5356
  %v5418 = vpack.c.bf16 %v5359, %v5358
  %v5419 = vpack.c.bf16 %v5361, %v5360
  %v5420 = vpack.c.bf16 %v5363, %v5362
  %v5421 = vpack.c.bf16 %v5365, %v5364
  %v5422 = vpack.c.bf16 %v5367, %v5366
  %v5423 = vpack.c.bf16 %v5369, %v5368
  %v5424 = vpack.c.bf16 %v5371, %v5370
  %v5425 = vpack.c.bf16 %v5373, %v5372
  %v5426 = vpack.c.bf16 %v5375, %v5374
  %v5427 = vpack.c.bf16 %v5377, %v5376
  %v5428 = vpack.c.bf16 %v5379, %v5378
  %v5429 = vpack.c.bf16 %v5381, %v5380
  %v5430 = vpack.c.bf16 %v5383, %v5382
  %v5431 = vpack.c.bf16 %v5385, %v5384
  %v5432 = vpack.c.bf16 %v5387, %v5386
  %v5433 = vpack.c.bf16 %v5389, %v5388
  %v5434 = vpack.c.bf16 %v5391, %v5390
  %v5435 = vpack.c.bf16 %v5393, %v5392
  %v5436 = vpack.c.bf16 %v5395, %v5394
  %v5437 = vpack.c.bf16 %v5397, %v5396
  %v5438 = vpack.c.bf16 %v5399, %v5398
  %v5439 = vpack.c.bf16 %v5401, %v5400
  %v5440 = vpack.c.bf16 %v5403, %v5402
  %v5441 = vpack.c.bf16 %v5405, %v5404
  %v5442 = vpack.c.bf16 %v5407, %v5406
  %v5443 = vpack.c.bf16 %v5409, %v5408
  %v5444 = vpack.c.bf16 %v5411, %v5410
  %v5445 = vpack.c.bf16 %v5413, %v5412
  %s5446 = scalar_lea.vmem %s3, 256
  %v5447 = vld [vmem:[%s5446] sm:$0xf]
  %v5448 = vld [vmem:[%s5446 + $0x4] sm:$0xf]
  %v5449 = vld [vmem:[%s5446 + $0x8] sm:$0xf]
  %v5450 = vld [vmem:[%s5446 + $0xc] sm:$0xf]
  %v5451 = vld [vmem:[%s5446 + $0x10] sm:$0xf]
  %v5452 = vld [vmem:[%s5446 + $0x14] sm:$0xf]
  %v5453 = vld [vmem:[%s5446 + $0x18] sm:$0xf]
  %v5454 = vld [vmem:[%s5446 + $0x1c] sm:$0xf]
  %v5463 = vunpack.c.l.b16 %v5447
  %v5464 = vunpack.c.l.b16 %v5448
  %v5465 = vunpack.c.l.b16 %v5449
  %v5466 = vunpack.c.l.b16 %v5450
  %v5467 = vunpack.c.l.b16 %v5451
  %v5468 = vunpack.c.l.b16 %v5452
  %v5469 = vunpack.c.l.b16 %v5453
  %v5470 = vunpack.c.l.b16 %v5454
  %v5471 = vpack.c.b16 %v5464, %v5463
  %v5472 = vpack.c.b16 %v5466, %v5465
  %v5473 = vpack.c.b16 %v5468, %v5467
  %v5474 = vpack.c.b16 %v5470, %v5469
  %v5480 = vsel %vm701, %v5414, 0
  %v5483 = vsel %vm701, %v5415, 0
  %v5486 = vsel %vm701, %v5416, 0
  %v5489 = vsel %vm701, %v5417, 0
  %v5492 = vsel %vm701, %v5418, 0
  %v5495 = vsel %vm701, %v5419, 0
  %v5498 = vsel %vm701, %v5420, 0
  %v5501 = vsel %vm701, %v5421, 0
  %v5504 = vsel %vm701, %v5422, 0
  %v5507 = vsel %vm701, %v5423, 0
  %v5510 = vsel %vm701, %v5424, 0
  %v5513 = vsel %vm701, %v5425, 0
  %v5516 = vsel %vm701, %v5426, 0
  %v5519 = vsel %vm701, %v5427, 0
  %v5522 = vsel %vm701, %v5428, 0
  %v5525 = vsel %vm701, %v5429, 0
  %v5528 = vsel %vm701, %v5430, 0
  %v5531 = vsel %vm701, %v5431, 0
  %v5534 = vsel %vm701, %v5432, 0
  %v5537 = vsel %vm701, %v5433, 0
  %v5540 = vsel %vm701, %v5434, 0
  %v5543 = vsel %vm701, %v5435, 0
  %v5546 = vsel %vm701, %v5436, 0
  %v5549 = vsel %vm701, %v5437, 0
  %v5552 = vsel %vm701, %v5438, 0
  %v5555 = vsel %vm701, %v5439, 0
  %v5558 = vsel %vm701, %v5440, 0
  %v5561 = vsel %vm701, %v5441, 0
  %v5564 = vsel %vm701, %v5442, 0
  %v5567 = vsel %vm701, %v5443, 0
  %v5570 = vsel %vm701, %v5444, 0
  %v5573 = vsel %vm701, %v5445, 0
  %5575 = vmatprep.subr.bf16.mxu0 0
  %5576 = vmatpush1.bf16.msra.mxu0 %v5471
  %5577 = vmatprep.subr.bf16.mxu0 0
  %5578 = vmatpush1.bf16.msra.mxu0 %v5472
  %5579 = vmatprep.subr.bf16.mxu0 0
  %5580 = vmatpush1.bf16.msra.mxu0 %v5473
  %5581 = vmatprep.subr.bf16.mxu0 0
  %5582 = vmatpush1.bf16.msra.mxu0 %v5474
  %5583 = vmatprep.subr.bf16.mxu0 0
  %5584 = vmatpush1.bf16.msra.mxu0 0
  %5585 = vmatprep.subr.bf16.mxu0 0
  %5586 = vmatpush1.bf16.msra.mxu0 0
  %5587 = vmatprep.subr.bf16.mxu0 0
  %5588 = vmatpush1.bf16.msra.mxu0 0
  %5589 = vmatprep.subr.bf16.mxu0 0
  %5590 = vmatpush1.bf16.msra.mxu0 0
  %5591 = vmatprep.subr.bf16.mxu0 0
  %5592 = vmatpush1.bf16.msra.mxu0 0
  %5593 = vmatprep.subr.bf16.mxu0 0
  %5594 = vmatpush1.bf16.msra.mxu0 0
  %5595 = vmatprep.subr.bf16.mxu0 0
  %5596 = vmatpush1.bf16.msra.mxu0 0
  %5597 = vmatprep.subr.bf16.mxu0 0
  %5598 = vmatpush1.bf16.msra.mxu0 0
  %5599 = vmatprep.subr.bf16.mxu0 0
  %5600 = vmatpush1.bf16.msra.mxu0 0
  %5601 = vmatprep.subr.bf16.mxu0 0
  %5602 = vmatpush1.bf16.msra.mxu0 0
  %5603 = vmatprep.subr.bf16.mxu0 0
  %5604 = vmatpush1.bf16.msra.mxu0 0
  %5605 = vmatprep.subr.bf16.mxu0 0
  %5606 = vmatpush1.bf16.msra.mxu0 0
  %5607 = vmatprep.mubr.bf16.mxu0 0
  %5608 = vmatmul.mubr.bf16.gmra.mrb[0].mxu0 %v5480
  %v5609 = vpop.f32.mrb[0].mxu0
  %v5610 = vadd.f32 0.0, %v5609
  %v5611 = vpop.f32.mrb[0].mxu0
  %v5612 = vpop.f32.mrb[0].mxu0
  %v5613 = vadd.f32 0.0, %v5612
  %v5614 = vpop.f32.mrb[0].mxu0
  %5615 = vmatprep.mubr.bf16.mxu0 0
  %5616 = vmatmul.mubr.bf16.gmra.mrb[0].mxu0 %v5483
  %v5617 = vpop.f32.mrb[0].mxu0
  %v5618 = vadd.f32 0.0, %v5617
  %v5619 = vpop.f32.mrb[0].mxu0
  %v5620 = vpop.f32.mrb[0].mxu0
  %v5621 = vadd.f32 0.0, %v5620
  %v5622 = vpop.f32.mrb[0].mxu0
  %5623 = vmatprep.mubr.bf16.mxu0 0
  %5624 = vmatmul.mubr.bf16.gmra.mrb[0].mxu0 %v5486
  %v5625 = vpop.f32.mrb[0].mxu0
  %v5626 = vadd.f32 0.0, %v5625
  %v5627 = vpop.f32.mrb[0].mxu0
  %v5628 = vpop.f32.mrb[0].mxu0
  %v5629 = vadd.f32 0.0, %v5628
  %v5630 = vpop.f32.mrb[0].mxu0
  %5631 = vmatprep.mubr.bf16.mxu0 0
  %5632 = vmatmul.mubr.bf16.gmra.mrb[0].mxu0 %v5489
  %v5633 = vpop.f32.mrb[0].mxu0
  %v5634 = vadd.f32 0.0, %v5633
  %v5635 = vpop.f32.mrb[0].mxu0
  %v5636 = vpop.f32.mrb[0].mxu0
  %v5637 = vadd.f32 0.0, %v5636
  %v5638 = vpop.f32.mrb[0].mxu0
  %5639 = vmatprep.mubr.bf16.mxu0 0
  %5640 = vmatmul.mubr.bf16.gmra.mrb[0].mxu0 %v5492
  %v5641 = vpop.f32.mrb[0].mxu0
  %v5642 = vadd.f32 0.0, %v5641
  %v5643 = vpop.f32.mrb[0].mxu0
  %v5644 = vpop.f32.mrb[0].mxu0
  %v5645 = vadd.f32 0.0, %v5644
  %v5646 = vpop.f32.mrb[0].mxu0
  %5647 = vmatprep.mubr.bf16.mxu0 0
  %5648 = vmatmul.mubr.bf16.gmra.mrb[0].mxu0 %v5495
  %v5649 = vpop.f32.mrb[0].mxu0
  %v5650 = vadd.f32 0.0, %v5649
  %v5651 = vpop.f32.mrb[0].mxu0
  %v5652 = vpop.f32.mrb[0].mxu0
  %v5653 = vadd.f32 0.0, %v5652
  %v5654 = vpop.f32.mrb[0].mxu0
  %5655 = vmatprep.mubr.bf16.mxu0 0
  %5656 = vmatmul.mubr.bf16.gmra.mrb[0].mxu0 %v5498
  %v5657 = vpop.f32.mrb[0].mxu0
  %v5658 = vadd.f32 0.0, %v5657
  %v5659 = vpop.f32.mrb[0].mxu0
  %v5660 = vpop.f32.mrb[0].mxu0
  %v5661 = vadd.f32 0.0, %v5660
  %v5662 = vpop.f32.mrb[0].mxu0
  %5663 = vmatprep.mubr.bf16.mxu0 0
  %5664 = vmatmul.mubr.bf16.gmra.mrb[0].mxu0 %v5501
  %v5665 = vpop.f32.mrb[0].mxu0
  %v5666 = vadd.f32 0.0, %v5665
  %v5667 = vpop.f32.mrb[0].mxu0
  %v5668 = vpop.f32.mrb[0].mxu0
  %v5669 = vadd.f32 0.0, %v5668
  %v5670 = vpop.f32.mrb[0].mxu0
  %5671 = vmatprep.mubr.bf16.mxu0 0
  %5672 = vmatmul.mubr.bf16.gmra.mrb[0].mxu0 %v5504
  %v5673 = vpop.f32.mrb[0].mxu0
  %v5674 = vadd.f32 0.0, %v5673
  %v5675 = vpop.f32.mrb[0].mxu0
  %v5676 = vpop.f32.mrb[0].mxu0
  %v5677 = vadd.f32 0.0, %v5676
  %v5678 = vpop.f32.mrb[0].mxu0
  %5679 = vmatprep.mubr.bf16.mxu0 0
  %5680 = vmatmul.mubr.bf16.gmra.mrb[0].mxu0 %v5507
  %v5681 = vpop.f32.mrb[0].mxu0
  %v5682 = vadd.f32 0.0, %v5681
  %v5683 = vpop.f32.mrb[0].mxu0
  %v5684 = vpop.f32.mrb[0].mxu0
  %v5685 = vadd.f32 0.0, %v5684
  %v5686 = vpop.f32.mrb[0].mxu0
  %5687 = vmatprep.mubr.bf16.mxu0 0
  %5688 = vmatmul.mubr.bf16.gmra.mrb[0].mxu0 %v5510
  %v5689 = vpop.f32.mrb[0].mxu0
  %v5690 = vadd.f32 0.0, %v5689
  %v5691 = vpop.f32.mrb[0].mxu0
  %v5692 = vpop.f32.mrb[0].mxu0
  %v5693 = vadd.f32 0.0, %v5692
  %v5694 = vpop.f32.mrb[0].mxu0
  %5695 = vmatprep.mubr.bf16.mxu0 0
  %5696 = vmatmul.mubr.bf16.gmra.mrb[0].mxu0 %v5513
  %v5697 = vpop.f32.mrb[0].mxu0
  %v5698 = vadd.f32 0.0, %v5697
  %v5699 = vpop.f32.mrb[0].mxu0
  %v5700 = vpop.f32.mrb[0].mxu0
  %v5701 = vadd.f32 0.0, %v5700
  %v5702 = vpop.f32.mrb[0].mxu0
  %5703 = vmatprep.mubr.bf16.mxu0 0
  %5704 = vmatmul.mubr.bf16.gmra.mrb[0].mxu0 %v5516
  %v5705 = vpop.f32.mrb[0].mxu0
  %v5706 = vadd.f32 0.0, %v5705
  %v5707 = vpop.f32.mrb[0].mxu0
  %v5708 = vpop.f32.mrb[0].mxu0
  %v5709 = vadd.f32 0.0, %v5708
  %v5710 = vpop.f32.mrb[0].mxu0
  %5711 = vmatprep.mubr.bf16.mxu0 0
  %5712 = vmatmul.mubr.bf16.gmra.mrb[0].mxu0 %v5519
  %v5713 = vpop.f32.mrb[0].mxu0
  %v5714 = vadd.f32 0.0, %v5713
  %v5715 = vpop.f32.mrb[0].mxu0
  %v5716 = vpop.f32.mrb[0].mxu0
  %v5717 = vadd.f32 0.0, %v5716
  %v5718 = vpop.f32.mrb[0].mxu0
  %5719 = vmatprep.mubr.bf16.mxu0 0
  %5720 = vmatmul.mubr.bf16.gmra.mrb[0].mxu0 %v5522
  %v5721 = vpop.f32.mrb[0].mxu0
  %v5722 = vadd.f32 0.0, %v5721
  %v5723 = vpop.f32.mrb[0].mxu0
  %v5724 = vpop.f32.mrb[0].mxu0
  %v5725 = vadd.f32 0.0, %v5724
  %v5726 = vpop.f32.mrb[0].mxu0
  %5727 = vmatprep.mubr.bf16.mxu0 0
  %5728 = vmatmul.mubr.bf16.gmra.mrb[0].mxu0 %v5525
  %v5729 = vpop.f32.mrb[0].mxu0
  %v5730 = vadd.f32 0.0, %v5729
  %v5731 = vpop.f32.mrb[0].mxu0
  %v5732 = vpop.f32.mrb[0].mxu0
  %v5733 = vadd.f32 0.0, %v5732
  %v5734 = vpop.f32.mrb[0].mxu0
  %5735 = vmatprep.mubr.bf16.mxu0 0
  %5736 = vmatmul.mubr.bf16.gmra.mrb[0].mxu0 %v5528
  %v5737 = vpop.f32.mrb[0].mxu0
  %v5738 = vadd.f32 0.0, %v5737
  %v5739 = vpop.f32.mrb[0].mxu0
  %v5740 = vpop.f32.mrb[0].mxu0
  %v5741 = vadd.f32 0.0, %v5740
  %v5742 = vpop.f32.mrb[0].mxu0
  %5743 = vmatprep.mubr.bf16.mxu0 0
  %5744 = vmatmul.mubr.bf16.gmra.mrb[0].mxu0 %v5531
  %v5745 = vpop.f32.mrb[0].mxu0
  %v5746 = vadd.f32 0.0, %v5745
  %v5747 = vpop.f32.mrb[0].mxu0
  %v5748 = vpop.f32.mrb[0].mxu0
  %v5749 = vadd.f32 0.0, %v5748
  %v5750 = vpop.f32.mrb[0].mxu0
  %5751 = vmatprep.mubr.bf16.mxu0 0
  %5752 = vmatmul.mubr.bf16.gmra.mrb[0].mxu0 %v5534
  %v5753 = vpop.f32.mrb[0].mxu0
  %v5754 = vadd.f32 0.0, %v5753
  %v5755 = vpop.f32.mrb[0].mxu0
  %v5756 = vpop.f32.mrb[0].mxu0
  %v5757 = vadd.f32 0.0, %v5756
  %v5758 = vpop.f32.mrb[0].mxu0
  %5759 = vmatprep.mubr.bf16.mxu0 0
  %5760 = vmatmul.mubr.bf16.gmra.mrb[0].mxu0 %v5537
  %v5761 = vpop.f32.mrb[0].mxu0
  %v5762 = vadd.f32 0.0, %v5761
  %v5763 = vpop.f32.mrb[0].mxu0
  %v5764 = vpop.f32.mrb[0].mxu0
  %v5765 = vadd.f32 0.0, %v5764
  %v5766 = vpop.f32.mrb[0].mxu0
  %5767 = vmatprep.mubr.bf16.mxu0 0
  %5768 = vmatmul.mubr.bf16.gmra.mrb[0].mxu0 %v5540
  %v5769 = vpop.f32.mrb[0].mxu0
  %v5770 = vadd.f32 0.0, %v5769
  %v5771 = vpop.f32.mrb[0].mxu0
  %v5772 = vpop.f32.mrb[0].mxu0
  %v5773 = vadd.f32 0.0, %v5772
  %v5774 = vpop.f32.mrb[0].mxu0
  %5775 = vmatprep.mubr.bf16.mxu0 0
  %5776 = vmatmul.mubr.bf16.gmra.mrb[0].mxu0 %v5543
  %v5777 = vpop.f32.mrb[0].mxu0
  %v5778 = vadd.f32 0.0, %v5777
  %v5779 = vpop.f32.mrb[0].mxu0
  %v5780 = vpop.f32.mrb[0].mxu0
  %v5781 = vadd.f32 0.0, %v5780
  %v5782 = vpop.f32.mrb[0].mxu0
  %5783 = vmatprep.mubr.bf16.mxu0 0
  %5784 = vmatmul.mubr.bf16.gmra.mrb[0].mxu0 %v5546
  %v5785 = vpop.f32.mrb[0].mxu0
  %v5786 = vadd.f32 0.0, %v5785
  %v5787 = vpop.f32.mrb[0].mxu0
  %v5788 = vpop.f32.mrb[0].mxu0
  %v5789 = vadd.f32 0.0, %v5788
  %v5790 = vpop.f32.mrb[0].mxu0
  %5791 = vmatprep.mubr.bf16.mxu0 0
  %5792 = vmatmul.mubr.bf16.gmra.mrb[0].mxu0 %v5549
  %v5793 = vpop.f32.mrb[0].mxu0
  %v5794 = vadd.f32 0.0, %v5793
  %v5795 = vpop.f32.mrb[0].mxu0
  %v5796 = vpop.f32.mrb[0].mxu0
  %v5797 = vadd.f32 0.0, %v5796
  %v5798 = vpop.f32.mrb[0].mxu0
  %5799 = vmatprep.mubr.bf16.mxu0 0
  %5800 = vmatmul.mubr.bf16.gmra.mrb[0].mxu0 %v5552
  %v5801 = vpop.f32.mrb[0].mxu0
  %v5802 = vadd.f32 0.0, %v5801
  %v5803 = vpop.f32.mrb[0].mxu0
  %v5804 = vpop.f32.mrb[0].mxu0
  %v5805 = vadd.f32 0.0, %v5804
  %v5806 = vpop.f32.mrb[0].mxu0
  %5807 = vmatprep.mubr.bf16.mxu0 0
  %5808 = vmatmul.mubr.bf16.gmra.mrb[0].mxu0 %v5555
  %v5809 = vpop.f32.mrb[0].mxu0
  %v5810 = vadd.f32 0.0, %v5809
  %v5811 = vpop.f32.mrb[0].mxu0
  %v5812 = vpop.f32.mrb[0].mxu0
  %v5813 = vadd.f32 0.0, %v5812
  %v5814 = vpop.f32.mrb[0].mxu0
  %5815 = vmatprep.mubr.bf16.mxu0 0
  %5816 = vmatmul.mubr.bf16.gmra.mrb[0].mxu0 %v5558
  %v5817 = vpop.f32.mrb[0].mxu0
  %v5818 = vadd.f32 0.0, %v5817
  %v5819 = vpop.f32.mrb[0].mxu0
  %v5820 = vpop.f32.mrb[0].mxu0
  %v5821 = vadd.f32 0.0, %v5820
  %v5822 = vpop.f32.mrb[0].mxu0
  %5823 = vmatprep.mubr.bf16.mxu0 0
  %5824 = vmatmul.mubr.bf16.gmra.mrb[0].mxu0 %v5561
  %v5825 = vpop.f32.mrb[0].mxu0
  %v5826 = vadd.f32 0.0, %v5825
  %v5827 = vpop.f32.mrb[0].mxu0
  %v5828 = vpop.f32.mrb[0].mxu0
  %v5829 = vadd.f32 0.0, %v5828
  %v5830 = vpop.f32.mrb[0].mxu0
  %5831 = vmatprep.mubr.bf16.mxu0 0
  %5832 = vmatmul.mubr.bf16.gmra.mrb[0].mxu0 %v5564
  %v5833 = vpop.f32.mrb[0].mxu0
  %v5834 = vadd.f32 0.0, %v5833
  %v5835 = vpop.f32.mrb[0].mxu0
  %v5836 = vpop.f32.mrb[0].mxu0
  %v5837 = vadd.f32 0.0, %v5836
  %v5838 = vpop.f32.mrb[0].mxu0
  %5839 = vmatprep.mubr.bf16.mxu0 0
  %5840 = vmatmul.mubr.bf16.gmra.mrb[0].mxu0 %v5567
  %v5841 = vpop.f32.mrb[0].mxu0
  %v5842 = vadd.f32 0.0, %v5841
  %v5843 = vpop.f32.mrb[0].mxu0
  %v5844 = vpop.f32.mrb[0].mxu0
  %v5845 = vadd.f32 0.0, %v5844
  %v5846 = vpop.f32.mrb[0].mxu0
  %5847 = vmatprep.mubr.bf16.mxu0 0
  %5848 = vmatmul.mubr.bf16.gmra.mrb[0].mxu0 %v5570
  %v5849 = vpop.f32.mrb[0].mxu0
  %v5850 = vadd.f32 0.0, %v5849
  %v5851 = vpop.f32.mrb[0].mxu0
  %v5852 = vpop.f32.mrb[0].mxu0
  %v5853 = vadd.f32 0.0, %v5852
  %v5854 = vpop.f32.mrb[0].mxu0
  %5855 = vmatprep.mubr.bf16.mxu0 0
  %5856 = vmatmul.mubr.bf16.gmra.mrb[0].mxu0 %v5573
  %v5857 = vpop.f32.mrb[0].mxu0
  %v5858 = vadd.f32 0.0, %v5857
  %v5859 = vpop.f32.mrb[0].mxu0
  %v5860 = vpop.f32.mrb[0].mxu0
  %v5861 = vadd.f32 0.0, %v5860
  %v5862 = vpop.f32.mrb[0].mxu0
  %5863 = vdwg.mxu0
  %v5864 = vadd.f32 %v5286, %v5610
  %v5865 = vadd.f32 %v5287, %v5613
  %v5866 = vadd.f32 %v5288, %v5618
  %v5867 = vadd.f32 %v5289, %v5621
  %v5868 = vadd.f32 %v5290, %v5626
  %v5869 = vadd.f32 %v5291, %v5629
  %v5870 = vadd.f32 %v5292, %v5634
  %v5871 = vadd.f32 %v5293, %v5637
  %v5872 = vadd.f32 %v5294, %v5642
  %v5873 = vadd.f32 %v5295, %v5645
  %v5874 = vadd.f32 %v5296, %v5650
  %v5875 = vadd.f32 %v5297, %v5653
  %v5876 = vadd.f32 %v5298, %v5658
  %v5877 = vadd.f32 %v5299, %v5661
  %v5878 = vadd.f32 %v5300, %v5666
  %v5879 = vadd.f32 %v5301, %v5669
  %v5880 = vadd.f32 %v5302, %v5674
  %v5881 = vadd.f32 %v5303, %v5677
  %v5882 = vadd.f32 %v5304, %v5682
  %v5883 = vadd.f32 %v5305, %v5685
  %v5884 = vadd.f32 %v5306, %v5690
  %v5885 = vadd.f32 %v5307, %v5693
  %v5886 = vadd.f32 %v5308, %v5698
  %v5887 = vadd.f32 %v5309, %v5701
  %v5888 = vadd.f32 %v5310, %v5706
  %v5889 = vadd.f32 %v5311, %v5709
  %v5890 = vadd.f32 %v5312, %v5714
  %v5891 = vadd.f32 %v5313, %v5717
  %v5892 = vadd.f32 %v5314, %v5722
  %v5893 = vadd.f32 %v5315, %v5725
  %v5894 = vadd.f32 %v5316, %v5730
  %v5895 = vadd.f32 %v5317, %v5733
  %v5896 = vadd.f32 %v5318, %v5738
  %v5897 = vadd.f32 %v5319, %v5741
  %v5898 = vadd.f32 %v5320, %v5746
  %v5899 = vadd.f32 %v5321, %v5749
  %v5900 = vadd.f32 %v5322, %v5754
  %v5901 = vadd.f32 %v5323, %v5757
  %v5902 = vadd.f32 %v5324, %v5762
  %v5903 = vadd.f32 %v5325, %v5765
  %v5904 = vadd.f32 %v5326, %v5770
  %v5905 = vadd.f32 %v5327, %v5773
  %v5906 = vadd.f32 %v5328, %v5778
  %v5907 = vadd.f32 %v5329, %v5781
  %v5908 = vadd.f32 %v5330, %v5786
  %v5909 = vadd.f32 %v5331, %v5789
  %v5910 = vadd.f32 %v5332, %v5794
  %v5911 = vadd.f32 %v5333, %v5797
  %v5912 = vadd.f32 %v5334, %v5802
  %v5913 = vadd.f32 %v5335, %v5805
  %v5914 = vadd.f32 %v5336, %v5810
  %v5915 = vadd.f32 %v5337, %v5813
  %v5916 = vadd.f32 %v5338, %v5818
  %v5917 = vadd.f32 %v5339, %v5821
  %v5918 = vadd.f32 %v5340, %v5826
  %v5919 = vadd.f32 %v5341, %v5829
  %v5920 = vadd.f32 %v5342, %v5834
  %v5921 = vadd.f32 %v5343, %v5837
  %v5922 = vadd.f32 %v5344, %v5842
  %v5923 = vadd.f32 %v5345, %v5845
  %v5924 = vadd.f32 %v5346, %v5850
  %v5925 = vadd.f32 %v5347, %v5853
  %v5926 = vadd.f32 %v5348, %v5858
  %v5927 = vadd.f32 %v5349, %v5861
  %v5928 = vld [vmem:[%s4] sm:$0x1]
  %v5930 = vlaneseq
  %v5931 = vshrl.u32 %v5930, 7
  %v5932 = vsub.s32 0, %v5931
  %v5933 = vrot.slane %v5928, %v5932
  %v5935 = vadd.f32 %v5864, %v5933
  %v5936 = vadd.f32 %v5865, %v5933
  %v5937 = vadd.f32 %v5866, %v5933
  %v5938 = vadd.f32 %v5867, %v5933
  %v5939 = vadd.f32 %v5868, %v5933
  %v5940 = vadd.f32 %v5869, %v5933
  %v5941 = vadd.f32 %v5870, %v5933
  %v5942 = vadd.f32 %v5871, %v5933
  %v5943 = vadd.f32 %v5872, %v5933
  %v5944 = vadd.f32 %v5873, %v5933
  %v5945 = vadd.f32 %v5874, %v5933
  %v5946 = vadd.f32 %v5875, %v5933
  %v5947 = vadd.f32 %v5876, %v5933
  %v5948 = vadd.f32 %v5877, %v5933
  %v5949 = vadd.f32 %v5878, %v5933
  %v5950 = vadd.f32 %v5879, %v5933
  %v5951 = vadd.f32 %v5880, %v5933
  %v5952 = vadd.f32 %v5881, %v5933
  %v5953 = vadd.f32 %v5882, %v5933
  %v5954 = vadd.f32 %v5883, %v5933
  %v5955 = vadd.f32 %v5884, %v5933
  %v5956 = vadd.f32 %v5885, %v5933
  %v5957 = vadd.f32 %v5886, %v5933
  %v5958 = vadd.f32 %v5887, %v5933
  %v5959 = vadd.f32 %v5888, %v5933
  %v5960 = vadd.f32 %v5889, %v5933
  %v5961 = vadd.f32 %v5890, %v5933
  %v5962 = vadd.f32 %v5891, %v5933
  %v5963 = vadd.f32 %v5892, %v5933
  %v5964 = vadd.f32 %v5893, %v5933
  %v5965 = vadd.f32 %v5894, %v5933
  %v5966 = vadd.f32 %v5895, %v5933
  %v5967 = vadd.f32 %v5896, %v5933
  %v5968 = vadd.f32 %v5897, %v5933
  %v5969 = vadd.f32 %v5898, %v5933
  %v5970 = vadd.f32 %v5899, %v5933
  %v5971 = vadd.f32 %v5900, %v5933
  %v5972 = vadd.f32 %v5901, %v5933
  %v5973 = vadd.f32 %v5902, %v5933
  %v5974 = vadd.f32 %v5903, %v5933
  %v5975 = vadd.f32 %v5904, %v5933
  %v5976 = vadd.f32 %v5905, %v5933
  %v5977 = vadd.f32 %v5906, %v5933
  %v5978 = vadd.f32 %v5907, %v5933
  %v5979 = vadd.f32 %v5908, %v5933
  %v5980 = vadd.f32 %v5909, %v5933
  %v5981 = vadd.f32 %v5910, %v5933
  %v5982 = vadd.f32 %v5911, %v5933
  %v5983 = vadd.f32 %v5912, %v5933
  %v5984 = vadd.f32 %v5913, %v5933
  %v5985 = vadd.f32 %v5914, %v5933
  %v5986 = vadd.f32 %v5915, %v5933
  %v5987 = vadd.f32 %v5916, %v5933
  %v5988 = vadd.f32 %v5917, %v5933
  %v5989 = vadd.f32 %v5918, %v5933
  %v5990 = vadd.f32 %v5919, %v5933
  %v5991 = vadd.f32 %v5920, %v5933
  %v5992 = vadd.f32 %v5921, %v5933
  %v5993 = vadd.f32 %v5922, %v5933
  %v5994 = vadd.f32 %v5923, %v5933
  %v5995 = vadd.f32 %v5924, %v5933
  %v5996 = vadd.f32 %v5925, %v5933
  %v5997 = vadd.f32 %v5926, %v5933
  %v5998 = vadd.f32 %v5927, %v5933
  %v5999 = vmax.f32 %v5935, 0.0
  %v6000 = vmax.f32 %v5936, 0.0
  %v6001 = vmax.f32 %v5937, 0.0
  %v6002 = vmax.f32 %v5938, 0.0
  %v6003 = vmax.f32 %v5939, 0.0
  %v6004 = vmax.f32 %v5940, 0.0
  %v6005 = vmax.f32 %v5941, 0.0
  %v6006 = vmax.f32 %v5942, 0.0
  %v6007 = vmax.f32 %v5943, 0.0
  %v6008 = vmax.f32 %v5944, 0.0
  %v6009 = vmax.f32 %v5945, 0.0
  %v6010 = vmax.f32 %v5946, 0.0
  %v6011 = vmax.f32 %v5947, 0.0
  %v6012 = vmax.f32 %v5948, 0.0
  %v6013 = vmax.f32 %v5949, 0.0
  %v6014 = vmax.f32 %v5950, 0.0
  %v6015 = vmax.f32 %v5951, 0.0
  %v6016 = vmax.f32 %v5952, 0.0
  %v6017 = vmax.f32 %v5953, 0.0
  %v6018 = vmax.f32 %v5954, 0.0
  %v6019 = vmax.f32 %v5955, 0.0
  %v6020 = vmax.f32 %v5956, 0.0
  %v6021 = vmax.f32 %v5957, 0.0
  %v6022 = vmax.f32 %v5958, 0.0
  %v6023 = vmax.f32 %v5959, 0.0
  %v6024 = vmax.f32 %v5960, 0.0
  %v6025 = vmax.f32 %v5961, 0.0
  %v6026 = vmax.f32 %v5962, 0.0
  %v6027 = vmax.f32 %v5963, 0.0
  %v6028 = vmax.f32 %v5964, 0.0
  %v6029 = vmax.f32 %v5965, 0.0
  %v6030 = vmax.f32 %v5966, 0.0
  %v6031 = vmax.f32 %v5967, 0.0
  %v6032 = vmax.f32 %v5968, 0.0
  %v6033 = vmax.f32 %v5969, 0.0
  %v6034 = vmax.f32 %v5970, 0.0
  %v6035 = vmax.f32 %v5971, 0.0
  %v6036 = vmax.f32 %v5972, 0.0
  %v6037 = vmax.f32 %v5973, 0.0
  %v6038 = vmax.f32 %v5974, 0.0
  %v6039 = vmax.f32 %v5975, 0.0
  %v6040 = vmax.f32 %v5976, 0.0
  %v6041 = vmax.f32 %v5977, 0.0
  %v6042 = vmax.f32 %v5978, 0.0
  %v6043 = vmax.f32 %v5979, 0.0
  %v6044 = vmax.f32 %v5980, 0.0
  %v6045 = vmax.f32 %v5981, 0.0
  %v6046 = vmax.f32 %v5982, 0.0
  %v6047 = vmax.f32 %v5983, 0.0
  %v6048 = vmax.f32 %v5984, 0.0
  %v6049 = vmax.f32 %v5985, 0.0
  %v6050 = vmax.f32 %v5986, 0.0
  %v6051 = vmax.f32 %v5987, 0.0
  %v6052 = vmax.f32 %v5988, 0.0
  %v6053 = vmax.f32 %v5989, 0.0
  %v6054 = vmax.f32 %v5990, 0.0
  %v6055 = vmax.f32 %v5991, 0.0
  %v6056 = vmax.f32 %v5992, 0.0
  %v6057 = vmax.f32 %v5993, 0.0
  %v6058 = vmax.f32 %v5994, 0.0
  %v6059 = vmax.f32 %v5995, 0.0
  %v6060 = vmax.f32 %v5996, 0.0
  %v6061 = vmax.f32 %v5997, 0.0
  %v6062 = vmax.f32 %v5998, 0.0
  %6063 = vst [vmem:[%s5] sm:$0xff] %v5999
  %6064 = vst [vmem:[%s5 + $0x8] sm:$0xff] %v6000
  %6065 = vst [vmem:[%s5 + $0x10] sm:$0xff] %v6001
  %6066 = vst [vmem:[%s5 + $0x18] sm:$0xff] %v6002
  %6067 = vst [vmem:[%s5 + $0x20] sm:$0xff] %v6003
  %6068 = vst [vmem:[%s5 + $0x28] sm:$0xff] %v6004
  %6069 = vst [vmem:[%s5 + $0x30] sm:$0xff] %v6005
  %6070 = vst [vmem:[%s5 + $0x38] sm:$0xff] %v6006
  %6071 = vst [vmem:[%s5 + $0x40] sm:$0xff] %v6007
  %6072 = vst [vmem:[%s5 + $0x48] sm:$0xff] %v6008
  %6073 = vst [vmem:[%s5 + $0x50] sm:$0xff] %v6009
  %6074 = vst [vmem:[%s5 + $0x58] sm:$0xff] %v6010
  %6075 = vst [vmem:[%s5 + $0x60] sm:$0xff] %v6011
  %6076 = vst [vmem:[%s5 + $0x68] sm:$0xff] %v6012
  %6077 = vst [vmem:[%s5 + $0x70] sm:$0xff] %v6013
  %6078 = vst [vmem:[%s5 + $0x78] sm:$0xff] %v6014
  %6079 = vst [vmem:[%s5 + $0x80] sm:$0xff] %v6015
  %6080 = vst [vmem:[%s5 + $0x88] sm:$0xff] %v6016
  %6081 = vst [vmem:[%s5 + $0x90] sm:$0xff] %v6017
  %6082 = vst [vmem:[%s5 + $0x98] sm:$0xff] %v6018
  %6083 = vst [vmem:[%s5 + $0xa0] sm:$0xff] %v6019
  %6084 = vst [vmem:[%s5 + $0xa8] sm:$0xff] %v6020
  %6085 = vst [vmem:[%s5 + $0xb0] sm:$0xff] %v6021
  %6086 = vst [vmem:[%s5 + $0xb8] sm:$0xff] %v6022
  %6087 = vst [vmem:[%s5 + $0xc0] sm:$0xff] %v6023
  %6088 = vst [vmem:[%s5 + $0xc8] sm:$0xff] %v6024
  %6089 = vst [vmem:[%s5 + $0xd0] sm:$0xff] %v6025
  %6090 = vst [vmem:[%s5 + $0xd8] sm:$0xff] %v6026
  %6091 = vst [vmem:[%s5 + $0xe0] sm:$0xff] %v6027
  %6092 = vst [vmem:[%s5 + $0xe8] sm:$0xff] %v6028
  %6093 = vst [vmem:[%s5 + $0xf0] sm:$0xff] %v6029
  %6094 = vst [vmem:[%s5 + $0xf8] sm:$0xff] %v6030
  %6095 = vst [vmem:[%s5 + $0x100] sm:$0xff] %v6031
  %6096 = vst [vmem:[%s5 + $0x108] sm:$0xff] %v6032
  %6097 = vst [vmem:[%s5 + $0x110] sm:$0xff] %v6033
  %6098 = vst [vmem:[%s5 + $0x118] sm:$0xff] %v6034
  %6099 = vst [vmem:[%s5 + $0x120] sm:$0xff] %v6035
  %6100 = vst [vmem:[%s5 + $0x128] sm:$0xff] %v6036
  %6101 = vst [vmem:[%s5 + $0x130] sm:$0xff] %v6037
  %6102 = vst [vmem:[%s5 + $0x138] sm:$0xff] %v6038
  %6103 = vst [vmem:[%s5 + $0x140] sm:$0xff] %v6039
  %6104 = vst [vmem:[%s5 + $0x148] sm:$0xff] %v6040
  %6105 = vst [vmem:[%s5 + $0x150] sm:$0xff] %v6041
  %6106 = vst [vmem:[%s5 + $0x158] sm:$0xff] %v6042
  %6107 = vst [vmem:[%s5 + $0x160] sm:$0xff] %v6043
  %6108 = vst [vmem:[%s5 + $0x168] sm:$0xff] %v6044
  %6109 = vst [vmem:[%s5 + $0x170] sm:$0xff] %v6045
  %6110 = vst [vmem:[%s5 + $0x178] sm:$0xff] %v6046
  %6111 = vst [vmem:[%s5 + $0x180] sm:$0xff] %v6047
  %6112 = vst [vmem:[%s5 + $0x188] sm:$0xff] %v6048
  %6113 = vst [vmem:[%s5 + $0x190] sm:$0xff] %v6049
  %6114 = vst [vmem:[%s5 + $0x198] sm:$0xff] %v6050
  %6115 = vst [vmem:[%s5 + $0x1a0] sm:$0xff] %v6051
  %6116 = vst [vmem:[%s5 + $0x1a8] sm:$0xff] %v6052
  %6117 = vst [vmem:[%s5 + $0x1b0] sm:$0xff] %v6053
  %6118 = vst [vmem:[%s5 + $0x1b8] sm:$0xff] %v6054
  %6119 = vst [vmem:[%s5 + $0x1c0] sm:$0xff] %v6055
  %6120 = vst [vmem:[%s5 + $0x1c8] sm:$0xff] %v6056
  %6121 = vst [vmem:[%s5 + $0x1d0] sm:$0xff] %v6057
  %6122 = vst [vmem:[%s5 + $0x1d8] sm:$0xff] %v6058
  %6123 = vst [vmem:[%s5 + $0x1e0] sm:$0xff] %v6059
  %6124 = vst [vmem:[%s5 + $0x1e8] sm:$0xff] %v6060
  %6125 = vst [vmem:[%s5 + $0x1f0] sm:$0xff] %v6061
  %6126 = vst [vmem:[%s5 + $0x1f8] sm:$0xff] %v6062
  // Predicated region
  $region22: #{double_conv_forward.1} parent=0 // pred_check
    _
  $region23: #{double_conv_forward.1} parent=0 // pred_check_branch
    %6128 = sbr.rel (0) target = $region25
  $region24: #{double_conv_forward.1} parent=0 // pred_region
    _
  $region25: #{double_conv_forward.1} parent=0 // pred_fallthru
    _
  // Predicated region
  $region26: #{double_conv_forward.1} parent=0 // pred_check
    _
  $region27: #{double_conv_forward.1} parent=0 // pred_check_branch
    %6130 = sbr.rel (0) target = $region29
  $region28: #{double_conv_forward.1} parent=0 // pred_region
    _
  $region29: #{double_conv_forward.1} parent=0 // pred_fallthru
    _

</llo_original>
